<compile_context>
chip_gen: v7x
topology: tpu7x:2x2x1
jax: 0.10.0
libtpu: 0.0.40
codegen_flags: <defaults>
</compile_context>

<pallas_src>
import jax
import jax.numpy as jnp
from jax import lax
from jax.experimental import pallas as pl
from jax.experimental.pallas import tpu as pltpu

EPS = 1e-5


# ---------------------------------------------------------------------------
# Pallas kernels
# ---------------------------------------------------------------------------
def _coord_att_kernel(x_ref, wh_ref, sbh_ref, ww_ref, sbw_ref,
                      w1_ref, p1_ref, w2_ref, b2_ref, w3_ref, b3_ref,
                      att_ref):
    """One CoordAtt head for one batch sample (channel-last, C on lanes).

    x_ref   : (H, W, C)   input sample
    wh_ref  : (W, C)      depthwise (1,7) conv taps      sbh_ref : (2, C) BN s/b
    ww_ref  : (H, C)      depthwise (7,1) conv taps      sbw_ref : (2, C) BN s/b
    w1_ref  : (C, mip)    1x1 squeeze conv               p1_ref  : (3, mip) [b1, s1, t1]
    w2_ref  : (mip, C)    1x1 expand conv (h branch)     b2_ref  : (1, C)
    w3_ref  : (mip, C)    1x1 expand conv (w branch)     b3_ref  : (1, C)
    att_ref : (H, W, C)   output attention map
    """
    x = x_ref[...]
    wh = wh_ref[...]
    ww = ww_ref[...]

    # Linear_h: depthwise (1,7) conv over W + folded BN  -> (H, C)
    x_h = jnp.sum(x * wh[None, :, :], axis=1)
    x_h = x_h * sbh_ref[0:1] + sbh_ref[1:2]

    # Linear_w: depthwise (7,1) conv over H + folded BN  -> (W, C)
    x_w = jnp.sum(x * ww[:, None, :], axis=0)
    x_w = x_w * sbw_ref[0:1] + sbw_ref[1:2]

    # conv1 (1x1, C -> mip) + bn1 + h_swish.  These are all per-position ops,
    # so processing the h- and w- branches separately is identical to the
    # torch concat -> conv1 -> bn1(eval) -> h_swish -> split sequence.
    def squeeze(v):
        v = jnp.dot(v, w1_ref[...], preferred_element_type=jnp.float32)
        v = v + p1_ref[0:1]                      # conv1 bias
        v = v * p1_ref[1:2] + p1_ref[2:3]        # folded bn1
        return v * (jnp.clip(v + 3.0, 0.0, 6.0) / 6.0)   # h_swish

    yh = squeeze(x_h)    # (H, mip)
    yw = squeeze(x_w)    # (W, mip)

    def sigmoid(v):
        return 1.0 / (1.0 + jnp.exp(-v))

    a_h = sigmoid(jnp.dot(yh, w2_ref[...], preferred_element_type=jnp.float32)
                  + b2_ref[...])                 # (H, C)
    a_w = sigmoid(jnp.dot(yw, w3_ref[...], preferred_element_type=jnp.float32)
                  + b3_ref[...])                 # (W, C)

    # att[h, w, c] = a_h[h, c] * a_w[w, c]   (== torch expand + multiply)
    att_ref[...] = a_h[:, None, :] * a_w[None, :, :]


def _classifier_kernel(x_ref, att_ref, wl_ref, sbl_ref, wfc_ref, pfc_ref,
                       logits_ref, amax_ref):
    """Head combine + depthwise 7x7 Linear_block + fc + BN1d for one sample.

    x_ref   : (H, W, C)              att_ref : (num_head, H, W, C)
    wl_ref  : (H, W, C) 7x7 depthwise taps    sbl_ref : (2, C) folded BN
    wfc_ref : (C, ncls)  fc weight^T          pfc_ref : (3, ncls) [b_fc, s, t]
    logits_ref : (1, ncls)           amax_ref : (H, W, C)
    """
    x = x_ref[...]

    att = att_ref[0]
    for i in range(1, att_ref.shape[0]):          # static unroll over heads
        att = jnp.maximum(att, att_ref[i])
    amax_ref[...] = att

    y = x * att                                   # (H, W, C)

    # Depthwise 7x7 VALID conv == per-channel weighted sum over all 49 taps.
    t = jnp.sum(y * wl_ref[...], axis=0)          # (W, C)
    z = jnp.sum(t, axis=0, keepdims=True)         # (1, C)
    z = z * sbl_ref[0:1] + sbl_ref[1:2]           # folded BN

    # flatten -> fc -> BatchNorm1d (folded)
    logits = jnp.dot(z, wfc_ref[...], preferred_element_type=jnp.float32)
    logits = (logits + pfc_ref[0:1]) * pfc_ref[1:2] + pfc_ref[2:3]
    logits_ref[...] = logits


# ---------------------------------------------------------------------------
# Parameter packing: torch layout -> lane-dense kernel layout, BN folded.
# ---------------------------------------------------------------------------
def _fold_bn(bn):
    s = bn["gamma"] / jnp.sqrt(bn["var"] + EPS)
    t = bn["beta"] - bn["mean"] * s
    return s, t


def _pack_head(p):
    sh, th = _fold_bn(p["bn_h"])
    sw, tw = _fold_bn(p["bn_w"])
    s1, t1 = _fold_bn(p["bn1"])
    return dict(
        wh=p["wh"][:, 0, 0, :].T,            # (W, C)
        sbh=jnp.stack([sh, th]),             # (2, C)
        ww=p["ww"][:, 0, :, 0].T,            # (H, C)
        sbw=jnp.stack([sw, tw]),             # (2, C)
        w1=p["w1"][:, :, 0, 0].T,            # (C, mip)
        p1=jnp.stack([p["b1"], s1, t1]),     # (3, mip)
        w2=p["w2"][:, :, 0, 0].T,            # (mip, C)
        b2=p["b2"][None, :],                 # (1, C)
        w3=p["w3"][:, :, 0, 0].T,            # (mip, C)
        b3=p["b3"][None, :],                 # (1, C)
    )


def _pack_classifier(params):
    sl, tl = _fold_bn(params["bn_l"])
    sf, tf = _fold_bn(params["bn_fc"])
    return dict(
        wl=jnp.transpose(params["wl"][:, 0, :, :], (1, 2, 0)),   # (H, W, C)
        sbl=jnp.stack([sl, tl]),                                 # (2, C)
        wfc=params["wfc"].T,                                     # (C, ncls)
        pfc=jnp.stack([params["bfc"], sf, tf]),                  # (3, ncls)
    )


# ---------------------------------------------------------------------------
# pallas_call wrappers
# ---------------------------------------------------------------------------
def _coord_att_heads(x_nhwc, hp):
    """All CoordAtt heads.  Grid = (num_head, N), both axes parallel."""
    N, H, W, C = x_nhwc.shape
    num_head = hp["wh"].shape[0]
    mip = hp["w1"].shape[-1]

    def per_head(d0, d1):
        # stacked per-head parameter of shape (num_head, d0, d1)
        return pl.BlockSpec((None, d0, d1), lambda h, n: (h, 0, 0))

    in_specs = [
        pl.BlockSpec((None, H, W, C), lambda h, n: (n, 0, 0, 0)),    # x
        per_head(W, C),      # wh
        per_head(2, C),      # sbh
        per_head(H, C),      # ww
        per_head(2, C),      # sbw
        per_head(C, mip),    # w1
        per_head(3, mip),    # p1
        per_head(mip, C),    # w2
        per_head(1, C),      # b2
        per_head(mip, C),    # w3
        per_head(1, C),      # b3
    ]
    out_spec = pl.BlockSpec((None, None, H, W, C),
                            lambda h, n: (h, n, 0, 0, 0))
    return pl.pallas_call(
        _coord_att_kernel,
        out_shape=jax.ShapeDtypeStruct((num_head, N, H, W, C), x_nhwc.dtype),
        grid=(num_head, N),
        in_specs=in_specs,
        out_specs=out_spec,
        compiler_params=pltpu.CompilerParams(
            dimension_semantics=("parallel", "parallel")),
    )(x_nhwc, hp["wh"], hp["sbh"], hp["ww"], hp["sbw"],
      hp["w1"], hp["p1"], hp["w2"], hp["b2"], hp["w3"], hp["b3"])


def _classifier(x_nhwc, att_all, cp):
    """max-over-heads + x*att + depthwise 7x7 + BN + fc + BN1d.  Grid = (N,)."""
    N, H, W, C = x_nhwc.shape
    num_head = att_all.shape[0]
    ncls = cp["wfc"].shape[-1]
    logits3, amax = pl.pallas_call(
        _classifier_kernel,
        out_shape=(
            jax.ShapeDtypeStruct((N, 1, ncls), x_nhwc.dtype),
            jax.ShapeDtypeStruct((N, H, W, C), x_nhwc.dtype),
        ),
        grid=(N,),
        in_specs=[
            pl.BlockSpec((None, H, W, C), lambda n: (n, 0, 0, 0)),      # x
            pl.BlockSpec((num_head, None, H, W, C),
                         lambda n: (0, n, 0, 0, 0)),                    # att (all heads)
            pl.BlockSpec((H, W, C), lambda n: (0, 0, 0)),               # wl
            pl.BlockSpec((2, C), lambda n: (0, 0)),                     # sbl
            pl.BlockSpec((C, ncls), lambda n: (0, 0)),                  # wfc
            pl.BlockSpec((3, ncls), lambda n: (0, 0)),                  # pfc
        ],
        out_specs=(
            pl.BlockSpec((None, 1, ncls), lambda n: (n, 0, 0)),
            pl.BlockSpec((None, H, W, C), lambda n: (n, 0, 0, 0)),
        ),
        compiler_params=pltpu.CompilerParams(
            dimension_semantics=("parallel",)),
    )(x_nhwc, att_all, cp["wl"], cp["sbl"], cp["wfc"], cp["pfc"])
    return logits3[:, 0, :], amax


@jax.jit
def classifier_head_forward(x_nchw, params):
    """Pallas ClassifierHead.forward: returns (logits, attention_map, [per-head maps])."""
    x = jnp.transpose(x_nchw, (0, 2, 3, 1)).astype(jnp.float32)  # NCHW -> NHWC
    hp = jax.tree_util.tree_map(lambda *a: jnp.stack(a, axis=0),
                                *[_pack_head(p) for p in params["heads"]])
    att_all = _coord_att_heads(x, hp)                 # (num_head, N, H, W, C)
    cp = _pack_classifier(params)
    logits, amax = _classifier(x, att_all, cp)
    att_map = jnp.transpose(amax, (0, 3, 1, 2))       # back to NCHW
    multi = [jnp.transpose(att_all[i], (0, 3, 1, 2))
             for i in range(att_all.shape[0])]
    return logits, att_map, multi


# ---------------------------------------------------------------------------
# Pure-JAX reference (NCHW, lax.conv) mirroring the torch module in eval mode.
# ---------------------------------------------------------------------------
_DN = ("NCHW", "OIHW", "NCHW")
_HI = lax.Precision.HIGHEST


def _bn_nchw(v, bn):
    inv = 1.0 / jnp.sqrt(bn["var"] + EPS)
    return ((v - bn["mean"][None, :, None, None]) * inv[None, :, None, None]
            * bn["gamma"][None, :, None, None] + bn["beta"][None, :, None, None])


def _coord_att_ref(x, p):
    N, C, H, W = x.shape
    x_h = lax.conv_general_dilated(x, p["wh"], (1, 1), "VALID",
                                   dimension_numbers=_DN,
                                   feature_group_count=C, precision=_HI)
    x_h = _bn_nchw(x_h, p["bn_h"])                    # (N,C,H,1)
    x_w = lax.conv_general_dilated(x, p["ww"], (1, 1), "VALID",
                                   dimension_numbers=_DN,
                                   feature_group_count=C, precision=_HI)
    x_w = _bn_nchw(x_w, p["bn_w"])                    # (N,C,1,W)
    x_w = jnp.transpose(x_w, (0, 1, 3, 2))            # (N,C,W,1)
    y = jnp.concatenate([x_h, x_w], axis=2)           # (N,C,H+W,1)
    y = lax.conv_general_dilated(y, p["w1"], (1, 1), "VALID",
                                 dimension_numbers=_DN, precision=_HI)
    y = y + p["b1"][None, :, None, None]
    y = _bn_nchw(y, p["bn1"])
    y = y * (jnp.clip(y + 3.0, 0.0, 6.0) / 6.0)       # h_swish
    yh, yw = y[:, :, :H, :], y[:, :, H:, :]
    yw = jnp.transpose(yw, (0, 1, 3, 2))              # (N,mip,1,W)
    a_h = jax.nn.sigmoid(
        lax.conv_general_dilated(yh, p["w2"], (1, 1), "VALID",
                                 dimension_numbers=_DN, precision=_HI)
        + p["b2"][None, :, None, None])               # (N,C,H,1)
    a_w = jax.nn.sigmoid(
        lax.conv_general_dilated(yw, p["w3"], (1, 1), "VALID",
                                 dimension_numbers=_DN, precision=_HI)
        + p["b3"][None, :, None, None])               # (N,C,1,W)
    return a_h * a_w                                  # (N,C,H,W)


def classifier_head_ref(x, params):
    atts = [_coord_att_ref(x, p) for p in params["heads"]]
    att = atts[0]
    for a in atts[1:]:
        att = jnp.maximum(att, a)
    y = x * att
    z = lax.conv_general_dilated(y, params["wl"], (1, 1), "VALID",
                                 dimension_numbers=_DN,
                                 feature_group_count=x.shape[1], precision=_HI)
    z = _bn_nchw(z, params["bn_l"])
    z = z.reshape(z.shape[0], -1)                     # flatten -> (N, C)
    logits = jnp.dot(z, params["wfc"].T, precision=_HI) + params["bfc"]
    inv = 1.0 / jnp.sqrt(params["bn_fc"]["var"] + EPS)
    logits = ((logits - params["bn_fc"]["mean"]) * inv
              * params["bn_fc"]["gamma"] + params["bn_fc"]["beta"])
    return logits, att, atts


# ---------------------------------------------------------------------------
# Deterministic parameter init (torch-layout weights)
# ---------------------------------------------------------------------------
def init_params(key, *, C=512, mip=16, K=7, num_class=7, num_head=2):
    keys = iter(jax.random.split(key, 64))

    def nrm(shape, scale):
        return jax.random.normal(next(keys), shape, jnp.float32) * scale

    def uni(shape, lo, hi):
        return jax.random.uniform(next(keys), shape, jnp.float32, lo, hi)

    def bn(n):
        return dict(gamma=uni((n,), 0.5, 1.5), beta=nrm((n,), 0.1),
                    mean=nrm((n,), 0.1), var=uni((n,), 0.5, 1.5))

    def head():
        return dict(
            wh=nrm((C, 1, 1, K), 0.2), bn_h=bn(C),
            ww=nrm((C, 1, K, 1), 0.2), bn_w=bn(C),
            w1=nrm((mip, C, 1, 1), 0.05), b1=nrm((mip,), 0.1), bn1=bn(mip),
            w2=nrm((C, mip, 1, 1), 0.2), b2=nrm((C,), 0.1),
            w3=nrm((C, mip, 1, 1), 0.2), b3=nrm((C,), 0.1),
        )

    return dict(
        heads=[head() for _ in range(num_head)],
        wl=nrm((C, 1, K, K), 0.1), bn_l=bn(C),
        wfc=nrm((num_class, C), 0.05), bfc=nrm((num_class,), 0.1),
        bn_fc=bn(num_class),
    )


if __name__ == "__main__":
    key = jax.random.PRNGKey(0)
    kx, kp = jax.random.split(key)

    # Shapes implied by the module: the 7x7 VALID depthwise convs and
    # fc(512 -> num_class) require x = (N, 512, 7, 7).
    N, C, H, W = 2, 512, 7, 7
    x = jax.random.normal(kx, (N, C, H, W), jnp.float32)
    params = init_params(kp, C=C, num_class=7, num_head=2)

    logits, att_map, multi = classifier_head_forward(x, params)
    logits, att_map, multi = jax.block_until_ready((logits, att_map, multi))

    logits_ref, att_ref, multi_ref = classifier_head_ref(x, params)

    assert logits.shape == (N, 7), logits.shape
    assert att_map.shape == (N, C, H, W), att_map.shape
    assert len(multi) == 2

    # Tolerance covers MXU f32 pass-decomposition differences vs XLA HIGHEST.
    tol = dict(atol=5e-3, rtol=5e-3)
    assert jnp.allclose(att_map, att_ref, **tol), \
        float(jnp.max(jnp.abs(att_map - att_ref)))
    for a, b in zip(multi, multi_ref):
        assert jnp.allclose(a, b, **tol), float(jnp.max(jnp.abs(a - b)))
    assert jnp.allclose(logits, logits_ref, **tol), \
        float(jnp.max(jnp.abs(logits - logits_ref)))

    print("KERNEL_OK")
</pallas_src>

<mosaic_0001>
module attributes {stable_mosaic.version = 11 : i64} {
  func.func @_coord_att_kernel(%arg0: i32, %arg1: i32, %arg2: memref<1x7x7x512xf32, #tpu.memory_space<vmem>>, %arg3: memref<1x7x512xf32, #tpu.memory_space<vmem>>, %arg4: memref<1x2x512xf32, #tpu.memory_space<vmem>>, %arg5: memref<1x7x512xf32, #tpu.memory_space<vmem>>, %arg6: memref<1x2x512xf32, #tpu.memory_space<vmem>>, %arg7: memref<1x512x16xf32, #tpu.memory_space<vmem>>, %arg8: memref<1x3x16xf32, #tpu.memory_space<vmem>>, %arg9: memref<1x16x512xf32, #tpu.memory_space<vmem>>, %arg10: memref<1x1x512xf32, #tpu.memory_space<vmem>>, %arg11: memref<1x16x512xf32, #tpu.memory_space<vmem>>, %arg12: memref<1x1x512xf32, #tpu.memory_space<vmem>>, %arg13: memref<1x1x7x7x512xf32, #tpu.memory_space<vmem>>) attributes {dimension_semantics = [#tpu.dimension_semantics<parallel>, #tpu.dimension_semantics<parallel>], iteration_bounds = array<i64: 2, 2>, scalar_prefetch = 0 : i64, scratch_operands = 0 : i64, tpu.core_type = #tpu.core_type<tc>, window_params = [{transform_indices = @transform_0, window_bounds = array<i64: 1, 7, 7, 512>}, {transform_indices = @transform_1, window_bounds = array<i64: 1, 7, 512>}, {transform_indices = @transform_2, window_bounds = array<i64: 1, 2, 512>}, {transform_indices = @transform_3, window_bounds = array<i64: 1, 7, 512>}, {transform_indices = @transform_4, window_bounds = array<i64: 1, 2, 512>}, {transform_indices = @transform_5, window_bounds = array<i64: 1, 512, 16>}, {transform_indices = @transform_6, window_bounds = array<i64: 1, 3, 16>}, {transform_indices = @transform_7, window_bounds = array<i64: 1, 16, 512>}, {transform_indices = @transform_8, window_bounds = array<i64: 1, 1, 512>}, {transform_indices = @transform_9, window_bounds = array<i64: 1, 16, 512>}, {transform_indices = @transform_10, window_bounds = array<i64: 1, 1, 512>}, {transform_indices = @transform_11, window_bounds = array<i64: 1, 1, 7, 7, 512>}]} {
    %c0 = arith.constant 0 : index
    %c0_0 = arith.constant 0 : index
    %c0_1 = arith.constant 0 : index
    %c0_2 = arith.constant 0 : index
    %0 = vector.load %arg2[%c0, %c0_0, %c0_1, %c0_2] : memref<1x7x7x512xf32, #tpu.memory_space<vmem>>, vector<1x7x7x512xf32>
    %1 = vector.shape_cast %0 : vector<1x7x7x512xf32> to vector<7x7x512xf32>
    %c0_3 = arith.constant 0 : index
    %c0_4 = arith.constant 0 : index
    %c0_5 = arith.constant 0 : index
    %2 = vector.load %arg3[%c0_3, %c0_4, %c0_5] : memref<1x7x512xf32, #tpu.memory_space<vmem>>, vector<1x7x512xf32>
    %3 = vector.shape_cast %2 : vector<1x7x512xf32> to vector<7x512xf32>
    %c0_6 = arith.constant 0 : index
    %c0_7 = arith.constant 0 : index
    %c0_8 = arith.constant 0 : index
    %4 = vector.load %arg5[%c0_6, %c0_7, %c0_8] : memref<1x7x512xf32, #tpu.memory_space<vmem>>, vector<1x7x512xf32>
    %5 = vector.shape_cast %4 : vector<1x7x512xf32> to vector<7x512xf32>
    %6 = vector.shape_cast %3 : vector<7x512xf32> to vector<1x7x512xf32>
    %7 = vector.broadcast %6 : vector<1x7x512xf32> to vector<7x7x512xf32>
    %8 = arith.mulf %1, %7 : vector<7x7x512xf32>
    %cst = arith.constant dense<0.000000e+00> : vector<7x512xf32>
    %9 = vector.multi_reduction <add>, %8, %cst [1] : vector<7x7x512xf32> to vector<7x512xf32>
    %c0_9 = arith.constant 0 : index
    %c0_10 = arith.constant 0 : index
    %c0_11 = arith.constant 0 : index
    %10 = vector.load %arg4[%c0_9, %c0_10, %c0_11] : memref<1x2x512xf32, #tpu.memory_space<vmem>>, vector<1x1x512xf32>
    %11 = vector.shape_cast %10 : vector<1x1x512xf32> to vector<1x512xf32>
    %12 = vector.broadcast %11 : vector<1x512xf32> to vector<7x512xf32>
    %13 = arith.mulf %9, %12 : vector<7x512xf32>
    %c0_12 = arith.constant 0 : index
    %c1 = arith.constant 1 : index
    %c0_13 = arith.constant 0 : index
    %14 = vector.load %arg4[%c0_12, %c1, %c0_13] : memref<1x2x512xf32, #tpu.memory_space<vmem>>, vector<1x1x512xf32>
    %15 = vector.shape_cast %14 : vector<1x1x512xf32> to vector<1x512xf32>
    %16 = vector.broadcast %15 : vector<1x512xf32> to vector<7x512xf32>
    %17 = arith.addf %13, %16 : vector<7x512xf32>
    %18 = vector.shape_cast %5 : vector<7x512xf32> to vector<7x1x512xf32>
    %19 = vector.broadcast %18 : vector<7x1x512xf32> to vector<7x7x512xf32>
    %20 = arith.mulf %1, %19 : vector<7x7x512xf32>
    %cst_14 = arith.constant dense<0.000000e+00> : vector<7x512xf32>
    %21 = vector.multi_reduction <add>, %20, %cst_14 [0] : vector<7x7x512xf32> to vector<7x512xf32>
    %c0_15 = arith.constant 0 : index
    %c0_16 = arith.constant 0 : index
    %c0_17 = arith.constant 0 : index
    %22 = vector.load %arg6[%c0_15, %c0_16, %c0_17] : memref<1x2x512xf32, #tpu.memory_space<vmem>>, vector<1x1x512xf32>
    %23 = vector.shape_cast %22 : vector<1x1x512xf32> to vector<1x512xf32>
    %24 = vector.broadcast %23 : vector<1x512xf32> to vector<7x512xf32>
    %25 = arith.mulf %21, %24 : vector<7x512xf32>
    %c0_18 = arith.constant 0 : index
    %c1_19 = arith.constant 1 : index
    %c0_20 = arith.constant 0 : index
    %26 = vector.load %arg6[%c0_18, %c1_19, %c0_20] : memref<1x2x512xf32, #tpu.memory_space<vmem>>, vector<1x1x512xf32>
    %27 = vector.shape_cast %26 : vector<1x1x512xf32> to vector<1x512xf32>
    %28 = vector.broadcast %27 : vector<1x512xf32> to vector<7x512xf32>
    %29 = arith.addf %25, %28 : vector<7x512xf32>
    %c0_21 = arith.constant 0 : index
    %c0_22 = arith.constant 0 : index
    %c0_23 = arith.constant 0 : index
    %30 = vector.load %arg7[%c0_21, %c0_22, %c0_23] : memref<1x512x16xf32, #tpu.memory_space<vmem>>, vector<1x512x16xf32>
    %31 = vector.shape_cast %30 : vector<1x512x16xf32> to vector<512x16xf32>
    %cst_24 = arith.constant dense<0.000000e+00> : vector<7x16xf32>
    %32 = tpu.matmul %17, %31, %cst_24 {dimension_numbers = #tpu.dot_dimension_numbers<[1], [0], [0], [1], [0, 0, 1, 1], [], []>} : vector<7x512xf32>, vector<512x16xf32>, vector<7x16xf32> -> vector<7x16xf32>
    %c0_25 = arith.constant 0 : index
    %c0_26 = arith.constant 0 : index
    %c0_27 = arith.constant 0 : index
    %33 = vector.load %arg8[%c0_25, %c0_26, %c0_27] : memref<1x3x16xf32, #tpu.memory_space<vmem>>, vector<1x1x16xf32>
    %34 = vector.shape_cast %33 : vector<1x1x16xf32> to vector<1x16xf32>
    %35 = vector.broadcast %34 : vector<1x16xf32> to vector<7x16xf32>
    %36 = arith.addf %32, %35 : vector<7x16xf32>
    %c0_28 = arith.constant 0 : index
    %c1_29 = arith.constant 1 : index
    %c0_30 = arith.constant 0 : index
    %37 = vector.load %arg8[%c0_28, %c1_29, %c0_30] : memref<1x3x16xf32, #tpu.memory_space<vmem>>, vector<1x1x16xf32>
    %38 = vector.shape_cast %37 : vector<1x1x16xf32> to vector<1x16xf32>
    %39 = vector.broadcast %38 : vector<1x16xf32> to vector<7x16xf32>
    %40 = arith.mulf %36, %39 : vector<7x16xf32>
    %c0_31 = arith.constant 0 : index
    %c2 = arith.constant 2 : index
    %c0_32 = arith.constant 0 : index
    %41 = vector.load %arg8[%c0_31, %c2, %c0_32] : memref<1x3x16xf32, #tpu.memory_space<vmem>>, vector<1x1x16xf32>
    %42 = vector.shape_cast %41 : vector<1x1x16xf32> to vector<1x16xf32>
    %43 = vector.broadcast %42 : vector<1x16xf32> to vector<7x16xf32>
    %44 = arith.addf %40, %43 : vector<7x16xf32>
    %cst_33 = arith.constant 3.000000e+00 : f32
    %45 = vector.broadcast %cst_33 : f32 to vector<7x16xf32>
    %46 = arith.addf %44, %45 : vector<7x16xf32>
    %cst_34 = arith.constant 0.000000e+00 : f32
    %cst_35 = arith.constant 6.000000e+00 : f32
    %47 = vector.broadcast %cst_34 : f32 to vector<7x16xf32>
    %48 = arith.maximumf %47, %46 : vector<7x16xf32>
    %49 = vector.broadcast %cst_35 : f32 to vector<7x16xf32>
    %50 = arith.minimumf %49, %48 : vector<7x16xf32>
    %cst_36 = arith.constant 6.000000e+00 : f32
    %51 = vector.broadcast %cst_36 : f32 to vector<7x16xf32>
    %52 = arith.divf %50, %51 : vector<7x16xf32>
    %53 = arith.mulf %44, %52 : vector<7x16xf32>
    %c0_37 = arith.constant 0 : index
    %c0_38 = arith.constant 0 : index
    %c0_39 = arith.constant 0 : index
    %54 = vector.load %arg7[%c0_37, %c0_38, %c0_39] : memref<1x512x16xf32, #tpu.memory_space<vmem>>, vector<1x512x16xf32>
    %55 = vector.shape_cast %54 : vector<1x512x16xf32> to vector<512x16xf32>
    %cst_40 = arith.constant dense<0.000000e+00> : vector<7x16xf32>
    %56 = tpu.matmul %29, %55, %cst_40 {dimension_numbers = #tpu.dot_dimension_numbers<[1], [0], [0], [1], [0, 0, 1, 1], [], []>} : vector<7x512xf32>, vector<512x16xf32>, vector<7x16xf32> -> vector<7x16xf32>
    %c0_41 = arith.constant 0 : index
    %c0_42 = arith.constant 0 : index
    %c0_43 = arith.constant 0 : index
    %57 = vector.load %arg8[%c0_41, %c0_42, %c0_43] : memref<1x3x16xf32, #tpu.memory_space<vmem>>, vector<1x1x16xf32>
    %58 = vector.shape_cast %57 : vector<1x1x16xf32> to vector<1x16xf32>
    %59 = vector.broadcast %58 : vector<1x16xf32> to vector<7x16xf32>
    %60 = arith.addf %56, %59 : vector<7x16xf32>
    %c0_44 = arith.constant 0 : index
    %c1_45 = arith.constant 1 : index
    %c0_46 = arith.constant 0 : index
    %61 = vector.load %arg8[%c0_44, %c1_45, %c0_46] : memref<1x3x16xf32, #tpu.memory_space<vmem>>, vector<1x1x16xf32>
    %62 = vector.shape_cast %61 : vector<1x1x16xf32> to vector<1x16xf32>
    %63 = vector.broadcast %62 : vector<1x16xf32> to vector<7x16xf32>
    %64 = arith.mulf %60, %63 : vector<7x16xf32>
    %c0_47 = arith.constant 0 : index
    %c2_48 = arith.constant 2 : index
    %c0_49 = arith.constant 0 : index
    %65 = vector.load %arg8[%c0_47, %c2_48, %c0_49] : memref<1x3x16xf32, #tpu.memory_space<vmem>>, vector<1x1x16xf32>
    %66 = vector.shape_cast %65 : vector<1x1x16xf32> to vector<1x16xf32>
    %67 = vector.broadcast %66 : vector<1x16xf32> to vector<7x16xf32>
    %68 = arith.addf %64, %67 : vector<7x16xf32>
    %cst_50 = arith.constant 3.000000e+00 : f32
    %69 = vector.broadcast %cst_50 : f32 to vector<7x16xf32>
    %70 = arith.addf %68, %69 : vector<7x16xf32>
    %cst_51 = arith.constant 0.000000e+00 : f32
    %cst_52 = arith.constant 6.000000e+00 : f32
    %71 = vector.broadcast %cst_51 : f32 to vector<7x16xf32>
    %72 = arith.maximumf %71, %70 : vector<7x16xf32>
    %73 = vector.broadcast %cst_52 : f32 to vector<7x16xf32>
    %74 = arith.minimumf %73, %72 : vector<7x16xf32>
    %cst_53 = arith.constant 6.000000e+00 : f32
    %75 = vector.broadcast %cst_53 : f32 to vector<7x16xf32>
    %76 = arith.divf %74, %75 : vector<7x16xf32>
    %77 = arith.mulf %68, %76 : vector<7x16xf32>
    %c0_54 = arith.constant 0 : index
    %c0_55 = arith.constant 0 : index
    %c0_56 = arith.constant 0 : index
    %78 = vector.load %arg9[%c0_54, %c0_55, %c0_56] : memref<1x16x512xf32, #tpu.memory_space<vmem>>, vector<1x16x512xf32>
    %79 = vector.shape_cast %78 : vector<1x16x512xf32> to vector<16x512xf32>
    %cst_57 = arith.constant dense<0.000000e+00> : vector<7x512xf32>
    %80 = tpu.matmul %53, %79, %cst_57 {dimension_numbers = #tpu.dot_dimension_numbers<[1], [0], [0], [1], [0, 0, 1, 1], [], []>} : vector<7x16xf32>, vector<16x512xf32>, vector<7x512xf32> -> vector<7x512xf32>
    %c0_58 = arith.constant 0 : index
    %c0_59 = arith.constant 0 : index
    %c0_60 = arith.constant 0 : index
    %81 = vector.load %arg10[%c0_58, %c0_59, %c0_60] : memref<1x1x512xf32, #tpu.memory_space<vmem>>, vector<1x1x512xf32>
    %82 = vector.shape_cast %81 : vector<1x1x512xf32> to vector<1x512xf32>
    %83 = vector.broadcast %82 : vector<1x512xf32> to vector<7x512xf32>
    %84 = arith.addf %80, %83 : vector<7x512xf32>
    %cst_61 = arith.constant 0.000000e+00 : f32
    %85 = vector.broadcast %cst_61 : f32 to vector<7x512xf32>
    %86 = arith.subf %85, %84 : vector<7x512xf32>
    %87 = math.exp %86 : vector<7x512xf32>
    %cst_62 = arith.constant 1.000000e+00 : f32
    %88 = vector.broadcast %cst_62 : f32 to vector<7x512xf32>
    %89 = arith.addf %88, %87 : vector<7x512xf32>
    %cst_63 = arith.constant 1.000000e+00 : f32
    %90 = vector.broadcast %cst_63 : f32 to vector<7x512xf32>
    %91 = arith.divf %90, %89 : vector<7x512xf32>
    %c0_64 = arith.constant 0 : index
    %c0_65 = arith.constant 0 : index
    %c0_66 = arith.constant 0 : index
    %92 = vector.load %arg11[%c0_64, %c0_65, %c0_66] : memref<1x16x512xf32, #tpu.memory_space<vmem>>, vector<1x16x512xf32>
    %93 = vector.shape_cast %92 : vector<1x16x512xf32> to vector<16x512xf32>
    %cst_67 = arith.constant dense<0.000000e+00> : vector<7x512xf32>
    %94 = tpu.matmul %77, %93, %cst_67 {dimension_numbers = #tpu.dot_dimension_numbers<[1], [0], [0], [1], [0, 0, 1, 1], [], []>} : vector<7x16xf32>, vector<16x512xf32>, vector<7x512xf32> -> vector<7x512xf32>
    %c0_68 = arith.constant 0 : index
    %c0_69 = arith.constant 0 : index
    %c0_70 = arith.constant 0 : index
    %95 = vector.load %arg12[%c0_68, %c0_69, %c0_70] : memref<1x1x512xf32, #tpu.memory_space<vmem>>, vector<1x1x512xf32>
    %96 = vector.shape_cast %95 : vector<1x1x512xf32> to vector<1x512xf32>
    %97 = vector.broadcast %96 : vector<1x512xf32> to vector<7x512xf32>
    %98 = arith.addf %94, %97 : vector<7x512xf32>
    %cst_71 = arith.constant 0.000000e+00 : f32
    %99 = vector.broadcast %cst_71 : f32 to vector<7x512xf32>
    %100 = arith.subf %99, %98 : vector<7x512xf32>
    %101 = math.exp %100 : vector<7x512xf32>
    %cst_72 = arith.constant 1.000000e+00 : f32
    %102 = vector.broadcast %cst_72 : f32 to vector<7x512xf32>
    %103 = arith.addf %102, %101 : vector<7x512xf32>
    %cst_73 = arith.constant 1.000000e+00 : f32
    %104 = vector.broadcast %cst_73 : f32 to vector<7x512xf32>
    %105 = arith.divf %104, %103 : vector<7x512xf32>
    %106 = vector.shape_cast %91 : vector<7x512xf32> to vector<7x1x512xf32>
    %107 = vector.shape_cast %105 : vector<7x512xf32> to vector<1x7x512xf32>
    %108 = vector.broadcast %106 : vector<7x1x512xf32> to vector<7x7x512xf32>
    %109 = vector.broadcast %107 : vector<1x7x512xf32> to vector<7x7x512xf32>
    %110 = arith.mulf %108, %109 : vector<7x7x512xf32>
    %c0_74 = arith.constant 0 : index
    %c0_75 = arith.constant 0 : index
    %c0_76 = arith.constant 0 : index
    %c0_77 = arith.constant 0 : index
    %c0_78 = arith.constant 0 : index
    %111 = vector.load %arg13[%c0_74, %c0_75, %c0_76, %c0_77, %c0_78] : memref<1x1x7x7x512xf32, #tpu.memory_space<vmem>>, vector<1x1x7x7x512xf32>
    %112 = vector.shape_cast %111 : vector<1x1x7x7x512xf32> to vector<7x7x512xf32>
    %113 = vector.shape_cast %110 : vector<7x7x512xf32> to vector<1x1x7x7x512xf32>
    tpu.vector_store %arg13[%c0_74, %c0_75, %c0_76, %c0_77, %c0_78], %113 {strides = array<i32>} : memref<1x1x7x7x512xf32, #tpu.memory_space<vmem>>, vector<1x1x7x7x512xf32>,
    return
  }
  func.func @transform_0(%arg0: i32, %arg1: i32) -> (i32, i32, i32, i32) {
    %c0_i32 = arith.constant 0 : i32
    %c0_i32_0 = arith.constant 0 : i32
    %c0_i32_1 = arith.constant 0 : i32
    %c0_i32_2 = arith.constant 0 : i32
    return %arg1, %c0_i32, %c0_i32_0, %c0_i32_1 : i32, i32, i32, i32
  }
  func.func @transform_1(%arg0: i32, %arg1: i32) -> (i32, i32, i32) {
    %c0_i32 = arith.constant 0 : i32
    %c0_i32_0 = arith.constant 0 : i32
    %c0_i32_1 = arith.constant 0 : i32
    return %arg0, %c0_i32, %c0_i32_0 : i32, i32, i32
  }
  func.func @transform_2(%arg0: i32, %arg1: i32) -> (i32, i32, i32) {
    %c0_i32 = arith.constant 0 : i32
    %c0_i32_0 = arith.constant 0 : i32
    %c0_i32_1 = arith.constant 0 : i32
    return %arg0, %c0_i32, %c0_i32_0 : i32, i32, i32
  }
  func.func @transform_3(%arg0: i32, %arg1: i32) -> (i32, i32, i32) {
    %c0_i32 = arith.constant 0 : i32
    %c0_i32_0 = arith.constant 0 : i32
    %c0_i32_1 = arith.constant 0 : i32
    return %arg0, %c0_i32, %c0_i32_0 : i32, i32, i32
  }
  func.func @transform_4(%arg0: i32, %arg1: i32) -> (i32, i32, i32) {
    %c0_i32 = arith.constant 0 : i32
    %c0_i32_0 = arith.constant 0 : i32
    %c0_i32_1 = arith.constant 0 : i32
    return %arg0, %c0_i32, %c0_i32_0 : i32, i32, i32
  }
  func.func @transform_5(%arg0: i32, %arg1: i32) -> (i32, i32, i32) {
    %c0_i32 = arith.constant 0 : i32
    %c0_i32_0 = arith.constant 0 : i32
    %c0_i32_1 = arith.constant 0 : i32
    return %arg0, %c0_i32, %c0_i32_0 : i32, i32, i32
  }
  func.func @transform_6(%arg0: i32, %arg1: i32) -> (i32, i32, i32) {
    %c0_i32 = arith.constant 0 : i32
    %c0_i32_0 = arith.constant 0 : i32
    %c0_i32_1 = arith.constant 0 : i32
    return %arg0, %c0_i32, %c0_i32_0 : i32, i32, i32
  }
  func.func @transform_7(%arg0: i32, %arg1: i32) -> (i32, i32, i32) {
    %c0_i32 = arith.constant 0 : i32
    %c0_i32_0 = arith.constant 0 : i32
    %c0_i32_1 = arith.constant 0 : i32
    return %arg0, %c0_i32, %c0_i32_0 : i32, i32, i32
  }
  func.func @transform_8(%arg0: i32, %arg1: i32) -> (i32, i32, i32) {
    %c0_i32 = arith.constant 0 : i32
    %c0_i32_0 = arith.constant 0 : i32
    %c0_i32_1 = arith.constant 0 : i32
    return %arg0, %c0_i32, %c0_i32_0 : i32, i32, i32
  }
  func.func @transform_9(%arg0: i32, %arg1: i32) -> (i32, i32, i32) {
    %c0_i32 = arith.constant 0 : i32
    %c0_i32_0 = arith.constant 0 : i32
    %c0_i32_1 = arith.constant 0 : i32
    return %arg0, %c0_i32, %c0_i32_0 : i32, i32, i32
  }
  func.func @transform_10(%arg0: i32, %arg1: i32) -> (i32, i32, i32) {
    %c0_i32 = arith.constant 0 : i32
    %c0_i32_0 = arith.constant 0 : i32
    %c0_i32_1 = arith.constant 0 : i32
    return %arg0, %c0_i32, %c0_i32_0 : i32, i32, i32
  }
  func.func @transform_11(%arg0: i32, %arg1: i32) -> (i32, i32, i32, i32, i32) {
    %c0_i32 = arith.constant 0 : i32
    %c0_i32_0 = arith.constant 0 : i32
    %c0_i32_1 = arith.constant 0 : i32
    %c0_i32_2 = arith.constant 0 : i32
    return %arg0, %arg1, %c0_i32, %c0_i32_0, %c0_i32_1 : i32, i32, i32, i32, i32
  }
}

module attributes {stable_mosaic.version = 11 : i64} {
  func.func @_classifier_kernel(%arg0: i32, %arg1: memref<1x7x7x512xf32, #tpu.memory_space<vmem>>, %arg2: memref<2x1x7x7x512xf32, #tpu.memory_space<vmem>>, %arg3: memref<7x7x512xf32, #tpu.memory_space<vmem>>, %arg4: memref<2x512xf32, #tpu.memory_space<vmem>>, %arg5: memref<512x7xf32, #tpu.memory_space<vmem>>, %arg6: memref<3x7xf32, #tpu.memory_space<vmem>>, %arg7: memref<1x1x7xf32, #tpu.memory_space<vmem>>, %arg8: memref<1x7x7x512xf32, #tpu.memory_space<vmem>>) attributes {dimension_semantics = [#tpu.dimension_semantics<parallel>], iteration_bounds = array<i64: 2>, scalar_prefetch = 0 : i64, scratch_operands = 0 : i64, tpu.core_type = #tpu.core_type<tc>, window_params = [{transform_indices = @transform_0, window_bounds = array<i64: 1, 7, 7, 512>}, {transform_indices = @transform_1, window_bounds = array<i64: 2, 1, 7, 7, 512>}, {pipeline_mode = #tpu.pipeline_mode<synchronous>, transform_indices = @transform_2, window_bounds = array<i64: 7, 7, 512>}, {pipeline_mode = #tpu.pipeline_mode<synchronous>, transform_indices = @transform_3, window_bounds = array<i64: 2, 512>}, {pipeline_mode = #tpu.pipeline_mode<synchronous>, transform_indices = @transform_4, window_bounds = array<i64: 512, 7>}, {pipeline_mode = #tpu.pipeline_mode<synchronous>, transform_indices = @transform_5, window_bounds = array<i64: 3, 7>}, {transform_indices = @transform_6, window_bounds = array<i64: 1, 1, 7>}, {transform_indices = @transform_7, window_bounds = array<i64: 1, 7, 7, 512>}]} {
    %c0 = arith.constant 0 : index
    %c0_0 = arith.constant 0 : index
    %c0_1 = arith.constant 0 : index
    %c0_2 = arith.constant 0 : index
    %0 = vector.load %arg1[%c0, %c0_0, %c0_1, %c0_2] : memref<1x7x7x512xf32, #tpu.memory_space<vmem>>, vector<1x7x7x512xf32>
    %1 = vector.shape_cast %0 : vector<1x7x7x512xf32> to vector<7x7x512xf32>
    %c0_3 = arith.constant 0 : index
    %c0_4 = arith.constant 0 : index
    %c0_5 = arith.constant 0 : index
    %c0_6 = arith.constant 0 : index
    %c0_7 = arith.constant 0 : index
    %2 = vector.load %arg2[%c0_3, %c0_4, %c0_5, %c0_6, %c0_7] : memref<2x1x7x7x512xf32, #tpu.memory_space<vmem>>, vector<1x1x7x7x512xf32>
    %3 = vector.shape_cast %2 : vector<1x1x7x7x512xf32> to vector<7x7x512xf32>
    %c1 = arith.constant 1 : index
    %c0_8 = arith.constant 0 : index
    %c0_9 = arith.constant 0 : index
    %c0_10 = arith.constant 0 : index
    %c0_11 = arith.constant 0 : index
    %4 = vector.load %arg2[%c1, %c0_8, %c0_9, %c0_10, %c0_11] : memref<2x1x7x7x512xf32, #tpu.memory_space<vmem>>, vector<1x1x7x7x512xf32>
    %5 = vector.shape_cast %4 : vector<1x1x7x7x512xf32> to vector<7x7x512xf32>
    %6 = arith.maximumf %3, %5 : vector<7x7x512xf32>
    %c0_12 = arith.constant 0 : index
    %c0_13 = arith.constant 0 : index
    %c0_14 = arith.constant 0 : index
    %c0_15 = arith.constant 0 : index
    %7 = vector.load %arg8[%c0_12, %c0_13, %c0_14, %c0_15] : memref<1x7x7x512xf32, #tpu.memory_space<vmem>>, vector<1x7x7x512xf32>
    %8 = vector.shape_cast %7 : vector<1x7x7x512xf32> to vector<7x7x512xf32>
    %9 = vector.shape_cast %6 : vector<7x7x512xf32> to vector<1x7x7x512xf32>
    tpu.vector_store %arg8[%c0_12, %c0_13, %c0_14, %c0_15], %9 {strides = array<i32>} : memref<1x7x7x512xf32, #tpu.memory_space<vmem>>, vector<1x7x7x512xf32>,
    %10 = arith.mulf %1, %6 : vector<7x7x512xf32>
    %c0_16 = arith.constant 0 : index
    %c0_17 = arith.constant 0 : index
    %c0_18 = arith.constant 0 : index
    %11 = vector.load %arg3[%c0_16, %c0_17, %c0_18] : memref<7x7x512xf32, #tpu.memory_space<vmem>>, vector<7x7x512xf32>
    %12 = arith.mulf %10, %11 : vector<7x7x512xf32>
    %cst = arith.constant dense<0.000000e+00> : vector<7x512xf32>
    %13 = vector.multi_reduction <add>, %12, %cst [0] : vector<7x7x512xf32> to vector<7x512xf32>
    %cst_19 = arith.constant dense<0.000000e+00> : vector<512xf32>
    %14 = vector.multi_reduction <add>, %13, %cst_19 [0] : vector<7x512xf32> to vector<512xf32>
    %15 = vector.shape_cast %14 : vector<512xf32> to vector<1x512xf32>
    %c0_20 = arith.constant 0 : index
    %c0_21 = arith.constant 0 : index
    %16 = vector.load %arg4[%c0_20, %c0_21] : memref<2x512xf32, #tpu.memory_space<vmem>>, vector<1x512xf32>
    %17 = arith.mulf %15, %16 : vector<1x512xf32>
    %c1_22 = arith.constant 1 : index
    %c0_23 = arith.constant 0 : index
    %18 = vector.load %arg4[%c1_22, %c0_23] : memref<2x512xf32, #tpu.memory_space<vmem>>, vector<1x512xf32>
    %19 = arith.addf %17, %18 : vector<1x512xf32>
    %c0_24 = arith.constant 0 : index
    %c0_25 = arith.constant 0 : index
    %20 = vector.load %arg5[%c0_24, %c0_25] : memref<512x7xf32, #tpu.memory_space<vmem>>, vector<512x7xf32>
    %cst_26 = arith.constant dense<0.000000e+00> : vector<1x7xf32>
    %21 = tpu.matmul %19, %20, %cst_26 {dimension_numbers = #tpu.dot_dimension_numbers<[1], [0], [0], [1], [0, 0, 1, 1], [], []>} : vector<1x512xf32>, vector<512x7xf32>, vector<1x7xf32> -> vector<1x7xf32>
    %c0_27 = arith.constant 0 : index
    %c0_28 = arith.constant 0 : index
    %22 = vector.load %arg6[%c0_27, %c0_28] : memref<3x7xf32, #tpu.memory_space<vmem>>, vector<1x7xf32>
    %23 = arith.addf %21, %22 : vector<1x7xf32>
    %c1_29 = arith.constant 1 : index
    %c0_30 = arith.constant 0 : index
    %24 = vector.load %arg6[%c1_29, %c0_30] : memref<3x7xf32, #tpu.memory_space<vmem>>, vector<1x7xf32>
    %25 = arith.mulf %23, %24 : vector<1x7xf32>
    %c2 = arith.constant 2 : index
    %c0_31 = arith.constant 0 : index
    %26 = vector.load %arg6[%c2, %c0_31] : memref<3x7xf32, #tpu.memory_space<vmem>>, vector<1x7xf32>
    %27 = arith.addf %25, %26 : vector<1x7xf32>
    %c0_32 = arith.constant 0 : index
    %c0_33 = arith.constant 0 : index
    %c0_34 = arith.constant 0 : index
    %28 = vector.load %arg7[%c0_32, %c0_33, %c0_34] : memref<1x1x7xf32, #tpu.memory_space<vmem>>, vector<1x1x7xf32>
    %29 = vector.shape_cast %28 : vector<1x1x7xf32> to vector<1x7xf32>
    %30 = vector.shape_cast %27 : vector<1x7xf32> to vector<1x1x7xf32>
    tpu.vector_store %arg7[%c0_32, %c0_33, %c0_34], %30 {strides = array<i32>} : memref<1x1x7xf32, #tpu.memory_space<vmem>>, vector<1x1x7xf32>,
    return
  }
  func.func @transform_0(%arg0: i32) -> (i32, i32, i32, i32) {
    %c0_i32 = arith.constant 0 : i32
    %c0_i32_0 = arith.constant 0 : i32
    %c0_i32_1 = arith.constant 0 : i32
    %c0_i32_2 = arith.constant 0 : i32
    return %arg0, %c0_i32, %c0_i32_0, %c0_i32_1 : i32, i32, i32, i32
  }
  func.func @transform_1(%arg0: i32) -> (i32, i32, i32, i32, i32) {
    %c0_i32 = arith.constant 0 : i32
    %c0_i32_0 = arith.constant 0 : i32
    %c0_i32_1 = arith.constant 0 : i32
    %c0_i32_2 = arith.constant 0 : i32
    %c0_i32_3 = arith.constant 0 : i32
    return %c0_i32, %arg0, %c0_i32_0, %c0_i32_1, %c0_i32_2 : i32, i32, i32, i32, i32
  }
  func.func @transform_2(%arg0: i32) -> (i32, i32, i32) {
    %c0_i32 = arith.constant 0 : i32
    %c0_i32_0 = arith.constant 0 : i32
    %c0_i32_1 = arith.constant 0 : i32
    %c0_i32_2 = arith.constant 0 : i32
    return %c0_i32, %c0_i32_0, %c0_i32_1 : i32, i32, i32
  }
  func.func @transform_3(%arg0: i32) -> (i32, i32) {
    %c0_i32 = arith.constant 0 : i32
    %c0_i32_0 = arith.constant 0 : i32
    %c0_i32_1 = arith.constant 0 : i32
    return %c0_i32, %c0_i32_0 : i32, i32
  }
  func.func @transform_4(%arg0: i32) -> (i32, i32) {
    %c0_i32 = arith.constant 0 : i32
    %c0_i32_0 = arith.constant 0 : i32
    %c0_i32_1 = arith.constant 0 : i32
    return %c0_i32, %c0_i32_0 : i32, i32
  }
  func.func @transform_5(%arg0: i32) -> (i32, i32) {
    %c0_i32 = arith.constant 0 : i32
    %c0_i32_0 = arith.constant 0 : i32
    %c0_i32_1 = arith.constant 0 : i32
    return %c0_i32, %c0_i32_0 : i32, i32
  }
  func.func @transform_6(%arg0: i32) -> (i32, i32, i32) {
    %c0_i32 = arith.constant 0 : i32
    %c0_i32_0 = arith.constant 0 : i32
    %c0_i32_1 = arith.constant 0 : i32
    return %arg0, %c0_i32, %c0_i32_0 : i32, i32, i32
  }
  func.func @transform_7(%arg0: i32) -> (i32, i32, i32, i32) {
    %c0_i32 = arith.constant 0 : i32
    %c0_i32_0 = arith.constant 0 : i32
    %c0_i32_1 = arith.constant 0 : i32
    %c0_i32_2 = arith.constant 0 : i32
    return %arg0, %c0_i32, %c0_i32_0, %c0_i32_1 : i32, i32, i32, i32
  }
}

</mosaic_0001>

<llo_original>
// kernel: classifier_head_forward.3
$region0: #{classifier_head_forward.3}
  #allocation0 [shape = 'u32[]', space=smem, size = 0x4, offset = 0x4, fixed_abs, tag = 'smem constant byte address 0x4 - core index']
  #allocation1 [shape = 'u32[144,128]{1,0:T(1,128)}', space=vmem, size = 0x12000, scoped, tag = 'internal scratch']
  %s0 = inlined_call_operand.vmem [shape: f32[2,7,7,512], index: 0, kind: input, shape index: {}]
  %s1 = inlined_call_operand.vmem [shape: f32[2,2,7,7,512], index: 1, kind: input, shape index: {}]
  %s2 = inlined_call_operand.vmem [shape: f32[7,7,512], index: 2, kind: input, shape index: {}]
  %s3 = inlined_call_operand.vmem [shape: f32[2,512], index: 3, kind: input, shape index: {}]
  %s4 = inlined_call_operand.vmem [shape: f32[512,7], index: 4, kind: input, shape index: {}]
  %s5 = inlined_call_operand.vmem [shape: f32[3,7], index: 5, kind: input, shape index: {}]
  %s6 = inlined_call_operand.hbm [shape: f32[2,1,7], index: 6, kind: output, shape index: {0}]
  %s7 = inlined_call_operand.vmem [shape: f32[2,7,7,512], index: 7, kind: output, shape index: {1}]
  %8 = xla_tuple %s6, %s7
  %s9 = sld [smem:[#allocation0]]
  $region88: #{classifier_head_forward.3} parent=0
    _
  %s11 = ssub.s32 1, %s9
  %s12 = scalar_select 0, %s11, %s9
  $region1: #{classifier_head_forward.3} parent=0
    #allocation2 [shape = 'u8[458752]{0}', space=vmem, size = 0x70000, scoped, tag = 'input window, operand 1']
    #allocation3 [shape = 'u8[1024]{0}', space=vmem, size = 0x400, scoped, tag = 'output window, operand 0']
    #allocation4 [shape = 's32[2]{0}', space=sflag, size = 0x8, scoped, tag = 'scoped memory for classifier_head_forward.3']
    %13 = vsyncpa [#allocation4], 0
    %s14 = scalar_lea.sflag [#allocation4], 1
    %15 = vsyncpa %s14, 0
    loop: start=0, step=1, limit=4
    $region2: #{classifier_head_forward.3} parent=1 // loop_pre_header
      _
    $region3: #{classifier_head_forward.3} parent=1 // loop_header
      %s17 = sphi 0, %s21
      %p18 = scmp.ge.s32.totalorder %s17, 4
      %s27 = sphi 0, %s29
      %s30 = sphi 0, %s27
      %s31 = sphi 0, %s30
      %s47 = sphi 0, %s31
      %s53 = sphi 0, %s55
      %s56 = sphi 0, %s53
      %s57 = sphi 0, %s56
      %s73 = sphi 0, %s57
      %s77 = sphi 0, %s77
      %s79 = sphi 0, %s77
      %s80 = sphi 0, %s79
      %s94 = sphi 0, %s80
      %s98 = sphi 0, %s98
      %s100 = sphi 0, %s98
      %s101 = sphi 0, %s100
      %s115 = sphi 0, %s101
      %s119 = sphi 0, %s119
      %s121 = sphi 0, %s119
      %s122 = sphi 0, %s121
      %s136 = sphi 0, %s122
      %s140 = sphi 0, %s140
      %s142 = sphi 0, %s140
      %s143 = sphi 0, %s142
      %s157 = sphi 0, %s143
      %s163 = sphi 0, %s165
      %s166 = sphi 0, %s163
      %s167 = sphi 0, %s166
      %s183 = sphi 0, %s167
      %s189 = sphi 0, %s191
      %s192 = sphi 0, %s189
      %s193 = sphi 0, %s192
      %s209 = sphi 0, %s193
    $region4: #{classifier_head_forward.3} parent=1 // loop_header_branch
      %20 = sbr.rel (%p18) target = $region8
    $region5: #{classifier_head_forward.3} parent=1 // loop_body
      %s22 = ssub.s32 %s17, 1
      %s23 = ssub.s32 %s17, 2
      %s24 = sadd.s32 %s17, 1
      %s25 = ssub.s32 %s17, %s24
      %p26 = scmp.eq.s32.totalorder %s25, 0
      %s28 = sadd.s32 %s27, 1
      %s29 = scalar_select %p26, %s27, %s28
      %p32 = pneg %p26
      %p33 = scmp.eq.s32.totalorder %s17, 1
      %p34 = por %p32, %p33
      %p35 = scmp.ne.s32.totalorder %s27, %s30
      %p36 = scmp.eq.s32.totalorder %s17, 0
      %p37 = por %p35, %p36
      %p38 = scmp.ne.s32.totalorder %s27, %s30
      %p39 = scmp.eq.s32.totalorder %s22, 1
      %p40 = por %p38, %p39
      %p41 = scmp.ne.s32.totalorder %s30, %s31
      %p42 = scmp.eq.s32.totalorder %s22, 0
      %p43 = por %p41, %p42
      %p44 = scmp.ne.s32.totalorder %s30, %s31
      %p45 = scmp.eq.s32.totalorder %s23, 1
      %p46 = por %p44, %p45
      %p48 = scmp.ne.s32.totalorder %s31, %s47
      %p49 = scmp.eq.s32.totalorder %s23, 0
      %p50 = por %p48, %p49
      %s51 = ssub.s32 %s17, %s24
      %p52 = scmp.eq.s32.totalorder %s51, 0
      %s54 = sadd.s32 %s53, 1
      %s55 = scalar_select %p52, %s53, %s54
      %p58 = pneg %p52
      %p59 = scmp.eq.s32.totalorder %s17, 1
      %p60 = por %p58, %p59
      %p61 = scmp.ne.s32.totalorder %s53, %s56
      %p62 = scmp.eq.s32.totalorder %s17, 0
      %p63 = por %p61, %p62
      %p64 = scmp.ne.s32.totalorder %s53, %s56
      %p65 = scmp.eq.s32.totalorder %s22, 1
      %p66 = por %p64, %p65
      %p67 = scmp.ne.s32.totalorder %s56, %s57
      %p68 = scmp.eq.s32.totalorder %s22, 0
      %p69 = por %p67, %p68
      %p70 = scmp.ne.s32.totalorder %s56, %s57
      %p71 = scmp.eq.s32.totalorder %s23, 1
      %p72 = por %p70, %p71
      %p74 = scmp.ne.s32.totalorder %s57, %s73
      %p75 = scmp.eq.s32.totalorder %s23, 0
      %p76 = por %p74, %p75
      %s78 = sadd.s32 %s77, 1
      %p81 = scmp.eq.s32.totalorder %s17, 1
      %p82 = scmp.ne.s32.totalorder %s77, %s79
      %p83 = scmp.eq.s32.totalorder %s17, 0
      %p84 = por %p82, %p83
      %p85 = scmp.ne.s32.totalorder %s77, %s79
      %p86 = scmp.eq.s32.totalorder %s22, 1
      %p87 = por %p85, %p86
      %p88 = scmp.ne.s32.totalorder %s79, %s80
      %p89 = scmp.eq.s32.totalorder %s22, 0
      %p90 = por %p88, %p89
      %p91 = scmp.ne.s32.totalorder %s79, %s80
      %p92 = scmp.eq.s32.totalorder %s23, 1
      %p93 = por %p91, %p92
      %p95 = scmp.ne.s32.totalorder %s80, %s94
      %p96 = scmp.eq.s32.totalorder %s23, 0
      %p97 = por %p95, %p96
      %s99 = sadd.s32 %s98, 1
      %p102 = scmp.eq.s32.totalorder %s17, 1
      %p103 = scmp.ne.s32.totalorder %s98, %s100
      %p104 = scmp.eq.s32.totalorder %s17, 0
      %p105 = por %p103, %p104
      %p106 = scmp.ne.s32.totalorder %s98, %s100
      %p107 = scmp.eq.s32.totalorder %s22, 1
      %p108 = por %p106, %p107
      %p109 = scmp.ne.s32.totalorder %s100, %s101
      %p110 = scmp.eq.s32.totalorder %s22, 0
      %p111 = por %p109, %p110
      %p112 = scmp.ne.s32.totalorder %s100, %s101
      %p113 = scmp.eq.s32.totalorder %s23, 1
      %p114 = por %p112, %p113
      %p116 = scmp.ne.s32.totalorder %s101, %s115
      %p117 = scmp.eq.s32.totalorder %s23, 0
      %p118 = por %p116, %p117
      %s120 = sadd.s32 %s119, 1
      %p123 = scmp.eq.s32.totalorder %s17, 1
      %p124 = scmp.ne.s32.totalorder %s119, %s121
      %p125 = scmp.eq.s32.totalorder %s17, 0
      %p126 = por %p124, %p125
      %p127 = scmp.ne.s32.totalorder %s119, %s121
      %p128 = scmp.eq.s32.totalorder %s22, 1
      %p129 = por %p127, %p128
      %p130 = scmp.ne.s32.totalorder %s121, %s122
      %p131 = scmp.eq.s32.totalorder %s22, 0
      %p132 = por %p130, %p131
      %p133 = scmp.ne.s32.totalorder %s121, %s122
      %p134 = scmp.eq.s32.totalorder %s23, 1
      %p135 = por %p133, %p134
      %p137 = scmp.ne.s32.totalorder %s122, %s136
      %p138 = scmp.eq.s32.totalorder %s23, 0
      %p139 = por %p137, %p138
      %s141 = sadd.s32 %s140, 1
      %p144 = scmp.eq.s32.totalorder %s17, 1
      %p145 = scmp.ne.s32.totalorder %s140, %s142
      %p146 = scmp.eq.s32.totalorder %s17, 0
      %p147 = por %p145, %p146
      %p148 = scmp.ne.s32.totalorder %s140, %s142
      %p149 = scmp.eq.s32.totalorder %s22, 1
      %p150 = por %p148, %p149
      %p151 = scmp.ne.s32.totalorder %s142, %s143
      %p152 = scmp.eq.s32.totalorder %s22, 0
      %p153 = por %p151, %p152
      %p154 = scmp.ne.s32.totalorder %s142, %s143
      %p155 = scmp.eq.s32.totalorder %s23, 1
      %p156 = por %p154, %p155
      %p158 = scmp.ne.s32.totalorder %s143, %s157
      %p159 = scmp.eq.s32.totalorder %s23, 0
      %p160 = por %p158, %p159
      %s161 = ssub.s32 %s17, %s24
      %p162 = scmp.eq.s32.totalorder %s161, 0
      %s164 = sadd.s32 %s163, 1
      %s165 = scalar_select %p162, %s163, %s164
      %p168 = pneg %p162
      %p169 = scmp.eq.s32.totalorder %s17, 1
      %p170 = por %p168, %p169
      %p171 = scmp.ne.s32.totalorder %s163, %s166
      %p172 = scmp.eq.s32.totalorder %s17, 0
      %p173 = por %p171, %p172
      %p174 = scmp.ne.s32.totalorder %s163, %s166
      %p175 = scmp.eq.s32.totalorder %s22, 1
      %p176 = por %p174, %p175
      %p177 = scmp.ne.s32.totalorder %s166, %s167
      %p178 = scmp.eq.s32.totalorder %s22, 0
      %p179 = por %p177, %p178
      %p180 = scmp.ne.s32.totalorder %s166, %s167
      %p181 = scmp.eq.s32.totalorder %s23, 1
      %p182 = por %p180, %p181
      %p184 = scmp.ne.s32.totalorder %s167, %s183
      %p185 = scmp.eq.s32.totalorder %s23, 0
      %p186 = por %p184, %p185
      %s187 = ssub.s32 %s17, %s24
      %p188 = scmp.eq.s32.totalorder %s187, 0
      %s190 = sadd.s32 %s189, 1
      %s191 = scalar_select %p188, %s189, %s190
      %p194 = pneg %p188
      %p195 = scmp.eq.s32.totalorder %s17, 1
      %p196 = por %p194, %p195
      %p197 = scmp.ne.s32.totalorder %s189, %s192
      %p198 = scmp.eq.s32.totalorder %s17, 0
      %p199 = por %p197, %p198
      %p200 = scmp.ne.s32.totalorder %s189, %s192
      %p201 = scmp.eq.s32.totalorder %s22, 1
      %p202 = por %p200, %p201
      %p203 = scmp.ne.s32.totalorder %s192, %s193
      %p204 = scmp.eq.s32.totalorder %s22, 0
      %p205 = por %p203, %p204
      %p206 = scmp.ne.s32.totalorder %s192, %s193
      %p207 = scmp.eq.s32.totalorder %s23, 1
      %p208 = por %p206, %p207
      %p210 = scmp.ne.s32.totalorder %s193, %s209
      %p211 = scmp.eq.s32.totalorder %s23, 0
      %p212 = por %p210, %p211
      %p213 = scmp.le.s32.totalorder 1, %s17
      %p214 = scmp.lt.s32.totalorder %s17, 3
      %p215 = pnand %p213, %p214
      %p216 = pneg %p215
      // Predicated region
      $region9: #{classifier_head_forward.3} parent=5 // pred_check
        _
      $region10: #{classifier_head_forward.3} parent=5 // pred_check_branch
        %218 = sbr.rel (%p215) target = $region12
      $region11: #{classifier_head_forward.3} parent=5 // pred_region
        %s219 = ssub.s32 %s17, 1
        // Predicated region
        $region13: #{classifier_head_forward.3} parent=11 // pred_check
          %p220 = pneg %p90
        $region14: #{classifier_head_forward.3} parent=11 // pred_check_branch
          %222 = sbr.rel (%p220) target = $region16
        $region15: #{classifier_head_forward.3} parent=11 // pred_region
          _
        $region16: #{classifier_head_forward.3} parent=11 // pred_fallthru
          _
        // Predicated region
        $region17: #{classifier_head_forward.3} parent=11 // pred_check
          %p223 = pneg %p111
        $region18: #{classifier_head_forward.3} parent=11 // pred_check_branch
          %225 = sbr.rel (%p223) target = $region20
        $region19: #{classifier_head_forward.3} parent=11 // pred_region
          _
        $region20: #{classifier_head_forward.3} parent=11 // pred_fallthru
          _
        // Predicated region
        $region21: #{classifier_head_forward.3} parent=11 // pred_check
          %p226 = pneg %p132
        $region22: #{classifier_head_forward.3} parent=11 // pred_check_branch
          %228 = sbr.rel (%p226) target = $region24
        $region23: #{classifier_head_forward.3} parent=11 // pred_region
          _
        $region24: #{classifier_head_forward.3} parent=11 // pred_fallthru
          _
        // Predicated region
        $region25: #{classifier_head_forward.3} parent=11 // pred_check
          %p229 = pneg %p153
        $region26: #{classifier_head_forward.3} parent=11 // pred_check_branch
          %231 = sbr.rel (%p229) target = $region28
        $region27: #{classifier_head_forward.3} parent=11 // pred_region
          _
        $region28: #{classifier_head_forward.3} parent=11 // pred_fallthru
          _
      $region12: #{classifier_head_forward.3} parent=5 // pred_fallthru
        _
      %p232 = scmp.lt.s32.totalorder %s17, 2
      // Predicated region
      $region29: #{classifier_head_forward.3} parent=5 // pred_check
        %p233 = pneg %p232
      $region30: #{classifier_head_forward.3} parent=5 // pred_check_branch
        %235 = sbr.rel (%p233) target = $region32
      $region31: #{classifier_head_forward.3} parent=5 // pred_region
        // Predicated region
        $region33: #{classifier_head_forward.3} parent=31 // pred_check
          %p236 = pneg %p37
        $region34: #{classifier_head_forward.3} parent=31 // pred_check_branch
          %238 = sbr.rel (%p236) target = $region36
        $region35: #{classifier_head_forward.3} parent=31 // pred_region
          %p239 = scmp.lt.s32.totalorder %s17, 1
          %s240 = scalar_select %p239, %s17, 1
          %s241 = smul.addr %s240, 28
          %s242 = smul.addr %s241, 8
          %s243 = scalar_lea.vmem %s0, %s242
        $region36: #{classifier_head_forward.3} parent=31 // pred_fallthru
          _
        // Predicated region
        $region37: #{classifier_head_forward.3} parent=31 // pred_check
          %p244 = pneg %p63
        $region38: #{classifier_head_forward.3} parent=31 // pred_check_branch
          %246 = sbr.rel (%p244) target = $region40
        $region39: #{classifier_head_forward.3} parent=31 // pred_region
          %s247 = sand.u32 %s53, 1
          %s248 = sand.u32 %s53, 1
          %s249 = smul.addr %s248, 448
          %s250 = scalar_lea.vmem [#allocation2], %s249
          %s251 = smul.addr %s17, 28
          %s252 = smul.addr %s251, 8
          %s253 = scalar_lea.vmem %s1, %s252
          // Predicated region
          $region41: #{classifier_head_forward.3} parent=39 // pred_check
            _
          $region42: #{classifier_head_forward.3} parent=39 // pred_check_branch
            %255 = sbr.rel (0) target = $region44
          $region43: #{classifier_head_forward.3} parent=39 // pred_region
            // Predicated region
            $region45: #{classifier_head_forward.3} parent=43 // pred_check
              _
            $region46: #{classifier_head_forward.3} parent=43 // pred_check_branch
              %257 = sbr.rel (0) target = $region48
            $region47: #{classifier_head_forward.3} parent=43 // pred_region
              loop: start=0, step=1, limit=1
              $region49: #{classifier_head_forward.3} parent=47 // loop_pre_header
                _
              $region50: #{classifier_head_forward.3} parent=47 // loop_header
                %s259 = sphi 0, %s263
                %p260 = scmp.ge.s32.totalorder %s259, 1
                %s264 = sphi %s253, %s253
                %s265 = sphi %s250, %s250
              $region51: #{classifier_head_forward.3} parent=47 // loop_header_branch
                %262 = sbr.rel (%p260) target = $region55
              $region52: #{classifier_head_forward.3} parent=47 // loop_body
                %v266 = vld [vmem:[%s264] sm:$0xff]
                %267 = vst [vmem:[%s265] sm:$0xff] %v266
                %v268 = vld [vmem:[%s264 + $0x8] sm:$0xff]
                %269 = vst [vmem:[%s265 + $0x8] sm:$0xff] %v268
                %v270 = vld [vmem:[%s264 + $0x10] sm:$0xff]
                %271 = vst [vmem:[%s265 + $0x10] sm:$0xff] %v270
                %v272 = vld [vmem:[%s264 + $0x18] sm:$0xff]
                %273 = vst [vmem:[%s265 + $0x18] sm:$0xff] %v272
                %v274 = vld [vmem:[%s264 + $0x20] sm:$0xff]
                %275 = vst [vmem:[%s265 + $0x20] sm:$0xff] %v274
                %v276 = vld [vmem:[%s264 + $0x28] sm:$0xff]
                %277 = vst [vmem:[%s265 + $0x28] sm:$0xff] %v276
                %v278 = vld [vmem:[%s264 + $0x30] sm:$0xff]
                %279 = vst [vmem:[%s265 + $0x30] sm:$0xff] %v278
                %v280 = vld [vmem:[%s264 + $0x38] sm:$0xff]
                %281 = vst [vmem:[%s265 + $0x38] sm:$0xff] %v280
                %v282 = vld [vmem:[%s264 + $0x40] sm:$0xff]
                %283 = vst [vmem:[%s265 + $0x40] sm:$0xff] %v282
                %v284 = vld [vmem:[%s264 + $0x48] sm:$0xff]
                %285 = vst [vmem:[%s265 + $0x48] sm:$0xff] %v284
                %v286 = vld [vmem:[%s264 + $0x50] sm:$0xff]
                %287 = vst [vmem:[%s265 + $0x50] sm:$0xff] %v286
                %v288 = vld [vmem:[%s264 + $0x58] sm:$0xff]
                %289 = vst [vmem:[%s265 + $0x58] sm:$0xff] %v288
                %v290 = vld [vmem:[%s264 + $0x60] sm:$0xff]
                %291 = vst [vmem:[%s265 + $0x60] sm:$0xff] %v290
                %v292 = vld [vmem:[%s264 + $0x68] sm:$0xff]
                %293 = vst [vmem:[%s265 + $0x68] sm:$0xff] %v292
                %v294 = vld [vmem:[%s264 + $0x70] sm:$0xff]
                %295 = vst [vmem:[%s265 + $0x70] sm:$0xff] %v294
                %v296 = vld [vmem:[%s264 + $0x78] sm:$0xff]
                %297 = vst [vmem:[%s265 + $0x78] sm:$0xff] %v296
                %v298 = vld [vmem:[%s264 + $0x80] sm:$0xff]
                %299 = vst [vmem:[%s265 + $0x80] sm:$0xff] %v298
                %v300 = vld [vmem:[%s264 + $0x88] sm:$0xff]
                %301 = vst [vmem:[%s265 + $0x88] sm:$0xff] %v300
                %v302 = vld [vmem:[%s264 + $0x90] sm:$0xff]
                %303 = vst [vmem:[%s265 + $0x90] sm:$0xff] %v302
                %v304 = vld [vmem:[%s264 + $0x98] sm:$0xff]
                %305 = vst [vmem:[%s265 + $0x98] sm:$0xff] %v304
                %v306 = vld [vmem:[%s264 + $0xa0] sm:$0xff]
                %307 = vst [vmem:[%s265 + $0xa0] sm:$0xff] %v306
                %v308 = vld [vmem:[%s264 + $0xa8] sm:$0xff]
                %309 = vst [vmem:[%s265 + $0xa8] sm:$0xff] %v308
                %v310 = vld [vmem:[%s264 + $0xb0] sm:$0xff]
                %311 = vst [vmem:[%s265 + $0xb0] sm:$0xff] %v310
                %v312 = vld [vmem:[%s264 + $0xb8] sm:$0xff]
                %313 = vst [vmem:[%s265 + $0xb8] sm:$0xff] %v312
                %v314 = vld [vmem:[%s264 + $0xc0] sm:$0xff]
                %315 = vst [vmem:[%s265 + $0xc0] sm:$0xff] %v314
                %v316 = vld [vmem:[%s264 + $0xc8] sm:$0xff]
                %317 = vst [vmem:[%s265 + $0xc8] sm:$0xff] %v316
                %v318 = vld [vmem:[%s264 + $0xd0] sm:$0xff]
                %319 = vst [vmem:[%s265 + $0xd0] sm:$0xff] %v318
                %v320 = vld [vmem:[%s264 + $0xd8] sm:$0xff]
                %321 = vst [vmem:[%s265 + $0xd8] sm:$0xff] %v320
                %v322 = vld [vmem:[%s264 + $0x1c0] sm:$0xff]
                %323 = vst [vmem:[%s265 + $0xe0] sm:$0xff] %v322
                %v324 = vld [vmem:[%s264 + $0x1c8] sm:$0xff]
                %325 = vst [vmem:[%s265 + $0xe8] sm:$0xff] %v324
                %v326 = vld [vmem:[%s264 + $0x1d0] sm:$0xff]
                %327 = vst [vmem:[%s265 + $0xf0] sm:$0xff] %v326
                %v328 = vld [vmem:[%s264 + $0x1d8] sm:$0xff]
                %329 = vst [vmem:[%s265 + $0xf8] sm:$0xff] %v328
                %v330 = vld [vmem:[%s264 + $0x1e0] sm:$0xff]
                %331 = vst [vmem:[%s265 + $0x100] sm:$0xff] %v330
                %v332 = vld [vmem:[%s264 + $0x1e8] sm:$0xff]
                %333 = vst [vmem:[%s265 + $0x108] sm:$0xff] %v332
                %v334 = vld [vmem:[%s264 + $0x1f0] sm:$0xff]
                %335 = vst [vmem:[%s265 + $0x110] sm:$0xff] %v334
                %v336 = vld [vmem:[%s264 + $0x1f8] sm:$0xff]
                %337 = vst [vmem:[%s265 + $0x118] sm:$0xff] %v336
                %v338 = vld [vmem:[%s264 + $0x200] sm:$0xff]
                %339 = vst [vmem:[%s265 + $0x120] sm:$0xff] %v338
                %v340 = vld [vmem:[%s264 + $0x208] sm:$0xff]
                %341 = vst [vmem:[%s265 + $0x128] sm:$0xff] %v340
                %v342 = vld [vmem:[%s264 + $0x210] sm:$0xff]
                %343 = vst [vmem:[%s265 + $0x130] sm:$0xff] %v342
                %v344 = vld [vmem:[%s264 + $0x218] sm:$0xff]
                %345 = vst [vmem:[%s265 + $0x138] sm:$0xff] %v344
                %v346 = vld [vmem:[%s264 + $0x220] sm:$0xff]
                %347 = vst [vmem:[%s265 + $0x140] sm:$0xff] %v346
                %v348 = vld [vmem:[%s264 + $0x228] sm:$0xff]
                %349 = vst [vmem:[%s265 + $0x148] sm:$0xff] %v348
                %v350 = vld [vmem:[%s264 + $0x230] sm:$0xff]
                %351 = vst [vmem:[%s265 + $0x150] sm:$0xff] %v350
                %v352 = vld [vmem:[%s264 + $0x238] sm:$0xff]
                %353 = vst [vmem:[%s265 + $0x158] sm:$0xff] %v352
                %v354 = vld [vmem:[%s264 + $0x240] sm:$0xff]
                %355 = vst [vmem:[%s265 + $0x160] sm:$0xff] %v354
                %v356 = vld [vmem:[%s264 + $0x248] sm:$0xff]
                %357 = vst [vmem:[%s265 + $0x168] sm:$0xff] %v356
                %v358 = vld [vmem:[%s264 + $0x250] sm:$0xff]
                %359 = vst [vmem:[%s265 + $0x170] sm:$0xff] %v358
                %v360 = vld [vmem:[%s264 + $0x258] sm:$0xff]
                %361 = vst [vmem:[%s265 + $0x178] sm:$0xff] %v360
                %v362 = vld [vmem:[%s264 + $0x260] sm:$0xff]
                %363 = vst [vmem:[%s265 + $0x180] sm:$0xff] %v362
                %v364 = vld [vmem:[%s264 + $0x268] sm:$0xff]
                %365 = vst [vmem:[%s265 + $0x188] sm:$0xff] %v364
                %v366 = vld [vmem:[%s264 + $0x270] sm:$0xff]
                %367 = vst [vmem:[%s265 + $0x190] sm:$0xff] %v366
                %v368 = vld [vmem:[%s264 + $0x278] sm:$0xff]
                %369 = vst [vmem:[%s265 + $0x198] sm:$0xff] %v368
                %v370 = vld [vmem:[%s264 + $0x280] sm:$0xff]
                %371 = vst [vmem:[%s265 + $0x1a0] sm:$0xff] %v370
                %v372 = vld [vmem:[%s264 + $0x288] sm:$0xff]
                %373 = vst [vmem:[%s265 + $0x1a8] sm:$0xff] %v372
                %v374 = vld [vmem:[%s264 + $0x290] sm:$0xff]
                %375 = vst [vmem:[%s265 + $0x1b0] sm:$0xff] %v374
                %v376 = vld [vmem:[%s264 + $0x298] sm:$0xff]
                %377 = vst [vmem:[%s265 + $0x1b8] sm:$0xff] %v376
              $region53: #{classifier_head_forward.3} parent=47 // loop_footer
                %s263 = sadd.s32 1, %s259
              $region54: #{classifier_head_forward.3} parent=47 // loop_footer_branch
                %258 = sbr.rel target = $region50
              $region55: #{classifier_head_forward.3} parent=47 // loop_exit
                _
            $region48: #{classifier_head_forward.3} parent=43 // pred_fallthru
              _
            // Predicated region
            $region56: #{classifier_head_forward.3} parent=43 // pred_check
              _
            $region57: #{classifier_head_forward.3} parent=43 // pred_check_branch
              %379 = sbr.rel target = $region59
            $region58: #{classifier_head_forward.3} parent=43 // pred_region
              _
            $region59: #{classifier_head_forward.3} parent=43 // pred_fallthru
              _
          $region44: #{classifier_head_forward.3} parent=39 // pred_fallthru
            _
          %380 = vnop
        $region40: #{classifier_head_forward.3} parent=31 // pred_fallthru
          _
      $region32: #{classifier_head_forward.3} parent=5 // pred_fallthru
        _
      %p381 = scmp.le.s32.totalorder 1, %s17
      %p382 = scmp.lt.s32.totalorder %s17, 3
      %p383 = pnand %p381, %p382
      %p384 = pneg %p383
      // Predicated region
      $region60: #{classifier_head_forward.3} parent=5 // pred_check
        _
      $region61: #{classifier_head_forward.3} parent=5 // pred_check_branch
        %386 = sbr.rel (%p383) target = $region63
      $region62: #{classifier_head_forward.3} parent=5 // pred_region
        %s387 = ssub.s32 %s17, 1
        %s388 = sand.u32 %s56, 1
        %s389 = sand.u32 %s56, 1
        %s390 = smul.addr %s389, 448
        %s391 = scalar_lea.vmem [#allocation2], %s390
        // Predicated region
        $region64: #{classifier_head_forward.3} parent=62 // pred_check
          %p392 = pneg %p69
        $region65: #{classifier_head_forward.3} parent=62 // pred_check_branch
          %394 = sbr.rel (%p392) target = $region67
        $region66: #{classifier_head_forward.3} parent=62 // pred_region
          _
        $region67: #{classifier_head_forward.3} parent=62 // pred_fallthru
          _
        %p395 = scmp.lt.s32.totalorder %s22, 1
        %s396 = scalar_select %p395, %s22, 1
        %s397 = smul.addr %s396, 28
        %s398 = smul.addr %s397, 8
        %s399 = scalar_lea.vmem %s0, %s398
        %p400 = pneg %p43
        %p401 = pneg %p40
        %s402 = sand.u32 %s56, 1
        %s403 = sand.u32 %s56, 1
        %s404 = smul.addr %s403, 448
        %s405 = scalar_lea.vmem [#allocation2], %s404
        %p406 = pneg %p69
        %p407 = pneg %p66
        %p408 = pneg %p90
        %p409 = pneg %p87
        %p410 = pneg %p111
        %p411 = pneg %p108
        %p412 = pneg %p132
        %p413 = pneg %p129
        %p414 = pneg %p153
        %p415 = pneg %p150
        %p416 = pneg %p179
        %p417 = pneg %p176
        %s418 = sand.u32 %s166, 1
        %s419 = scalar_lea.sflag [#allocation4], %s418
        %s420 = sand.u32 %s166, 1
        %s421 = scalar_lea.vmem [#allocation3], %s420
        %p422 = pneg %p205
        %p423 = pneg %p202
        %p424 = scmp.lt.s32.totalorder %s22, 1
        %s425 = scalar_select %p424, %s22, 1
        %s426 = smul.addr %s425, 28
        %s427 = smul.addr %s426, 8
        %s428 = scalar_lea.vmem %s7, %s427
        %p429 = scmp.lt.s32.totalorder %s22, 1
        %s430 = scalar_select %p429, %s22, 1
        %s431 = smul.addr %s430, 28
        %s432 = smul.addr %s431, 8
        %s433 = scalar_lea.vmem %s0, %s432
        %p434 = scmp.lt.s32.totalorder %s22, 1
        %s435 = scalar_select %p434, %s22, 1
        %s436 = smul.addr %s435, 28
        %s437 = smul.addr %s436, 8
        %s438 = scalar_lea.vmem %s7, %s437
        %v439 = vld [vmem:[%s433] sm:$0x7f]
        %v440 = vld [vmem:[%s433 + $0x8] sm:$0x7f]
        %v441 = vld [vmem:[%s433 + $0x10] sm:$0x7f]
        %v442 = vld [vmem:[%s433 + $0x18] sm:$0x7f]
        %v443 = vld [vmem:[%s433 + $0x20] sm:$0x7f]
        %v444 = vld [vmem:[%s433 + $0x28] sm:$0x7f]
        %v445 = vld [vmem:[%s433 + $0x30] sm:$0x7f]
        %v446 = vld [vmem:[%s433 + $0x38] sm:$0x7f]
        %v447 = vld [vmem:[%s433 + $0x40] sm:$0x7f]
        %v448 = vld [vmem:[%s433 + $0x48] sm:$0x7f]
        %v449 = vld [vmem:[%s433 + $0x50] sm:$0x7f]
        %v450 = vld [vmem:[%s433 + $0x58] sm:$0x7f]
        %v451 = vld [vmem:[%s433 + $0x60] sm:$0x7f]
        %v452 = vld [vmem:[%s433 + $0x68] sm:$0x7f]
        %v453 = vld [vmem:[%s433 + $0x70] sm:$0x7f]
        %v454 = vld [vmem:[%s433 + $0x78] sm:$0x7f]
        %v455 = vld [vmem:[%s433 + $0x80] sm:$0x7f]
        %v456 = vld [vmem:[%s433 + $0x88] sm:$0x7f]
        %v457 = vld [vmem:[%s433 + $0x90] sm:$0x7f]
        %v458 = vld [vmem:[%s433 + $0x98] sm:$0x7f]
        %v459 = vld [vmem:[%s433 + $0xa0] sm:$0x7f]
        %v460 = vld [vmem:[%s433 + $0xa8] sm:$0x7f]
        %v461 = vld [vmem:[%s433 + $0xb0] sm:$0x7f]
        %v462 = vld [vmem:[%s433 + $0xb8] sm:$0x7f]
        %v463 = vld [vmem:[%s433 + $0xc0] sm:$0x7f]
        %v464 = vld [vmem:[%s433 + $0xc8] sm:$0x7f]
        %v465 = vld [vmem:[%s433 + $0xd0] sm:$0x7f]
        %v466 = vld [vmem:[%s433 + $0xd8] sm:$0x7f]
        %v467 = vld [vmem:[%s391] sm:$0x7f]
        %v468 = vld [vmem:[%s391 + $0x8] sm:$0x7f]
        %v469 = vld [vmem:[%s391 + $0x10] sm:$0x7f]
        %v470 = vld [vmem:[%s391 + $0x18] sm:$0x7f]
        %v471 = vld [vmem:[%s391 + $0x20] sm:$0x7f]
        %v472 = vld [vmem:[%s391 + $0x28] sm:$0x7f]
        %v473 = vld [vmem:[%s391 + $0x30] sm:$0x7f]
        %v474 = vld [vmem:[%s391 + $0x38] sm:$0x7f]
        %v475 = vld [vmem:[%s391 + $0x40] sm:$0x7f]
        %v476 = vld [vmem:[%s391 + $0x48] sm:$0x7f]
        %v477 = vld [vmem:[%s391 + $0x50] sm:$0x7f]
        %v478 = vld [vmem:[%s391 + $0x58] sm:$0x7f]
        %v479 = vld [vmem:[%s391 + $0x60] sm:$0x7f]
        %v480 = vld [vmem:[%s391 + $0x68] sm:$0x7f]
        %v481 = vld [vmem:[%s391 + $0x70] sm:$0x7f]
        %v482 = vld [vmem:[%s391 + $0x78] sm:$0x7f]
        %v483 = vld [vmem:[%s391 + $0x80] sm:$0x7f]
        %v484 = vld [vmem:[%s391 + $0x88] sm:$0x7f]
        %v485 = vld [vmem:[%s391 + $0x90] sm:$0x7f]
        %v486 = vld [vmem:[%s391 + $0x98] sm:$0x7f]
        %v487 = vld [vmem:[%s391 + $0xa0] sm:$0x7f]
        %v488 = vld [vmem:[%s391 + $0xa8] sm:$0x7f]
        %v489 = vld [vmem:[%s391 + $0xb0] sm:$0x7f]
        %v490 = vld [vmem:[%s391 + $0xb8] sm:$0x7f]
        %v491 = vld [vmem:[%s391 + $0xc0] sm:$0x7f]
        %v492 = vld [vmem:[%s391 + $0xc8] sm:$0x7f]
        %v493 = vld [vmem:[%s391 + $0xd0] sm:$0x7f]
        %v494 = vld [vmem:[%s391 + $0xd8] sm:$0x7f]
        %s495 = scalar_lea.vmem %s391, 224 [#allocation2]
        %v496 = vld [vmem:[%s495] sm:$0x7f]
        %v497 = vld [vmem:[%s495 + $0x8] sm:$0x7f]
        %v498 = vld [vmem:[%s495 + $0x10] sm:$0x7f]
        %v499 = vld [vmem:[%s495 + $0x18] sm:$0x7f]
        %v500 = vld [vmem:[%s495 + $0x20] sm:$0x7f]
        %v501 = vld [vmem:[%s495 + $0x28] sm:$0x7f]
        %v502 = vld [vmem:[%s495 + $0x30] sm:$0x7f]
        %v503 = vld [vmem:[%s495 + $0x38] sm:$0x7f]
        %v504 = vld [vmem:[%s495 + $0x40] sm:$0x7f]
        %v505 = vld [vmem:[%s495 + $0x48] sm:$0x7f]
        %v506 = vld [vmem:[%s495 + $0x50] sm:$0x7f]
        %v507 = vld [vmem:[%s495 + $0x58] sm:$0x7f]
        %v508 = vld [vmem:[%s495 + $0x60] sm:$0x7f]
        %v509 = vld [vmem:[%s495 + $0x68] sm:$0x7f]
        %v510 = vld [vmem:[%s495 + $0x70] sm:$0x7f]
        %v511 = vld [vmem:[%s495 + $0x78] sm:$0x7f]
        %v512 = vld [vmem:[%s495 + $0x80] sm:$0x7f]
        %v513 = vld [vmem:[%s495 + $0x88] sm:$0x7f]
        %v514 = vld [vmem:[%s495 + $0x90] sm:$0x7f]
        %v515 = vld [vmem:[%s495 + $0x98] sm:$0x7f]
        %v516 = vld [vmem:[%s495 + $0xa0] sm:$0x7f]
        %v517 = vld [vmem:[%s495 + $0xa8] sm:$0x7f]
        %v518 = vld [vmem:[%s495 + $0xb0] sm:$0x7f]
        %v519 = vld [vmem:[%s495 + $0xb8] sm:$0x7f]
        %v520 = vld [vmem:[%s495 + $0xc0] sm:$0x7f]
        %v521 = vld [vmem:[%s495 + $0xc8] sm:$0x7f]
        %v522 = vld [vmem:[%s495 + $0xd0] sm:$0x7f]
        %v523 = vld [vmem:[%s495 + $0xd8] sm:$0x7f]
        %v524 = vmax.f32 %v467, %v496
        %v525 = vmax.f32 %v468, %v497
        %v526 = vmax.f32 %v469, %v498
        %v527 = vmax.f32 %v470, %v499
        %v528 = vmax.f32 %v471, %v500
        %v529 = vmax.f32 %v472, %v501
        %v530 = vmax.f32 %v473, %v502
        %v531 = vmax.f32 %v474, %v503
        %v532 = vmax.f32 %v475, %v504
        %v533 = vmax.f32 %v476, %v505
        %v534 = vmax.f32 %v477, %v506
        %v535 = vmax.f32 %v478, %v507
        %v536 = vmax.f32 %v479, %v508
        %v537 = vmax.f32 %v480, %v509
        %v538 = vmax.f32 %v481, %v510
        %v539 = vmax.f32 %v482, %v511
        %v540 = vmax.f32 %v483, %v512
        %v541 = vmax.f32 %v484, %v513
        %v542 = vmax.f32 %v485, %v514
        %v543 = vmax.f32 %v486, %v515
        %v544 = vmax.f32 %v487, %v516
        %v545 = vmax.f32 %v488, %v517
        %v546 = vmax.f32 %v489, %v518
        %v547 = vmax.f32 %v490, %v519
        %v548 = vmax.f32 %v491, %v520
        %v549 = vmax.f32 %v492, %v521
        %v550 = vmax.f32 %v493, %v522
        %v551 = vmax.f32 %v494, %v523
        %552 = vst [vmem:[%s438] sm:$0x7f] %v524
        %553 = vst [vmem:[%s438 + $0x8] sm:$0x7f] %v525
        %554 = vst [vmem:[%s438 + $0x10] sm:$0x7f] %v526
        %555 = vst [vmem:[%s438 + $0x18] sm:$0x7f] %v527
        %556 = vst [vmem:[%s438 + $0x20] sm:$0x7f] %v528
        %557 = vst [vmem:[%s438 + $0x28] sm:$0x7f] %v529
        %558 = vst [vmem:[%s438 + $0x30] sm:$0x7f] %v530
        %559 = vst [vmem:[%s438 + $0x38] sm:$0x7f] %v531
        %560 = vst [vmem:[%s438 + $0x40] sm:$0x7f] %v532
        %561 = vst [vmem:[%s438 + $0x48] sm:$0x7f] %v533
        %562 = vst [vmem:[%s438 + $0x50] sm:$0x7f] %v534
        %563 = vst [vmem:[%s438 + $0x58] sm:$0x7f] %v535
        %564 = vst [vmem:[%s438 + $0x60] sm:$0x7f] %v536
        %565 = vst [vmem:[%s438 + $0x68] sm:$0x7f] %v537
        %566 = vst [vmem:[%s438 + $0x70] sm:$0x7f] %v538
        %567 = vst [vmem:[%s438 + $0x78] sm:$0x7f] %v539
        %568 = vst [vmem:[%s438 + $0x80] sm:$0x7f] %v540
        %569 = vst [vmem:[%s438 + $0x88] sm:$0x7f] %v541
        %570 = vst [vmem:[%s438 + $0x90] sm:$0x7f] %v542
        %571 = vst [vmem:[%s438 + $0x98] sm:$0x7f] %v543
        %572 = vst [vmem:[%s438 + $0xa0] sm:$0x7f] %v544
        %573 = vst [vmem:[%s438 + $0xa8] sm:$0x7f] %v545
        %574 = vst [vmem:[%s438 + $0xb0] sm:$0x7f] %v546
        %575 = vst [vmem:[%s438 + $0xb8] sm:$0x7f] %v547
        %576 = vst [vmem:[%s438 + $0xc0] sm:$0x7f] %v548
        %577 = vst [vmem:[%s438 + $0xc8] sm:$0x7f] %v549
        %578 = vst [vmem:[%s438 + $0xd0] sm:$0x7f] %v550
        %579 = vst [vmem:[%s438 + $0xd8] sm:$0x7f] %v551
        %v580 = vmul.f32 %v439, %v524
        %v581 = vmul.f32 %v440, %v525
        %v582 = vmul.f32 %v441, %v526
        %v583 = vmul.f32 %v442, %v527
        %v584 = vmul.f32 %v443, %v528
        %v585 = vmul.f32 %v444, %v529
        %v586 = vmul.f32 %v445, %v530
        %v587 = vmul.f32 %v446, %v531
        %v588 = vmul.f32 %v447, %v532
        %v589 = vmul.f32 %v448, %v533
        %v590 = vmul.f32 %v449, %v534
        %v591 = vmul.f32 %v450, %v535
        %v592 = vmul.f32 %v451, %v536
        %v593 = vmul.f32 %v452, %v537
        %v594 = vmul.f32 %v453, %v538
        %v595 = vmul.f32 %v454, %v539
        %v596 = vmul.f32 %v455, %v540
        %v597 = vmul.f32 %v456, %v541
        %v598 = vmul.f32 %v457, %v542
        %v599 = vmul.f32 %v458, %v543
        %v600 = vmul.f32 %v459, %v544
        %v601 = vmul.f32 %v460, %v545
        %v602 = vmul.f32 %v461, %v546
        %v603 = vmul.f32 %v462, %v547
        %v604 = vmul.f32 %v463, %v548
        %v605 = vmul.f32 %v464, %v549
        %v606 = vmul.f32 %v465, %v550
        %v607 = vmul.f32 %v466, %v551
        %v608 = vld [vmem:[%s2] sm:$0x7f]
        %v609 = vld [vmem:[%s2 + $0x8] sm:$0x7f]
        %v610 = vld [vmem:[%s2 + $0x10] sm:$0x7f]
        %v611 = vld [vmem:[%s2 + $0x18] sm:$0x7f]
        %v612 = vld [vmem:[%s2 + $0x20] sm:$0x7f]
        %v613 = vld [vmem:[%s2 + $0x28] sm:$0x7f]
        %v614 = vld [vmem:[%s2 + $0x30] sm:$0x7f]
        %v615 = vld [vmem:[%s2 + $0x38] sm:$0x7f]
        %v616 = vld [vmem:[%s2 + $0x40] sm:$0x7f]
        %v617 = vld [vmem:[%s2 + $0x48] sm:$0x7f]
        %v618 = vld [vmem:[%s2 + $0x50] sm:$0x7f]
        %v619 = vld [vmem:[%s2 + $0x58] sm:$0x7f]
        %v620 = vld [vmem:[%s2 + $0x60] sm:$0x7f]
        %v621 = vld [vmem:[%s2 + $0x68] sm:$0x7f]
        %v622 = vld [vmem:[%s2 + $0x70] sm:$0x7f]
        %v623 = vld [vmem:[%s2 + $0x78] sm:$0x7f]
        %v624 = vld [vmem:[%s2 + $0x80] sm:$0x7f]
        %v625 = vld [vmem:[%s2 + $0x88] sm:$0x7f]
        %v626 = vld [vmem:[%s2 + $0x90] sm:$0x7f]
        %v627 = vld [vmem:[%s2 + $0x98] sm:$0x7f]
        %v628 = vld [vmem:[%s2 + $0xa0] sm:$0x7f]
        %v629 = vld [vmem:[%s2 + $0xa8] sm:$0x7f]
        %v630 = vld [vmem:[%s2 + $0xb0] sm:$0x7f]
        %v631 = vld [vmem:[%s2 + $0xb8] sm:$0x7f]
        %v632 = vld [vmem:[%s2 + $0xc0] sm:$0x7f]
        %v633 = vld [vmem:[%s2 + $0xc8] sm:$0x7f]
        %v634 = vld [vmem:[%s2 + $0xd0] sm:$0x7f]
        %v635 = vld [vmem:[%s2 + $0xd8] sm:$0x7f]
        %v636 = vmul.f32 %v580, %v608
        %v637 = vmul.f32 %v581, %v609
        %v638 = vmul.f32 %v582, %v610
        %v639 = vmul.f32 %v583, %v611
        %v640 = vmul.f32 %v584, %v612
        %v641 = vmul.f32 %v585, %v613
        %v642 = vmul.f32 %v586, %v614
        %v643 = vmul.f32 %v587, %v615
        %v644 = vmul.f32 %v588, %v616
        %v645 = vmul.f32 %v589, %v617
        %v646 = vmul.f32 %v590, %v618
        %v647 = vmul.f32 %v591, %v619
        %v648 = vmul.f32 %v592, %v620
        %v649 = vmul.f32 %v593, %v621
        %v650 = vmul.f32 %v594, %v622
        %v651 = vmul.f32 %v595, %v623
        %v652 = vmul.f32 %v596, %v624
        %v653 = vmul.f32 %v597, %v625
        %v654 = vmul.f32 %v598, %v626
        %v655 = vmul.f32 %v599, %v627
        %v656 = vmul.f32 %v600, %v628
        %v657 = vmul.f32 %v601, %v629
        %v658 = vmul.f32 %v602, %v630
        %v659 = vmul.f32 %v603, %v631
        %v660 = vmul.f32 %v604, %v632
        %v661 = vmul.f32 %v605, %v633
        %v662 = vmul.f32 %v606, %v634
        %v663 = vmul.f32 %v607, %v635
        %vm664 = vcmask 1046528
        %v665 = vsel %vm664, %v636, 0.0
        %v666 = vsel %vm664, %v640, 0.0
        %v667 = vadd.f32 %v665, %v666
        %v668 = vsel %vm664, %v644, 0.0
        %v669 = vadd.f32 %v667, %v668
        %v670 = vsel %vm664, %v648, 0.0
        %v671 = vadd.f32 %v669, %v670
        %v672 = vsel %vm664, %v652, 0.0
        %v673 = vadd.f32 %v671, %v672
        %v674 = vsel %vm664, %v656, 0.0
        %v675 = vadd.f32 %v673, %v674
        %v676 = vsel %vm664, %v660, 0.0
        %v677 = vadd.f32 %v675, %v676
        %v678 = vsel %vm664, %v637, 0.0
        %v679 = vsel %vm664, %v641, 0.0
        %v680 = vadd.f32 %v678, %v679
        %v681 = vsel %vm664, %v645, 0.0
        %v682 = vadd.f32 %v680, %v681
        %v683 = vsel %vm664, %v649, 0.0
        %v684 = vadd.f32 %v682, %v683
        %v685 = vsel %vm664, %v653, 0.0
        %v686 = vadd.f32 %v684, %v685
        %v687 = vsel %vm664, %v657, 0.0
        %v688 = vadd.f32 %v686, %v687
        %v689 = vsel %vm664, %v661, 0.0
        %v690 = vadd.f32 %v688, %v689
        %v691 = vsel %vm664, %v638, 0.0
        %v692 = vsel %vm664, %v642, 0.0
        %v693 = vadd.f32 %v691, %v692
        %v694 = vsel %vm664, %v646, 0.0
        %v695 = vadd.f32 %v693, %v694
        %v696 = vsel %vm664, %v650, 0.0
        %v697 = vadd.f32 %v695, %v696
        %v698 = vsel %vm664, %v654, 0.0
        %v699 = vadd.f32 %v697, %v698
        %v700 = vsel %vm664, %v658, 0.0
        %v701 = vadd.f32 %v699, %v700
        %v702 = vsel %vm664, %v662, 0.0
        %v703 = vadd.f32 %v701, %v702
        %v704 = vsel %vm664, %v639, 0.0
        %v705 = vsel %vm664, %v643, 0.0
        %v706 = vadd.f32 %v704, %v705
        %v707 = vsel %vm664, %v647, 0.0
        %v708 = vadd.f32 %v706, %v707
        %v709 = vsel %vm664, %v651, 0.0
        %v710 = vadd.f32 %v708, %v709
        %v711 = vsel %vm664, %v655, 0.0
        %v712 = vadd.f32 %v710, %v711
        %v713 = vsel %vm664, %v659, 0.0
        %v714 = vadd.f32 %v712, %v713
        %v715 = vsel %vm664, %v663, 0.0
        %v716 = vadd.f32 %v714, %v715
        %v717 = vsel %vm664, %v677, 0.0
        %v718 = vrot.slane %v717, 4
        %v719 = vadd.f32 %v717, %v718
        %v720 = vrot.slane %v719, 2
        %v721 = vadd.f32 %v719, %v720
        %v722 = vrot.slane %v721, 1
        %v723 = vadd.f32 %v721, %v722
        %v724 = vsel %vm664, %v690, 0.0
        %v725 = vrot.slane %v724, 4
        %v726 = vadd.f32 %v724, %v725
        %v727 = vrot.slane %v726, 2
        %v728 = vadd.f32 %v726, %v727
        %v729 = vrot.slane %v728, 1
        %v730 = vadd.f32 %v728, %v729
        %v731 = vsel %vm664, %v703, 0.0
        %v732 = vrot.slane %v731, 4
        %v733 = vadd.f32 %v731, %v732
        %v734 = vrot.slane %v733, 2
        %v735 = vadd.f32 %v733, %v734
        %v736 = vrot.slane %v735, 1
        %v737 = vadd.f32 %v735, %v736
        %v738 = vsel %vm664, %v716, 0.0
        %v739 = vrot.slane %v738, 4
        %v740 = vadd.f32 %v738, %v739
        %v741 = vrot.slane %v740, 2
        %v742 = vadd.f32 %v740, %v741
        %v743 = vrot.slane %v742, 1
        %v744 = vadd.f32 %v742, %v743
        %v745 = vld [vmem:[%s3] ss:$2 sm:$0xf]
        %v747 = vlaneseq
        %v748 = vshrl.u32 %v747, 7
        %v749 = vsub.s32 0, %v748
        %v750 = vrot.slane %v745, %v749
        %v751 = vlaneseq
        %v752 = vshrl.u32 %v751, 7
        %v753 = vsub.s32 1, %v752
        %v754 = vrot.slane %v745, %v753
        %v755 = vlaneseq
        %v756 = vshrl.u32 %v755, 7
        %v757 = vsub.s32 2, %v756
        %v758 = vrot.slane %v745, %v757
        %v759 = vlaneseq
        %v760 = vshrl.u32 %v759, 7
        %v761 = vsub.s32 3, %v760
        %v762 = vrot.slane %v745, %v761
        %v767 = vmul.f32 %v723, %v750
        %v768 = vmul.f32 %v730, %v754
        %v769 = vmul.f32 %v737, %v758
        %v770 = vmul.f32 %v744, %v762
        %s771 = scalar_lea.vmem %s3, 1
        %v772 = vld [vmem:[%s771] ss:$2 sm:$0xf]
        %v774 = vlaneseq
        %v775 = vshrl.u32 %v774, 7
        %v776 = vsub.s32 0, %v775
        %v777 = vrot.slane %v772, %v776
        %v778 = vlaneseq
        %v779 = vshrl.u32 %v778, 7
        %v780 = vsub.s32 1, %v779
        %v781 = vrot.slane %v772, %v780
        %v782 = vlaneseq
        %v783 = vshrl.u32 %v782, 7
        %v784 = vsub.s32 2, %v783
        %v785 = vrot.slane %v772, %v784
        %v786 = vlaneseq
        %v787 = vshrl.u32 %v786, 7
        %v788 = vsub.s32 3, %v787
        %v789 = vrot.slane %v772, %v788
        %v794 = vadd.f32 %v767, %v777
        %v795 = vadd.f32 %v768, %v781
        %v796 = vadd.f32 %v769, %v785
        %v797 = vadd.f32 %v770, %v789
        %v798 = vld [vmem:[%s4] sm:$0xff]
        %v799 = vld [vmem:[%s4 + $0x8] sm:$0xff]
        %v800 = vld [vmem:[%s4 + $0x10] sm:$0xff]
        %v801 = vld [vmem:[%s4 + $0x18] sm:$0xff]
        %v802 = vld [vmem:[%s4 + $0x20] sm:$0xff]
        %v803 = vld [vmem:[%s4 + $0x28] sm:$0xff]
        %v804 = vld [vmem:[%s4 + $0x30] sm:$0xff]
        %v805 = vld [vmem:[%s4 + $0x38] sm:$0xff]
        %v806 = vld [vmem:[%s4 + $0x40] sm:$0xff]
        %v807 = vld [vmem:[%s4 + $0x48] sm:$0xff]
        %v808 = vld [vmem:[%s4 + $0x50] sm:$0xff]
        %v809 = vld [vmem:[%s4 + $0x58] sm:$0xff]
        %v810 = vld [vmem:[%s4 + $0x60] sm:$0xff]
        %v811 = vld [vmem:[%s4 + $0x68] sm:$0xff]
        %v812 = vld [vmem:[%s4 + $0x70] sm:$0xff]
        %v813 = vld [vmem:[%s4 + $0x78] sm:$0xff]
        %v814 = vld [vmem:[%s4 + $0x80] sm:$0xff]
        %v815 = vld [vmem:[%s4 + $0x88] sm:$0xff]
        %v816 = vld [vmem:[%s4 + $0x90] sm:$0xff]
        %v817 = vld [vmem:[%s4 + $0x98] sm:$0xff]
        %v818 = vld [vmem:[%s4 + $0xa0] sm:$0xff]
        %v819 = vld [vmem:[%s4 + $0xa8] sm:$0xff]
        %v820 = vld [vmem:[%s4 + $0xb0] sm:$0xff]
        %v821 = vld [vmem:[%s4 + $0xb8] sm:$0xff]
        %v822 = vld [vmem:[%s4 + $0xc0] sm:$0xff]
        %v823 = vld [vmem:[%s4 + $0xc8] sm:$0xff]
        %v824 = vld [vmem:[%s4 + $0xd0] sm:$0xff]
        %v825 = vld [vmem:[%s4 + $0xd8] sm:$0xff]
        %v826 = vld [vmem:[%s4 + $0xe0] sm:$0xff]
        %v827 = vld [vmem:[%s4 + $0xe8] sm:$0xff]
        %v828 = vld [vmem:[%s4 + $0xf0] sm:$0xff]
        %v829 = vld [vmem:[%s4 + $0xf8] sm:$0xff]
        %v830 = vld [vmem:[%s4 + $0x100] sm:$0xff]
        %v831 = vld [vmem:[%s4 + $0x108] sm:$0xff]
        %v832 = vld [vmem:[%s4 + $0x110] sm:$0xff]
        %v833 = vld [vmem:[%s4 + $0x118] sm:$0xff]
        %v834 = vld [vmem:[%s4 + $0x120] sm:$0xff]
        %v835 = vld [vmem:[%s4 + $0x128] sm:$0xff]
        %v836 = vld [vmem:[%s4 + $0x130] sm:$0xff]
        %v837 = vld [vmem:[%s4 + $0x138] sm:$0xff]
        %v838 = vld [vmem:[%s4 + $0x140] sm:$0xff]
        %v839 = vld [vmem:[%s4 + $0x148] sm:$0xff]
        %v840 = vld [vmem:[%s4 + $0x150] sm:$0xff]
        %v841 = vld [vmem:[%s4 + $0x158] sm:$0xff]
        %v842 = vld [vmem:[%s4 + $0x160] sm:$0xff]
        %v843 = vld [vmem:[%s4 + $0x168] sm:$0xff]
        %v844 = vld [vmem:[%s4 + $0x170] sm:$0xff]
        %v845 = vld [vmem:[%s4 + $0x178] sm:$0xff]
        %v846 = vld [vmem:[%s4 + $0x180] sm:$0xff]
        %v847 = vld [vmem:[%s4 + $0x188] sm:$0xff]
        %v848 = vld [vmem:[%s4 + $0x190] sm:$0xff]
        %v849 = vld [vmem:[%s4 + $0x198] sm:$0xff]
        %v850 = vld [vmem:[%s4 + $0x1a0] sm:$0xff]
        %v851 = vld [vmem:[%s4 + $0x1a8] sm:$0xff]
        %v852 = vld [vmem:[%s4 + $0x1b0] sm:$0xff]
        %v853 = vld [vmem:[%s4 + $0x1b8] sm:$0xff]
        %v854 = vld [vmem:[%s4 + $0x1c0] sm:$0xff]
        %v855 = vld [vmem:[%s4 + $0x1c8] sm:$0xff]
        %v856 = vld [vmem:[%s4 + $0x1d0] sm:$0xff]
        %v857 = vld [vmem:[%s4 + $0x1d8] sm:$0xff]
        %v858 = vld [vmem:[%s4 + $0x1e0] sm:$0xff]
        %v859 = vld [vmem:[%s4 + $0x1e8] sm:$0xff]
        %v860 = vld [vmem:[%s4 + $0x1f0] sm:$0xff]
        %v861 = vld [vmem:[%s4 + $0x1f8] sm:$0xff]
        %v862 = vld [vmem:[%s5] sm:$0x1]
        %863 = vmatprep.subr.mxu0 0.0
        %864 = vmatpush1.msra.mxu0 %v798
        %865 = vmatprep.subr.mxu0 0.0
        %866 = vmatpush1.msra.mxu0 %v799
        %867 = vmatprep.subr.mxu0 0.0
        %868 = vmatpush1.msra.mxu0 %v800
        %869 = vmatprep.subr.mxu0 0.0
        %870 = vmatpush1.msra.mxu0 %v801
        %871 = vmatprep.subr.mxu0 0.0
        %872 = vmatpush1.msra.mxu0 %v802
        %873 = vmatprep.subr.mxu0 0.0
        %874 = vmatpush1.msra.mxu0 %v803
        %875 = vmatprep.subr.mxu0 0.0
        %876 = vmatpush1.msra.mxu0 %v804
        %877 = vmatprep.subr.mxu0 0.0
        %878 = vmatpush1.msra.mxu0 %v805
        %879 = vmatprep.subr.mxu0 0.0
        %880 = vmatpush1.msra.mxu0 %v806
        %881 = vmatprep.subr.mxu0 0.0
        %882 = vmatpush1.msra.mxu0 %v807
        %883 = vmatprep.subr.mxu0 0.0
        %884 = vmatpush1.msra.mxu0 %v808
        %885 = vmatprep.subr.mxu0 0.0
        %886 = vmatpush1.msra.mxu0 %v809
        %887 = vmatprep.subr.mxu0 0.0
        %888 = vmatpush1.msra.mxu0 %v810
        %889 = vmatprep.subr.mxu0 0.0
        %890 = vmatpush1.msra.mxu0 %v811
        %891 = vmatprep.subr.mxu0 0.0
        %892 = vmatpush1.msra.mxu0 %v812
        %893 = vmatprep.subr.mxu0 0.0
        %894 = vmatpush1.msra.mxu0 %v813
        %895 = vmatprep.subr.mxu0 0.0
        %896 = vmatpush1.msra.mxu0 %v814
        %897 = vmatprep.subr.mxu0 0.0
        %898 = vmatpush1.msra.mxu0 %v815
        %899 = vmatprep.subr.mxu0 0.0
        %900 = vmatpush1.msra.mxu0 %v816
        %901 = vmatprep.subr.mxu0 0.0
        %902 = vmatpush1.msra.mxu0 %v817
        %903 = vmatprep.subr.mxu0 0.0
        %904 = vmatpush1.msra.mxu0 %v818
        %905 = vmatprep.subr.mxu0 0.0
        %906 = vmatpush1.msra.mxu0 %v819
        %907 = vmatprep.subr.mxu0 0.0
        %908 = vmatpush1.msra.mxu0 %v820
        %909 = vmatprep.subr.mxu0 0.0
        %910 = vmatpush1.msra.mxu0 %v821
        %911 = vmatprep.subr.mxu0 0.0
        %912 = vmatpush1.msra.mxu0 %v822
        %913 = vmatprep.subr.mxu0 0.0
        %914 = vmatpush1.msra.mxu0 %v823
        %915 = vmatprep.subr.mxu0 0.0
        %916 = vmatpush1.msra.mxu0 %v824
        %917 = vmatprep.subr.mxu0 0.0
        %918 = vmatpush1.msra.mxu0 %v825
        %919 = vmatprep.subr.mxu0 0.0
        %920 = vmatpush1.msra.mxu0 %v826
        %921 = vmatprep.subr.mxu0 0.0
        %922 = vmatpush1.msra.mxu0 %v827
        %923 = vmatprep.subr.mxu0 0.0
        %924 = vmatpush1.msra.mxu0 %v828
        %925 = vmatprep.subr.mxu0 0.0
        %926 = vmatpush1.msra.mxu0 %v829
        %927 = vmatprep.mubr.f32.mxu0 %v795
        %928 = vmatmul.mubr.f32.gmra.mrb[0].mxu0 %v794
        %v929 = vpop.f32.mrb[0].mxu0
        %v930 = vadd.f32 %v862, %v929
        %v931 = vpop.f32.mrb[0].mxu0
        %932 = vdwg.mxu0
        %933 = vmatprep.subr.mxu0 0.0
        %934 = vmatpush1.msra.mxu0 %v830
        %935 = vmatprep.subr.mxu0 0.0
        %936 = vmatpush1.msra.mxu0 %v831
        %937 = vmatprep.subr.mxu0 0.0
        %938 = vmatpush1.msra.mxu0 %v832
        %939 = vmatprep.subr.mxu0 0.0
        %940 = vmatpush1.msra.mxu0 %v833
        %941 = vmatprep.subr.mxu0 0.0
        %942 = vmatpush1.msra.mxu0 %v834
        %943 = vmatprep.subr.mxu0 0.0
        %944 = vmatpush1.msra.mxu0 %v835
        %945 = vmatprep.subr.mxu0 0.0
        %946 = vmatpush1.msra.mxu0 %v836
        %947 = vmatprep.subr.mxu0 0.0
        %948 = vmatpush1.msra.mxu0 %v837
        %949 = vmatprep.subr.mxu0 0.0
        %950 = vmatpush1.msra.mxu0 %v838
        %951 = vmatprep.subr.mxu0 0.0
        %952 = vmatpush1.msra.mxu0 %v839
        %953 = vmatprep.subr.mxu0 0.0
        %954 = vmatpush1.msra.mxu0 %v840
        %955 = vmatprep.subr.mxu0 0.0
        %956 = vmatpush1.msra.mxu0 %v841
        %957 = vmatprep.subr.mxu0 0.0
        %958 = vmatpush1.msra.mxu0 %v842
        %959 = vmatprep.subr.mxu0 0.0
        %960 = vmatpush1.msra.mxu0 %v843
        %961 = vmatprep.subr.mxu0 0.0
        %962 = vmatpush1.msra.mxu0 %v844
        %963 = vmatprep.subr.mxu0 0.0
        %964 = vmatpush1.msra.mxu0 %v845
        %965 = vmatprep.subr.mxu0 0.0
        %966 = vmatpush1.msra.mxu0 %v846
        %967 = vmatprep.subr.mxu0 0.0
        %968 = vmatpush1.msra.mxu0 %v847
        %969 = vmatprep.subr.mxu0 0.0
        %970 = vmatpush1.msra.mxu0 %v848
        %971 = vmatprep.subr.mxu0 0.0
        %972 = vmatpush1.msra.mxu0 %v849
        %973 = vmatprep.subr.mxu0 0.0
        %974 = vmatpush1.msra.mxu0 %v850
        %975 = vmatprep.subr.mxu0 0.0
        %976 = vmatpush1.msra.mxu0 %v851
        %977 = vmatprep.subr.mxu0 0.0
        %978 = vmatpush1.msra.mxu0 %v852
        %979 = vmatprep.subr.mxu0 0.0
        %980 = vmatpush1.msra.mxu0 %v853
        %981 = vmatprep.subr.mxu0 0.0
        %982 = vmatpush1.msra.mxu0 %v854
        %983 = vmatprep.subr.mxu0 0.0
        %984 = vmatpush1.msra.mxu0 %v855
        %985 = vmatprep.subr.mxu0 0.0
        %986 = vmatpush1.msra.mxu0 %v856
        %987 = vmatprep.subr.mxu0 0.0
        %988 = vmatpush1.msra.mxu0 %v857
        %989 = vmatprep.subr.mxu0 0.0
        %990 = vmatpush1.msra.mxu0 %v858
        %991 = vmatprep.subr.mxu0 0.0
        %992 = vmatpush1.msra.mxu0 %v859
        %993 = vmatprep.subr.mxu0 0.0
        %994 = vmatpush1.msra.mxu0 %v860
        %995 = vmatprep.subr.mxu0 0.0
        %996 = vmatpush1.msra.mxu0 %v861
        %997 = vmatprep.mubr.f32.mxu0 %v797
        %998 = vmatmul.mubr.f32.gmra.mrb[0].mxu0 %v796
        %v999 = vpop.f32.mrb[0].mxu0
        %v1000 = vadd.f32 %v930, %v999
        %v1001 = vpop.f32.mrb[0].mxu0
        %1002 = vdwg.mxu0
        %v1003 = vld [vmem:[%s5 + $0x1] sm:$0x1]
        %v1004 = vmul.f32 %v1000, %v1003
        %v1005 = vld [vmem:[%s5 + $0x2] sm:$0x1]
        %v1006 = vadd.f32 %v1004, %v1005
        %vm1007 = vcmask 49152
        %1008 = vst.msk [vmem:[%s421] sm:$0x1] %vm1007, %v1006
        %s1009 = sand.u32 %s166, 1
        %s1010 = scalar_lea.sflag [#allocation4], %s1009
        %s1011 = sand.u32 %s166, 1
        %s1012 = scalar_lea.vmem [#allocation3], %s1011
        %p1013 = scmp.lt.s32.totalorder %s22, 1
        %s1014 = scalar_select %p1013, %s22, 1
        %s1015 = smul.addr %s1014, 28
        %s1016 = smul.addr %s1015, 8
        %s1017 = scalar_lea.vmem %s7, %s1016
        // Predicated region
        $region68: #{classifier_head_forward.3} parent=62 // pred_check
          %p1018 = pneg %p176
        $region69: #{classifier_head_forward.3} parent=62 // pred_check_branch
          %1020 = sbr.rel (%p1018) target = $region71
        $region70: #{classifier_head_forward.3} parent=62 // pred_region
          %s1022 = ssub.s32 16, 16
          %1023 = vsyncadd %s1010, %s1022
          %s1024 = smul.addr %s22, 16
          %s1025 = scalar_lea.hbm %s6, %s1024
          %s1027 = sshll.u32 %s1012, 4
          %s1028 = int_to_ptr.vmem [resolvable:$true] %s1027
          %1030 = dma.vmem_to_hbm [thread:$0]  %s1028, 16, %s1025, %s1010
        $region71: #{classifier_head_forward.3} parent=62 // pred_fallthru
          _
        // Predicated region
        $region72: #{classifier_head_forward.3} parent=62 // pred_check
          %p1031 = pneg %p202
        $region73: #{classifier_head_forward.3} parent=62 // pred_check_branch
          %1033 = sbr.rel (%p1031) target = $region75
        $region74: #{classifier_head_forward.3} parent=62 // pred_region
          _
        $region75: #{classifier_head_forward.3} parent=62 // pred_fallthru
          _
      $region63: #{classifier_head_forward.3} parent=5 // pred_fallthru
        _
      %p1034 = scmp.le.s32.totalorder 2, %s17
      // Predicated region
      $region76: #{classifier_head_forward.3} parent=5 // pred_check
        %p1035 = pneg %p1034
      $region77: #{classifier_head_forward.3} parent=5 // pred_check_branch
        %1037 = sbr.rel (%p1035) target = $region79
      $region78: #{classifier_head_forward.3} parent=5 // pred_region
        %s1038 = ssub.s32 %s17, 2
        // Predicated region
        $region80: #{classifier_head_forward.3} parent=78 // pred_check
          %p1039 = pneg %p182
        $region81: #{classifier_head_forward.3} parent=78 // pred_check_branch
          %1041 = sbr.rel (%p1039) target = $region83
        $region82: #{classifier_head_forward.3} parent=78 // pred_region
          %s1042 = sand.u32 %s167, 1
          %s1043 = scalar_lea.sflag [#allocation4], %s1042
          %s1044 = sand.u32 %s167, 1
          %s1045 = scalar_lea.vmem [#allocation3], %s1044
          %1046 = dma.done %s1043, 16
        $region83: #{classifier_head_forward.3} parent=78 // pred_fallthru
          _
        // Predicated region
        $region84: #{classifier_head_forward.3} parent=78 // pred_check
          %p1047 = pneg %p208
        $region85: #{classifier_head_forward.3} parent=78 // pred_check_branch
          %1049 = sbr.rel (%p1047) target = $region87
        $region86: #{classifier_head_forward.3} parent=78 // pred_region
          %p1050 = scmp.lt.s32.totalorder %s23, 1
          %s1051 = scalar_select %p1050, %s23, 1
          %s1052 = smul.addr %s1051, 28
          %s1053 = smul.addr %s1052, 8
          %s1054 = scalar_lea.vmem %s7, %s1053
        $region87: #{classifier_head_forward.3} parent=78 // pred_fallthru
          _
      $region79: #{classifier_head_forward.3} parent=5 // pred_fallthru
        _
    $region6: #{classifier_head_forward.3} parent=1 // loop_footer
      %s21 = sadd.s32 1, %s17
    $region7: #{classifier_head_forward.3} parent=1 // loop_footer_branch
      %16 = sbr.rel target = $region3
    $region8: #{classifier_head_forward.3} parent=1 // loop_exit
      _
    %1055 = vsyncpa [#allocation4], 1
    %s1056 = scalar_lea.sflag [#allocation4], 1
    %1057 = vsyncpa %s1056, 1

// kernel: classifier_head_forward.2
$region0: #{classifier_head_forward.2}
  #allocation0 [shape = 'u32[]', space=smem, size = 0x4, offset = 0x4, fixed_abs, tag = 'smem constant byte address 0x4 - core index']
  #allocation1 [shape = 'u32[144,128]{1,0:T(1,128)}', space=vmem, size = 0x12000, scoped, tag = 'internal scratch']
  %s0 = inlined_call_operand.vmem [shape: f32[2,7,7,512], index: 0, kind: input, shape index: {}]
  %s1 = inlined_call_operand.vmem [shape: f32[2,7,512], index: 1, kind: input, shape index: {}]
  %s2 = inlined_call_operand.vmem [shape: f32[2,2,512], index: 2, kind: input, shape index: {}]
  %s3 = inlined_call_operand.vmem [shape: f32[2,7,512], index: 3, kind: input, shape index: {}]
  %s4 = inlined_call_operand.vmem [shape: f32[2,2,512], index: 4, kind: input, shape index: {}]
  %s5 = inlined_call_operand.vmem [shape: f32[2,512,16], index: 5, kind: input, shape index: {}]
  %s6 = inlined_call_operand.vmem [shape: f32[2,3,16], index: 6, kind: input, shape index: {}]
  %s7 = inlined_call_operand.vmem [shape: f32[2,16,512], index: 7, kind: input, shape index: {}]
  %s8 = inlined_call_operand.vmem [shape: f32[2,1,512], index: 8, kind: input, shape index: {}]
  %s9 = inlined_call_operand.vmem [shape: f32[2,16,512], index: 9, kind: input, shape index: {}]
  %s10 = inlined_call_operand.vmem [shape: f32[2,1,512], index: 10, kind: input, shape index: {}]
  %s11 = inlined_call_operand.vmem [shape: f32[2,2,7,7,512], index: 11, kind: output, shape index: {}]
  %s12 = sld [smem:[#allocation0]]
  $region77: #{classifier_head_forward.2} parent=0
    _
  %s14 = ssub.s32 1, %s12
  %s15 = scalar_select 0, %s14, %s12
  loop: start=0, step=1, limit=6
  $region2: #{classifier_head_forward.2} parent=0 // loop_pre_header
    _
  $region3: #{classifier_head_forward.2} parent=0 // loop_header
    %s17 = sphi 0, %s21
    %p18 = scmp.ge.s32.totalorder %s17, 6
    %s24 = sphi 0, %s36
    %s25 = sphi 0, %s32
    %s26 = sphi 0, %s24
    %s27 = sphi 0, %s25
    %s28 = sphi 0, %s26
    %s29 = sphi 0, %s27
    %s39 = sphi 0, %s41
    %s42 = sphi 0, %s39
    %s43 = sphi 0, %s42
    %s59 = sphi 0, %s43
    %s65 = sphi 0, %s67
    %s68 = sphi 0, %s65
    %s69 = sphi 0, %s68
    %s85 = sphi 0, %s69
    %s91 = sphi 0, %s93
    %s94 = sphi 0, %s91
    %s95 = sphi 0, %s94
    %s111 = sphi 0, %s95
    %s117 = sphi 0, %s119
    %s120 = sphi 0, %s117
    %s121 = sphi 0, %s120
    %s137 = sphi 0, %s121
    %s143 = sphi 0, %s145
    %s146 = sphi 0, %s143
    %s147 = sphi 0, %s146
    %s163 = sphi 0, %s147
    %s169 = sphi 0, %s171
    %s172 = sphi 0, %s169
    %s173 = sphi 0, %s172
    %s189 = sphi 0, %s173
    %s195 = sphi 0, %s197
    %s198 = sphi 0, %s195
    %s199 = sphi 0, %s198
    %s215 = sphi 0, %s199
    %s221 = sphi 0, %s223
    %s224 = sphi 0, %s221
    %s225 = sphi 0, %s224
    %s241 = sphi 0, %s225
    %s247 = sphi 0, %s249
    %s250 = sphi 0, %s247
    %s251 = sphi 0, %s250
    %s267 = sphi 0, %s251
    %s273 = sphi 0, %s275
    %s276 = sphi 0, %s273
    %s277 = sphi 0, %s276
    %s293 = sphi 0, %s277
    %s299 = sphi 0, %s301
    %s302 = sphi 0, %s299
    %s303 = sphi 0, %s302
    %s319 = sphi 0, %s303
    %s327 = sphi 0, %s329
    %s330 = sphi 0, %s327
    %s331 = sphi 0, %s330
    %s347 = sphi 0, %s331
  $region4: #{classifier_head_forward.2} parent=0 // loop_header_branch
    %20 = sbr.rel (%p18) target = $region8
  $region5: #{classifier_head_forward.2} parent=0 // loop_body
    %s22 = ssub.s32 %s17, 1
    %s23 = ssub.s32 %s17, 2
    %s30 = sadd.s32 1, %s25
    %p31 = scmp.ge.s32.totalorder %s30, 2
    %s32 = scalar_select %p31, 0, %s30
    %s33 = sadd.s32 1, %s24
    %s34 = scalar_select %p31, %s33, %s24
    %p35 = scmp.ge.s32.totalorder %s34, 2
    %s36 = scalar_select %p35, 0, %s34
    %s37 = ssub.s32 %s25, %s32
    %p38 = scmp.eq.s32.totalorder %s37, 0
    %s40 = sadd.s32 %s39, 1
    %s41 = scalar_select %p38, %s39, %s40
    %p44 = pneg %p38
    %p45 = scmp.eq.s32.totalorder %s17, 3
    %p46 = por %p44, %p45
    %p47 = scmp.ne.s32.totalorder %s39, %s42
    %p48 = scmp.eq.s32.totalorder %s17, 0
    %p49 = por %p47, %p48
    %p50 = scmp.ne.s32.totalorder %s39, %s42
    %p51 = scmp.eq.s32.totalorder %s22, 3
    %p52 = por %p50, %p51
    %p53 = scmp.ne.s32.totalorder %s42, %s43
    %p54 = scmp.eq.s32.totalorder %s22, 0
    %p55 = por %p53, %p54
    %p56 = scmp.ne.s32.totalorder %s42, %s43
    %p57 = scmp.eq.s32.totalorder %s23, 3
    %p58 = por %p56, %p57
    %p60 = scmp.ne.s32.totalorder %s43, %s59
    %p61 = scmp.eq.s32.totalorder %s23, 0
    %p62 = por %p60, %p61
    %s63 = ssub.s32 %s24, %s36
    %p64 = scmp.eq.s32.totalorder %s63, 0
    %s66 = sadd.s32 %s65, 1
    %s67 = scalar_select %p64, %s65, %s66
    %p70 = pneg %p64
    %p71 = scmp.eq.s32.totalorder %s17, 3
    %p72 = por %p70, %p71
    %p73 = scmp.ne.s32.totalorder %s65, %s68
    %p74 = scmp.eq.s32.totalorder %s17, 0
    %p75 = por %p73, %p74
    %p76 = scmp.ne.s32.totalorder %s65, %s68
    %p77 = scmp.eq.s32.totalorder %s22, 3
    %p78 = por %p76, %p77
    %p79 = scmp.ne.s32.totalorder %s68, %s69
    %p80 = scmp.eq.s32.totalorder %s22, 0
    %p81 = por %p79, %p80
    %p82 = scmp.ne.s32.totalorder %s68, %s69
    %p83 = scmp.eq.s32.totalorder %s23, 3
    %p84 = por %p82, %p83
    %p86 = scmp.ne.s32.totalorder %s69, %s85
    %p87 = scmp.eq.s32.totalorder %s23, 0
    %p88 = por %p86, %p87
    %s89 = ssub.s32 %s24, %s36
    %p90 = scmp.eq.s32.totalorder %s89, 0
    %s92 = sadd.s32 %s91, 1
    %s93 = scalar_select %p90, %s91, %s92
    %p96 = pneg %p90
    %p97 = scmp.eq.s32.totalorder %s17, 3
    %p98 = por %p96, %p97
    %p99 = scmp.ne.s32.totalorder %s91, %s94
    %p100 = scmp.eq.s32.totalorder %s17, 0
    %p101 = por %p99, %p100
    %p102 = scmp.ne.s32.totalorder %s91, %s94
    %p103 = scmp.eq.s32.totalorder %s22, 3
    %p104 = por %p102, %p103
    %p105 = scmp.ne.s32.totalorder %s94, %s95
    %p106 = scmp.eq.s32.totalorder %s22, 0
    %p107 = por %p105, %p106
    %p108 = scmp.ne.s32.totalorder %s94, %s95
    %p109 = scmp.eq.s32.totalorder %s23, 3
    %p110 = por %p108, %p109
    %p112 = scmp.ne.s32.totalorder %s95, %s111
    %p113 = scmp.eq.s32.totalorder %s23, 0
    %p114 = por %p112, %p113
    %s115 = ssub.s32 %s24, %s36
    %p116 = scmp.eq.s32.totalorder %s115, 0
    %s118 = sadd.s32 %s117, 1
    %s119 = scalar_select %p116, %s117, %s118
    %p122 = pneg %p116
    %p123 = scmp.eq.s32.totalorder %s17, 3
    %p124 = por %p122, %p123
    %p125 = scmp.ne.s32.totalorder %s117, %s120
    %p126 = scmp.eq.s32.totalorder %s17, 0
    %p127 = por %p125, %p126
    %p128 = scmp.ne.s32.totalorder %s117, %s120
    %p129 = scmp.eq.s32.totalorder %s22, 3
    %p130 = por %p128, %p129
    %p131 = scmp.ne.s32.totalorder %s120, %s121
    %p132 = scmp.eq.s32.totalorder %s22, 0
    %p133 = por %p131, %p132
    %p134 = scmp.ne.s32.totalorder %s120, %s121
    %p135 = scmp.eq.s32.totalorder %s23, 3
    %p136 = por %p134, %p135
    %p138 = scmp.ne.s32.totalorder %s121, %s137
    %p139 = scmp.eq.s32.totalorder %s23, 0
    %p140 = por %p138, %p139
    %s141 = ssub.s32 %s24, %s36
    %p142 = scmp.eq.s32.totalorder %s141, 0
    %s144 = sadd.s32 %s143, 1
    %s145 = scalar_select %p142, %s143, %s144
    %p148 = pneg %p142
    %p149 = scmp.eq.s32.totalorder %s17, 3
    %p150 = por %p148, %p149
    %p151 = scmp.ne.s32.totalorder %s143, %s146
    %p152 = scmp.eq.s32.totalorder %s17, 0
    %p153 = por %p151, %p152
    %p154 = scmp.ne.s32.totalorder %s143, %s146
    %p155 = scmp.eq.s32.totalorder %s22, 3
    %p156 = por %p154, %p155
    %p157 = scmp.ne.s32.totalorder %s146, %s147
    %p158 = scmp.eq.s32.totalorder %s22, 0
    %p159 = por %p157, %p158
    %p160 = scmp.ne.s32.totalorder %s146, %s147
    %p161 = scmp.eq.s32.totalorder %s23, 3
    %p162 = por %p160, %p161
    %p164 = scmp.ne.s32.totalorder %s147, %s163
    %p165 = scmp.eq.s32.totalorder %s23, 0
    %p166 = por %p164, %p165
    %s167 = ssub.s32 %s24, %s36
    %p168 = scmp.eq.s32.totalorder %s167, 0
    %s170 = sadd.s32 %s169, 1
    %s171 = scalar_select %p168, %s169, %s170
    %p174 = pneg %p168
    %p175 = scmp.eq.s32.totalorder %s17, 3
    %p176 = por %p174, %p175
    %p177 = scmp.ne.s32.totalorder %s169, %s172
    %p178 = scmp.eq.s32.totalorder %s17, 0
    %p179 = por %p177, %p178
    %p180 = scmp.ne.s32.totalorder %s169, %s172
    %p181 = scmp.eq.s32.totalorder %s22, 3
    %p182 = por %p180, %p181
    %p183 = scmp.ne.s32.totalorder %s172, %s173
    %p184 = scmp.eq.s32.totalorder %s22, 0
    %p185 = por %p183, %p184
    %p186 = scmp.ne.s32.totalorder %s172, %s173
    %p187 = scmp.eq.s32.totalorder %s23, 3
    %p188 = por %p186, %p187
    %p190 = scmp.ne.s32.totalorder %s173, %s189
    %p191 = scmp.eq.s32.totalorder %s23, 0
    %p192 = por %p190, %p191
    %s193 = ssub.s32 %s24, %s36
    %p194 = scmp.eq.s32.totalorder %s193, 0
    %s196 = sadd.s32 %s195, 1
    %s197 = scalar_select %p194, %s195, %s196
    %p200 = pneg %p194
    %p201 = scmp.eq.s32.totalorder %s17, 3
    %p202 = por %p200, %p201
    %p203 = scmp.ne.s32.totalorder %s195, %s198
    %p204 = scmp.eq.s32.totalorder %s17, 0
    %p205 = por %p203, %p204
    %p206 = scmp.ne.s32.totalorder %s195, %s198
    %p207 = scmp.eq.s32.totalorder %s22, 3
    %p208 = por %p206, %p207
    %p209 = scmp.ne.s32.totalorder %s198, %s199
    %p210 = scmp.eq.s32.totalorder %s22, 0
    %p211 = por %p209, %p210
    %p212 = scmp.ne.s32.totalorder %s198, %s199
    %p213 = scmp.eq.s32.totalorder %s23, 3
    %p214 = por %p212, %p213
    %p216 = scmp.ne.s32.totalorder %s199, %s215
    %p217 = scmp.eq.s32.totalorder %s23, 0
    %p218 = por %p216, %p217
    %s219 = ssub.s32 %s24, %s36
    %p220 = scmp.eq.s32.totalorder %s219, 0
    %s222 = sadd.s32 %s221, 1
    %s223 = scalar_select %p220, %s221, %s222
    %p226 = pneg %p220
    %p227 = scmp.eq.s32.totalorder %s17, 3
    %p228 = por %p226, %p227
    %p229 = scmp.ne.s32.totalorder %s221, %s224
    %p230 = scmp.eq.s32.totalorder %s17, 0
    %p231 = por %p229, %p230
    %p232 = scmp.ne.s32.totalorder %s221, %s224
    %p233 = scmp.eq.s32.totalorder %s22, 3
    %p234 = por %p232, %p233
    %p235 = scmp.ne.s32.totalorder %s224, %s225
    %p236 = scmp.eq.s32.totalorder %s22, 0
    %p237 = por %p235, %p236
    %p238 = scmp.ne.s32.totalorder %s224, %s225
    %p239 = scmp.eq.s32.totalorder %s23, 3
    %p240 = por %p238, %p239
    %p242 = scmp.ne.s32.totalorder %s225, %s241
    %p243 = scmp.eq.s32.totalorder %s23, 0
    %p244 = por %p242, %p243
    %s245 = ssub.s32 %s24, %s36
    %p246 = scmp.eq.s32.totalorder %s245, 0
    %s248 = sadd.s32 %s247, 1
    %s249 = scalar_select %p246, %s247, %s248
    %p252 = pneg %p246
    %p253 = scmp.eq.s32.totalorder %s17, 3
    %p254 = por %p252, %p253
    %p255 = scmp.ne.s32.totalorder %s247, %s250
    %p256 = scmp.eq.s32.totalorder %s17, 0
    %p257 = por %p255, %p256
    %p258 = scmp.ne.s32.totalorder %s247, %s250
    %p259 = scmp.eq.s32.totalorder %s22, 3
    %p260 = por %p258, %p259
    %p261 = scmp.ne.s32.totalorder %s250, %s251
    %p262 = scmp.eq.s32.totalorder %s22, 0
    %p263 = por %p261, %p262
    %p264 = scmp.ne.s32.totalorder %s250, %s251
    %p265 = scmp.eq.s32.totalorder %s23, 3
    %p266 = por %p264, %p265
    %p268 = scmp.ne.s32.totalorder %s251, %s267
    %p269 = scmp.eq.s32.totalorder %s23, 0
    %p270 = por %p268, %p269
    %s271 = ssub.s32 %s24, %s36
    %p272 = scmp.eq.s32.totalorder %s271, 0
    %s274 = sadd.s32 %s273, 1
    %s275 = scalar_select %p272, %s273, %s274
    %p278 = pneg %p272
    %p279 = scmp.eq.s32.totalorder %s17, 3
    %p280 = por %p278, %p279
    %p281 = scmp.ne.s32.totalorder %s273, %s276
    %p282 = scmp.eq.s32.totalorder %s17, 0
    %p283 = por %p281, %p282
    %p284 = scmp.ne.s32.totalorder %s273, %s276
    %p285 = scmp.eq.s32.totalorder %s22, 3
    %p286 = por %p284, %p285
    %p287 = scmp.ne.s32.totalorder %s276, %s277
    %p288 = scmp.eq.s32.totalorder %s22, 0
    %p289 = por %p287, %p288
    %p290 = scmp.ne.s32.totalorder %s276, %s277
    %p291 = scmp.eq.s32.totalorder %s23, 3
    %p292 = por %p290, %p291
    %p294 = scmp.ne.s32.totalorder %s277, %s293
    %p295 = scmp.eq.s32.totalorder %s23, 0
    %p296 = por %p294, %p295
    %s297 = ssub.s32 %s24, %s36
    %p298 = scmp.eq.s32.totalorder %s297, 0
    %s300 = sadd.s32 %s299, 1
    %s301 = scalar_select %p298, %s299, %s300
    %p304 = pneg %p298
    %p305 = scmp.eq.s32.totalorder %s17, 3
    %p306 = por %p304, %p305
    %p307 = scmp.ne.s32.totalorder %s299, %s302
    %p308 = scmp.eq.s32.totalorder %s17, 0
    %p309 = por %p307, %p308
    %p310 = scmp.ne.s32.totalorder %s299, %s302
    %p311 = scmp.eq.s32.totalorder %s22, 3
    %p312 = por %p310, %p311
    %p313 = scmp.ne.s32.totalorder %s302, %s303
    %p314 = scmp.eq.s32.totalorder %s22, 0
    %p315 = por %p313, %p314
    %p316 = scmp.ne.s32.totalorder %s302, %s303
    %p317 = scmp.eq.s32.totalorder %s23, 3
    %p318 = por %p316, %p317
    %p320 = scmp.ne.s32.totalorder %s303, %s319
    %p321 = scmp.eq.s32.totalorder %s23, 0
    %p322 = por %p320, %p321
    %s323 = ssub.s32 %s24, %s36
    %s324 = ssub.s32 %s25, %s32
    %s325 = sor.u32 %s323, %s324
    %p326 = scmp.eq.s32.totalorder %s325, 0
    %s328 = sadd.s32 %s327, 1
    %s329 = scalar_select %p326, %s327, %s328
    %p332 = pneg %p326
    %p333 = scmp.eq.s32.totalorder %s17, 3
    %p334 = por %p332, %p333
    %p335 = scmp.ne.s32.totalorder %s327, %s330
    %p336 = scmp.eq.s32.totalorder %s17, 0
    %p337 = por %p335, %p336
    %p338 = scmp.ne.s32.totalorder %s327, %s330
    %p339 = scmp.eq.s32.totalorder %s22, 3
    %p340 = por %p338, %p339
    %p341 = scmp.ne.s32.totalorder %s330, %s331
    %p342 = scmp.eq.s32.totalorder %s22, 0
    %p343 = por %p341, %p342
    %p344 = scmp.ne.s32.totalorder %s330, %s331
    %p345 = scmp.eq.s32.totalorder %s23, 3
    %p346 = por %p344, %p345
    %p348 = scmp.ne.s32.totalorder %s331, %s347
    %p349 = scmp.eq.s32.totalorder %s23, 0
    %p350 = por %p348, %p349
    %p351 = scmp.le.s32.totalorder 1, %s17
    %p352 = scmp.lt.s32.totalorder %s17, 5
    %p353 = pnand %p351, %p352
    %p354 = pneg %p353
    // Predicated region
    $region9: #{classifier_head_forward.2} parent=5 // pred_check
      _
    $region10: #{classifier_head_forward.2} parent=5 // pred_check_branch
      %356 = sbr.rel (%p353) target = $region12
    $region11: #{classifier_head_forward.2} parent=5 // pred_region
      %s357 = ssub.s32 %s17, 1
    $region12: #{classifier_head_forward.2} parent=5 // pred_fallthru
      _
    %p358 = scmp.lt.s32.totalorder %s17, 4
    // Predicated region
    $region13: #{classifier_head_forward.2} parent=5 // pred_check
      %p359 = pneg %p358
    $region14: #{classifier_head_forward.2} parent=5 // pred_check_branch
      %361 = sbr.rel (%p359) target = $region16
    $region15: #{classifier_head_forward.2} parent=5 // pred_region
      // Predicated region
      $region17: #{classifier_head_forward.2} parent=15 // pred_check
        %p362 = pneg %p49
      $region18: #{classifier_head_forward.2} parent=15 // pred_check_branch
        %364 = sbr.rel (%p362) target = $region20
      $region19: #{classifier_head_forward.2} parent=15 // pred_region
        %p365 = scmp.lt.s32.totalorder %s25, 1
        %s366 = scalar_select %p365, %s25, 1
        %s367 = smul.addr %s366, 28
        %s368 = smul.addr %s367, 8
        %s369 = scalar_lea.vmem %s0, %s368
      $region20: #{classifier_head_forward.2} parent=15 // pred_fallthru
        _
      // Predicated region
      $region21: #{classifier_head_forward.2} parent=15 // pred_check
        %p370 = pneg %p75
      $region22: #{classifier_head_forward.2} parent=15 // pred_check_branch
        %372 = sbr.rel (%p370) target = $region24
      $region23: #{classifier_head_forward.2} parent=15 // pred_region
        %p373 = scmp.lt.s32.totalorder %s24, 1
        %s374 = scalar_select %p373, %s24, 1
        %s375 = smul.addr %s374, 4
        %s376 = smul.addr %s375, 8
        %s377 = scalar_lea.vmem %s1, %s376
      $region24: #{classifier_head_forward.2} parent=15 // pred_fallthru
        _
      // Predicated region
      $region25: #{classifier_head_forward.2} parent=15 // pred_check
        %p378 = pneg %p101
      $region26: #{classifier_head_forward.2} parent=15 // pred_check_branch
        %380 = sbr.rel (%p378) target = $region28
      $region27: #{classifier_head_forward.2} parent=15 // pred_region
        %p381 = scmp.lt.s32.totalorder %s24, 1
        %s382 = scalar_select %p381, %s24, 1
        %s383 = smul.addr %s382, 4
        %s384 = smul.addr %s383, 2
        %s385 = scalar_lea.vmem %s2, %s384
      $region28: #{classifier_head_forward.2} parent=15 // pred_fallthru
        _
      // Predicated region
      $region29: #{classifier_head_forward.2} parent=15 // pred_check
        %p386 = pneg %p127
      $region30: #{classifier_head_forward.2} parent=15 // pred_check_branch
        %388 = sbr.rel (%p386) target = $region32
      $region31: #{classifier_head_forward.2} parent=15 // pred_region
        %p389 = scmp.lt.s32.totalorder %s24, 1
        %s390 = scalar_select %p389, %s24, 1
        %s391 = smul.addr %s390, 4
        %s392 = smul.addr %s391, 8
        %s393 = scalar_lea.vmem %s3, %s392
      $region32: #{classifier_head_forward.2} parent=15 // pred_fallthru
        _
      // Predicated region
      $region33: #{classifier_head_forward.2} parent=15 // pred_check
        %p394 = pneg %p153
      $region34: #{classifier_head_forward.2} parent=15 // pred_check_branch
        %396 = sbr.rel (%p394) target = $region36
      $region35: #{classifier_head_forward.2} parent=15 // pred_region
        %p397 = scmp.lt.s32.totalorder %s24, 1
        %s398 = scalar_select %p397, %s24, 1
        %s399 = smul.addr %s398, 4
        %s400 = smul.addr %s399, 2
        %s401 = scalar_lea.vmem %s4, %s400
      $region36: #{classifier_head_forward.2} parent=15 // pred_fallthru
        _
      // Predicated region
      $region37: #{classifier_head_forward.2} parent=15 // pred_check
        %p402 = pneg %p179
      $region38: #{classifier_head_forward.2} parent=15 // pred_check_branch
        %404 = sbr.rel (%p402) target = $region40
      $region39: #{classifier_head_forward.2} parent=15 // pred_region
        %p405 = scmp.lt.s32.totalorder %s24, 1
        %s406 = scalar_select %p405, %s24, 1
        %s407 = smul.addr %s406, 64
        %s408 = smul.addr %s407, 8
        %s409 = scalar_lea.vmem %s5, %s408
      $region40: #{classifier_head_forward.2} parent=15 // pred_fallthru
        _
      // Predicated region
      $region41: #{classifier_head_forward.2} parent=15 // pred_check
        %p410 = pneg %p205
      $region42: #{classifier_head_forward.2} parent=15 // pred_check_branch
        %412 = sbr.rel (%p410) target = $region44
      $region43: #{classifier_head_forward.2} parent=15 // pred_region
        %p413 = scmp.lt.s32.totalorder %s24, 1
        %s414 = scalar_select %p413, %s24, 1
        %s415 = smul.addr %s414, 4
        %s416 = scalar_lea.vmem %s6, %s415
      $region44: #{classifier_head_forward.2} parent=15 // pred_fallthru
        _
      // Predicated region
      $region45: #{classifier_head_forward.2} parent=15 // pred_check
        %p417 = pneg %p231
      $region46: #{classifier_head_forward.2} parent=15 // pred_check_branch
        %419 = sbr.rel (%p417) target = $region48
      $region47: #{classifier_head_forward.2} parent=15 // pred_region
        %p420 = scmp.lt.s32.totalorder %s24, 1
        %s421 = scalar_select %p420, %s24, 1
        %s422 = smul.addr %s421, 8
        %s423 = smul.addr %s422, 8
        %s424 = scalar_lea.vmem %s7, %s423
      $region48: #{classifier_head_forward.2} parent=15 // pred_fallthru
        _
      // Predicated region
      $region49: #{classifier_head_forward.2} parent=15 // pred_check
        %p425 = pneg %p257
      $region50: #{classifier_head_forward.2} parent=15 // pred_check_branch
        %427 = sbr.rel (%p425) target = $region52
      $region51: #{classifier_head_forward.2} parent=15 // pred_region
        %p428 = scmp.lt.s32.totalorder %s24, 1
        %s429 = scalar_select %p428, %s24, 1
        %s430 = smul.addr %s429, 4
        %s431 = scalar_lea.vmem %s8, %s430
      $region52: #{classifier_head_forward.2} parent=15 // pred_fallthru
        _
      // Predicated region
      $region53: #{classifier_head_forward.2} parent=15 // pred_check
        %p432 = pneg %p283
      $region54: #{classifier_head_forward.2} parent=15 // pred_check_branch
        %434 = sbr.rel (%p432) target = $region56
      $region55: #{classifier_head_forward.2} parent=15 // pred_region
        %p435 = scmp.lt.s32.totalorder %s24, 1
        %s436 = scalar_select %p435, %s24, 1
        %s437 = smul.addr %s436, 8
        %s438 = smul.addr %s437, 8
        %s439 = scalar_lea.vmem %s9, %s438
      $region56: #{classifier_head_forward.2} parent=15 // pred_fallthru
        _
      // Predicated region
      $region57: #{classifier_head_forward.2} parent=15 // pred_check
        %p440 = pneg %p309
      $region58: #{classifier_head_forward.2} parent=15 // pred_check_branch
        %442 = sbr.rel (%p440) target = $region60
      $region59: #{classifier_head_forward.2} parent=15 // pred_region
        %p443 = scmp.lt.s32.totalorder %s24, 1
        %s444 = scalar_select %p443, %s24, 1
        %s445 = smul.addr %s444, 4
        %s446 = scalar_lea.vmem %s10, %s445
      $region60: #{classifier_head_forward.2} parent=15 // pred_fallthru
        _
    $region16: #{classifier_head_forward.2} parent=5 // pred_fallthru
      _
    %p447 = scmp.le.s32.totalorder 1, %s17
    %p448 = scmp.lt.s32.totalorder %s17, 5
    %p449 = pnand %p447, %p448
    %p450 = pneg %p449
    // Predicated region
    $region61: #{classifier_head_forward.2} parent=5 // pred_check
      _
    $region62: #{classifier_head_forward.2} parent=5 // pred_check_branch
      %452 = sbr.rel (%p449) target = $region64
    $region63: #{classifier_head_forward.2} parent=5 // pred_region
      %s453 = ssub.s32 %s17, 1
      %p454 = scmp.lt.s32.totalorder %s27, 1
      %s455 = scalar_select %p454, %s27, 1
      %s456 = smul.addr %s455, 28
      %s457 = smul.addr %s456, 8
      %s458 = scalar_lea.vmem %s0, %s457
      %p459 = pneg %p55
      %p460 = pneg %p52
      %p461 = scmp.lt.s32.totalorder %s26, 1
      %s462 = scalar_select %p461, %s26, 1
      %s463 = smul.addr %s462, 4
      %s464 = smul.addr %s463, 8
      %s465 = scalar_lea.vmem %s1, %s464
      %p466 = pneg %p81
      %p467 = pneg %p78
      %p468 = scmp.lt.s32.totalorder %s26, 1
      %s469 = scalar_select %p468, %s26, 1
      %s470 = smul.addr %s469, 4
      %s471 = smul.addr %s470, 2
      %s472 = scalar_lea.vmem %s2, %s471
      %p473 = pneg %p107
      %p474 = pneg %p104
      %p475 = scmp.lt.s32.totalorder %s26, 1
      %s476 = scalar_select %p475, %s26, 1
      %s477 = smul.addr %s476, 4
      %s478 = smul.addr %s477, 8
      %s479 = scalar_lea.vmem %s3, %s478
      %p480 = pneg %p133
      %p481 = pneg %p130
      %p482 = scmp.lt.s32.totalorder %s26, 1
      %s483 = scalar_select %p482, %s26, 1
      %s484 = smul.addr %s483, 4
      %s485 = smul.addr %s484, 2
      %s486 = scalar_lea.vmem %s4, %s485
      %p487 = pneg %p159
      %p488 = pneg %p156
      %p489 = scmp.lt.s32.totalorder %s26, 1
      %s490 = scalar_select %p489, %s26, 1
      %s491 = smul.addr %s490, 64
      %s492 = smul.addr %s491, 8
      %s493 = scalar_lea.vmem %s5, %s492
      %p494 = pneg %p185
      %p495 = pneg %p182
      %p496 = scmp.lt.s32.totalorder %s26, 1
      %s497 = scalar_select %p496, %s26, 1
      %s498 = smul.addr %s497, 4
      %s499 = scalar_lea.vmem %s6, %s498
      %p500 = pneg %p211
      %p501 = pneg %p208
      %p502 = scmp.lt.s32.totalorder %s26, 1
      %s503 = scalar_select %p502, %s26, 1
      %s504 = smul.addr %s503, 8
      %s505 = smul.addr %s504, 8
      %s506 = scalar_lea.vmem %s7, %s505
      %p507 = pneg %p237
      %p508 = pneg %p234
      %p509 = scmp.lt.s32.totalorder %s26, 1
      %s510 = scalar_select %p509, %s26, 1
      %s511 = smul.addr %s510, 4
      %s512 = scalar_lea.vmem %s8, %s511
      %p513 = pneg %p263
      %p514 = pneg %p260
      %p515 = scmp.lt.s32.totalorder %s26, 1
      %s516 = scalar_select %p515, %s26, 1
      %s517 = smul.addr %s516, 8
      %s518 = smul.addr %s517, 8
      %s519 = scalar_lea.vmem %s9, %s518
      %p520 = pneg %p289
      %p521 = pneg %p286
      %p522 = scmp.lt.s32.totalorder %s26, 1
      %s523 = scalar_select %p522, %s26, 1
      %s524 = smul.addr %s523, 4
      %s525 = scalar_lea.vmem %s10, %s524
      %p526 = pneg %p315
      %p527 = pneg %p312
      %p528 = pneg %p343
      %p529 = pneg %p340
      %p530 = scmp.lt.s32.totalorder %s26, 1
      %s531 = scalar_select %p530, %s26, 1
      %p532 = scmp.lt.s32.totalorder %s27, 1
      %s533 = scalar_select %p532, %s27, 1
      %s534 = smul.addr %s533, 28
      %s535 = smul.addr %s531, 56
      %s536 = sadd.s32 %s534, %s535
      %s537 = smul.addr %s536, 8
      %s538 = scalar_lea.vmem %s11, %s537
      %p539 = scmp.lt.s32.totalorder %s27, 1
      %s540 = scalar_select %p539, %s27, 1
      %s541 = smul.addr %s540, 28
      %s542 = smul.addr %s541, 8
      %s543 = scalar_lea.vmem %s0, %s542
      %p544 = scmp.lt.s32.totalorder %s26, 1
      %s545 = scalar_select %p544, %s26, 1
      %s546 = smul.addr %s545, 4
      %s547 = smul.addr %s546, 8
      %s548 = scalar_lea.vmem %s1, %s547
      %p549 = scmp.lt.s32.totalorder %s26, 1
      %s550 = scalar_select %p549, %s26, 1
      %s551 = smul.addr %s550, 4
      %s552 = smul.addr %s551, 2
      %s553 = scalar_lea.vmem %s2, %s552
      %p554 = scmp.lt.s32.totalorder %s26, 1
      %s555 = scalar_select %p554, %s26, 1
      %s556 = smul.addr %s555, 4
      %s557 = smul.addr %s556, 8
      %s558 = scalar_lea.vmem %s3, %s557
      %p559 = scmp.lt.s32.totalorder %s26, 1
      %s560 = scalar_select %p559, %s26, 1
      %s561 = smul.addr %s560, 4
      %s562 = smul.addr %s561, 2
      %s563 = scalar_lea.vmem %s4, %s562
      %p564 = scmp.lt.s32.totalorder %s26, 1
      %s565 = scalar_select %p564, %s26, 1
      %s566 = smul.addr %s565, 64
      %s567 = smul.addr %s566, 8
      %s568 = scalar_lea.vmem %s5, %s567
      %p569 = scmp.lt.s32.totalorder %s26, 1
      %s570 = scalar_select %p569, %s26, 1
      %s571 = smul.addr %s570, 4
      %s572 = scalar_lea.vmem %s6, %s571
      %p573 = scmp.lt.s32.totalorder %s26, 1
      %s574 = scalar_select %p573, %s26, 1
      %s575 = smul.addr %s574, 8
      %s576 = smul.addr %s575, 8
      %s577 = scalar_lea.vmem %s7, %s576
      %p578 = scmp.lt.s32.totalorder %s26, 1
      %s579 = scalar_select %p578, %s26, 1
      %s580 = smul.addr %s579, 4
      %s581 = scalar_lea.vmem %s8, %s580
      %p582 = scmp.lt.s32.totalorder %s26, 1
      %s583 = scalar_select %p582, %s26, 1
      %s584 = smul.addr %s583, 8
      %s585 = smul.addr %s584, 8
      %s586 = scalar_lea.vmem %s9, %s585
      %p587 = scmp.lt.s32.totalorder %s26, 1
      %s588 = scalar_select %p587, %s26, 1
      %s589 = smul.addr %s588, 4
      %s590 = scalar_lea.vmem %s10, %s589
      %p591 = scmp.lt.s32.totalorder %s26, 1
      %s592 = scalar_select %p591, %s26, 1
      %p593 = scmp.lt.s32.totalorder %s27, 1
      %s594 = scalar_select %p593, %s27, 1
      %s595 = smul.addr %s594, 28
      %s596 = smul.addr %s592, 56
      %s597 = sadd.s32 %s595, %s596
      %s598 = smul.addr %s597, 8
      %s599 = scalar_lea.vmem %s11, %s598
      %v600 = vld [vmem:[%s543] sm:$0x7f]
      %v601 = vld [vmem:[%s543 + $0x8] sm:$0x7f]
      %v602 = vld [vmem:[%s543 + $0x10] sm:$0x7f]
      %v603 = vld [vmem:[%s543 + $0x18] sm:$0x7f]
      %v604 = vld [vmem:[%s543 + $0x20] sm:$0x7f]
      %v605 = vld [vmem:[%s543 + $0x28] sm:$0x7f]
      %v606 = vld [vmem:[%s543 + $0x30] sm:$0x7f]
      %v607 = vld [vmem:[%s543 + $0x38] sm:$0x7f]
      %v608 = vld [vmem:[%s543 + $0x40] sm:$0x7f]
      %v609 = vld [vmem:[%s543 + $0x48] sm:$0x7f]
      %v610 = vld [vmem:[%s543 + $0x50] sm:$0x7f]
      %v611 = vld [vmem:[%s543 + $0x58] sm:$0x7f]
      %v612 = vld [vmem:[%s543 + $0x60] sm:$0x7f]
      %v613 = vld [vmem:[%s543 + $0x68] sm:$0x7f]
      %v614 = vld [vmem:[%s543 + $0x70] sm:$0x7f]
      %v615 = vld [vmem:[%s543 + $0x78] sm:$0x7f]
      %v616 = vld [vmem:[%s543 + $0x80] sm:$0x7f]
      %v617 = vld [vmem:[%s543 + $0x88] sm:$0x7f]
      %v618 = vld [vmem:[%s543 + $0x90] sm:$0x7f]
      %v619 = vld [vmem:[%s543 + $0x98] sm:$0x7f]
      %v620 = vld [vmem:[%s543 + $0xa0] sm:$0x7f]
      %v621 = vld [vmem:[%s543 + $0xa8] sm:$0x7f]
      %v622 = vld [vmem:[%s543 + $0xb0] sm:$0x7f]
      %v623 = vld [vmem:[%s543 + $0xb8] sm:$0x7f]
      %v624 = vld [vmem:[%s543 + $0xc0] sm:$0x7f]
      %v625 = vld [vmem:[%s543 + $0xc8] sm:$0x7f]
      %v626 = vld [vmem:[%s543 + $0xd0] sm:$0x7f]
      %v627 = vld [vmem:[%s543 + $0xd8] sm:$0x7f]
      %v628 = vld [vmem:[%s548] sm:$0x7f]
      %v629 = vld [vmem:[%s548 + $0x8] sm:$0x7f]
      %v630 = vld [vmem:[%s548 + $0x10] sm:$0x7f]
      %v631 = vld [vmem:[%s548 + $0x18] sm:$0x7f]
      %v632 = vld [vmem:[%s558] sm:$0x7f]
      %v633 = vld [vmem:[%s558 + $0x8] sm:$0x7f]
      %v634 = vld [vmem:[%s558 + $0x10] sm:$0x7f]
      %v635 = vld [vmem:[%s558 + $0x18] sm:$0x7f]
      %v636 = vmul.f32 %v600, %v628
      %v637 = vmul.f32 %v601, %v629
      %v638 = vmul.f32 %v602, %v630
      %v639 = vmul.f32 %v603, %v631
      %v640 = vmul.f32 %v604, %v628
      %v641 = vmul.f32 %v605, %v629
      %v642 = vmul.f32 %v606, %v630
      %v643 = vmul.f32 %v607, %v631
      %v644 = vmul.f32 %v608, %v628
      %v645 = vmul.f32 %v609, %v629
      %v646 = vmul.f32 %v610, %v630
      %v647 = vmul.f32 %v611, %v631
      %v648 = vmul.f32 %v612, %v628
      %v649 = vmul.f32 %v613, %v629
      %v650 = vmul.f32 %v614, %v630
      %v651 = vmul.f32 %v615, %v631
      %v652 = vmul.f32 %v616, %v628
      %v653 = vmul.f32 %v617, %v629
      %v654 = vmul.f32 %v618, %v630
      %v655 = vmul.f32 %v619, %v631
      %v656 = vmul.f32 %v620, %v628
      %v657 = vmul.f32 %v621, %v629
      %v658 = vmul.f32 %v622, %v630
      %v659 = vmul.f32 %v623, %v631
      %v660 = vmul.f32 %v624, %v628
      %v661 = vmul.f32 %v625, %v629
      %v662 = vmul.f32 %v626, %v630
      %v663 = vmul.f32 %v627, %v631
      %vm664 = vcmask 1046528
      %v665 = vsel %vm664, %v636, 0.0
      %v666 = vrot.slane %v665, 4
      %v667 = vadd.f32 %v665, %v666
      %v668 = vrot.slane %v667, 2
      %v669 = vadd.f32 %v667, %v668
      %v670 = vrot.slane %v669, 1
      %v671 = vadd.f32 %v669, %v670
      %v672 = vsel %vm664, %v637, 0.0
      %v673 = vrot.slane %v672, 4
      %v674 = vadd.f32 %v672, %v673
      %v675 = vrot.slane %v674, 2
      %v676 = vadd.f32 %v674, %v675
      %v677 = vrot.slane %v676, 1
      %v678 = vadd.f32 %v676, %v677
      %v679 = vsel %vm664, %v638, 0.0
      %v680 = vrot.slane %v679, 4
      %v681 = vadd.f32 %v679, %v680
      %v682 = vrot.slane %v681, 2
      %v683 = vadd.f32 %v681, %v682
      %v684 = vrot.slane %v683, 1
      %v685 = vadd.f32 %v683, %v684
      %v686 = vsel %vm664, %v639, 0.0
      %v687 = vrot.slane %v686, 4
      %v688 = vadd.f32 %v686, %v687
      %v689 = vrot.slane %v688, 2
      %v690 = vadd.f32 %v688, %v689
      %v691 = vrot.slane %v690, 1
      %v692 = vadd.f32 %v690, %v691
      %v693 = vsel %vm664, %v640, 0.0
      %v694 = vrot.slane %v693, 4
      %v695 = vadd.f32 %v693, %v694
      %v696 = vrot.slane %v695, 2
      %v697 = vadd.f32 %v695, %v696
      %v698 = vrot.slane %v697, 1
      %v699 = vadd.f32 %v697, %v698
      %v700 = vsel %vm664, %v641, 0.0
      %v701 = vrot.slane %v700, 4
      %v702 = vadd.f32 %v700, %v701
      %v703 = vrot.slane %v702, 2
      %v704 = vadd.f32 %v702, %v703
      %v705 = vrot.slane %v704, 1
      %v706 = vadd.f32 %v704, %v705
      %v707 = vsel %vm664, %v642, 0.0
      %v708 = vrot.slane %v707, 4
      %v709 = vadd.f32 %v707, %v708
      %v710 = vrot.slane %v709, 2
      %v711 = vadd.f32 %v709, %v710
      %v712 = vrot.slane %v711, 1
      %v713 = vadd.f32 %v711, %v712
      %v714 = vsel %vm664, %v643, 0.0
      %v715 = vrot.slane %v714, 4
      %v716 = vadd.f32 %v714, %v715
      %v717 = vrot.slane %v716, 2
      %v718 = vadd.f32 %v716, %v717
      %v719 = vrot.slane %v718, 1
      %v720 = vadd.f32 %v718, %v719
      %v721 = vsel %vm664, %v644, 0.0
      %v722 = vrot.slane %v721, 4
      %v723 = vadd.f32 %v721, %v722
      %v724 = vrot.slane %v723, 2
      %v725 = vadd.f32 %v723, %v724
      %v726 = vrot.slane %v725, 1
      %v727 = vadd.f32 %v725, %v726
      %v728 = vsel %vm664, %v645, 0.0
      %v729 = vrot.slane %v728, 4
      %v730 = vadd.f32 %v728, %v729
      %v731 = vrot.slane %v730, 2
      %v732 = vadd.f32 %v730, %v731
      %v733 = vrot.slane %v732, 1
      %v734 = vadd.f32 %v732, %v733
      %v735 = vsel %vm664, %v646, 0.0
      %v736 = vrot.slane %v735, 4
      %v737 = vadd.f32 %v735, %v736
      %v738 = vrot.slane %v737, 2
      %v739 = vadd.f32 %v737, %v738
      %v740 = vrot.slane %v739, 1
      %v741 = vadd.f32 %v739, %v740
      %v742 = vsel %vm664, %v647, 0.0
      %v743 = vrot.slane %v742, 4
      %v744 = vadd.f32 %v742, %v743
      %v745 = vrot.slane %v744, 2
      %v746 = vadd.f32 %v744, %v745
      %v747 = vrot.slane %v746, 1
      %v748 = vadd.f32 %v746, %v747
      %v749 = vsel %vm664, %v648, 0.0
      %v750 = vrot.slane %v749, 4
      %v751 = vadd.f32 %v749, %v750
      %v752 = vrot.slane %v751, 2
      %v753 = vadd.f32 %v751, %v752
      %v754 = vrot.slane %v753, 1
      %v755 = vadd.f32 %v753, %v754
      %v756 = vsel %vm664, %v649, 0.0
      %v757 = vrot.slane %v756, 4
      %v758 = vadd.f32 %v756, %v757
      %v759 = vrot.slane %v758, 2
      %v760 = vadd.f32 %v758, %v759
      %v761 = vrot.slane %v760, 1
      %v762 = vadd.f32 %v760, %v761
      %v763 = vsel %vm664, %v650, 0.0
      %v764 = vrot.slane %v763, 4
      %v765 = vadd.f32 %v763, %v764
      %v766 = vrot.slane %v765, 2
      %v767 = vadd.f32 %v765, %v766
      %v768 = vrot.slane %v767, 1
      %v769 = vadd.f32 %v767, %v768
      %v770 = vsel %vm664, %v651, 0.0
      %v771 = vrot.slane %v770, 4
      %v772 = vadd.f32 %v770, %v771
      %v773 = vrot.slane %v772, 2
      %v774 = vadd.f32 %v772, %v773
      %v775 = vrot.slane %v774, 1
      %v776 = vadd.f32 %v774, %v775
      %v777 = vsel %vm664, %v652, 0.0
      %v778 = vrot.slane %v777, 4
      %v779 = vadd.f32 %v777, %v778
      %v780 = vrot.slane %v779, 2
      %v781 = vadd.f32 %v779, %v780
      %v782 = vrot.slane %v781, 1
      %v783 = vadd.f32 %v781, %v782
      %v784 = vsel %vm664, %v653, 0.0
      %v785 = vrot.slane %v784, 4
      %v786 = vadd.f32 %v784, %v785
      %v787 = vrot.slane %v786, 2
      %v788 = vadd.f32 %v786, %v787
      %v789 = vrot.slane %v788, 1
      %v790 = vadd.f32 %v788, %v789
      %v791 = vsel %vm664, %v654, 0.0
      %v792 = vrot.slane %v791, 4
      %v793 = vadd.f32 %v791, %v792
      %v794 = vrot.slane %v793, 2
      %v795 = vadd.f32 %v793, %v794
      %v796 = vrot.slane %v795, 1
      %v797 = vadd.f32 %v795, %v796
      %v798 = vsel %vm664, %v655, 0.0
      %v799 = vrot.slane %v798, 4
      %v800 = vadd.f32 %v798, %v799
      %v801 = vrot.slane %v800, 2
      %v802 = vadd.f32 %v800, %v801
      %v803 = vrot.slane %v802, 1
      %v804 = vadd.f32 %v802, %v803
      %v805 = vsel %vm664, %v656, 0.0
      %v806 = vrot.slane %v805, 4
      %v807 = vadd.f32 %v805, %v806
      %v808 = vrot.slane %v807, 2
      %v809 = vadd.f32 %v807, %v808
      %v810 = vrot.slane %v809, 1
      %v811 = vadd.f32 %v809, %v810
      %v812 = vsel %vm664, %v657, 0.0
      %v813 = vrot.slane %v812, 4
      %v814 = vadd.f32 %v812, %v813
      %v815 = vrot.slane %v814, 2
      %v816 = vadd.f32 %v814, %v815
      %v817 = vrot.slane %v816, 1
      %v818 = vadd.f32 %v816, %v817
      %v819 = vsel %vm664, %v658, 0.0
      %v820 = vrot.slane %v819, 4
      %v821 = vadd.f32 %v819, %v820
      %v822 = vrot.slane %v821, 2
      %v823 = vadd.f32 %v821, %v822
      %v824 = vrot.slane %v823, 1
      %v825 = vadd.f32 %v823, %v824
      %v826 = vsel %vm664, %v659, 0.0
      %v827 = vrot.slane %v826, 4
      %v828 = vadd.f32 %v826, %v827
      %v829 = vrot.slane %v828, 2
      %v830 = vadd.f32 %v828, %v829
      %v831 = vrot.slane %v830, 1
      %v832 = vadd.f32 %v830, %v831
      %v833 = vsel %vm664, %v660, 0.0
      %v834 = vrot.slane %v833, 4
      %v835 = vadd.f32 %v833, %v834
      %v836 = vrot.slane %v835, 2
      %v837 = vadd.f32 %v835, %v836
      %v838 = vrot.slane %v837, 1
      %v839 = vadd.f32 %v837, %v838
      %v840 = vsel %vm664, %v661, 0.0
      %v841 = vrot.slane %v840, 4
      %v842 = vadd.f32 %v840, %v841
      %v843 = vrot.slane %v842, 2
      %v844 = vadd.f32 %v842, %v843
      %v845 = vrot.slane %v844, 1
      %v846 = vadd.f32 %v844, %v845
      %v847 = vsel %vm664, %v662, 0.0
      %v848 = vrot.slane %v847, 4
      %v849 = vadd.f32 %v847, %v848
      %v850 = vrot.slane %v849, 2
      %v851 = vadd.f32 %v849, %v850
      %v852 = vrot.slane %v851, 1
      %v853 = vadd.f32 %v851, %v852
      %v854 = vsel %vm664, %v663, 0.0
      %v855 = vrot.slane %v854, 4
      %v856 = vadd.f32 %v854, %v855
      %v857 = vrot.slane %v856, 2
      %v858 = vadd.f32 %v856, %v857
      %v859 = vrot.slane %v858, 1
      %v860 = vadd.f32 %v858, %v859
      %v861 = vld [vmem:[%s553] ss:$2 sm:$0xf]
      %v863 = vlaneseq
      %v864 = vshrl.u32 %v863, 7
      %v865 = vsub.s32 0, %v864
      %v866 = vrot.slane %v861, %v865
      %v867 = vlaneseq
      %v868 = vshrl.u32 %v867, 7
      %v869 = vsub.s32 1, %v868
      %v870 = vrot.slane %v861, %v869
      %v871 = vlaneseq
      %v872 = vshrl.u32 %v871, 7
      %v873 = vsub.s32 2, %v872
      %v874 = vrot.slane %v861, %v873
      %v875 = vlaneseq
      %v876 = vshrl.u32 %v875, 7
      %v877 = vsub.s32 3, %v876
      %v878 = vrot.slane %v861, %v877
      %v883 = vmul.f32 %v671, %v866
      %v884 = vmul.f32 %v678, %v870
      %v885 = vmul.f32 %v685, %v874
      %v886 = vmul.f32 %v692, %v878
      %v887 = vmul.f32 %v699, %v866
      %v888 = vmul.f32 %v706, %v870
      %v889 = vmul.f32 %v713, %v874
      %v890 = vmul.f32 %v720, %v878
      %v891 = vmul.f32 %v727, %v866
      %v892 = vmul.f32 %v734, %v870
      %v893 = vmul.f32 %v741, %v874
      %v894 = vmul.f32 %v748, %v878
      %v895 = vmul.f32 %v755, %v866
      %v896 = vmul.f32 %v762, %v870
      %v897 = vmul.f32 %v769, %v874
      %v898 = vmul.f32 %v776, %v878
      %v899 = vmul.f32 %v783, %v866
      %v900 = vmul.f32 %v790, %v870
      %v901 = vmul.f32 %v797, %v874
      %v902 = vmul.f32 %v804, %v878
      %v903 = vmul.f32 %v811, %v866
      %v904 = vmul.f32 %v818, %v870
      %v905 = vmul.f32 %v825, %v874
      %v906 = vmul.f32 %v832, %v878
      %v907 = vmul.f32 %v839, %v866
      %v908 = vmul.f32 %v846, %v870
      %v909 = vmul.f32 %v853, %v874
      %v910 = vmul.f32 %v860, %v878
      %s911 = scalar_lea.vmem %s553, 1
      %v912 = vld [vmem:[%s911] ss:$2 sm:$0xf]
      %v914 = vlaneseq
      %v915 = vshrl.u32 %v914, 7
      %v916 = vsub.s32 0, %v915
      %v917 = vrot.slane %v912, %v916
      %v918 = vlaneseq
      %v919 = vshrl.u32 %v918, 7
      %v920 = vsub.s32 1, %v919
      %v921 = vrot.slane %v912, %v920
      %v922 = vlaneseq
      %v923 = vshrl.u32 %v922, 7
      %v924 = vsub.s32 2, %v923
      %v925 = vrot.slane %v912, %v924
      %v926 = vlaneseq
      %v927 = vshrl.u32 %v926, 7
      %v928 = vsub.s32 3, %v927
      %v929 = vrot.slane %v912, %v928
      %v934 = vadd.f32 %v883, %v917
      %v935 = vadd.f32 %v884, %v921
      %v936 = vadd.f32 %v885, %v925
      %v937 = vadd.f32 %v886, %v929
      %v938 = vadd.f32 %v887, %v917
      %v939 = vadd.f32 %v888, %v921
      %v940 = vadd.f32 %v889, %v925
      %v941 = vadd.f32 %v890, %v929
      %v942 = vadd.f32 %v891, %v917
      %v943 = vadd.f32 %v892, %v921
      %v944 = vadd.f32 %v893, %v925
      %v945 = vadd.f32 %v894, %v929
      %v946 = vadd.f32 %v895, %v917
      %v947 = vadd.f32 %v896, %v921
      %v948 = vadd.f32 %v897, %v925
      %v949 = vadd.f32 %v898, %v929
      %v950 = vadd.f32 %v899, %v917
      %v951 = vadd.f32 %v900, %v921
      %v952 = vadd.f32 %v901, %v925
      %v953 = vadd.f32 %v902, %v929
      %v954 = vadd.f32 %v903, %v917
      %v955 = vadd.f32 %v904, %v921
      %v956 = vadd.f32 %v905, %v925
      %v957 = vadd.f32 %v906, %v929
      %v958 = vadd.f32 %v907, %v917
      %v959 = vadd.f32 %v908, %v921
      %v960 = vadd.f32 %v909, %v925
      %v961 = vadd.f32 %v910, %v929
      %v966 = vcombine.low %v632, %v633
      %v967 = vcombine.high %v632, %v633
      %v968 = vcombine.low %v634, %v635
      %v969 = vcombine.high %v634, %v635
      %v971 = vunpack.c.l.s4 1966171168
      %v972 = vunpack.c.0.s8 %v971
      %v973 = vlaneseq
      %v974 = vshrl.u32 %v973, 7
      %v975 = vsub.s32 %v972, %v974
      %v976 = vrot.slane %v966, %v975
      %v978 = vunpack.c.l.s4 1966171168
      %v979 = vunpack.c.0.s8 %v978
      %v980 = vlaneseq
      %v981 = vshrl.u32 %v980, 7
      %v982 = vsub.s32 %v979, %v981
      %v983 = vrot.slane %v967, %v982
      %v985 = vunpack.c.l.s4 1966171168
      %v986 = vunpack.c.0.s8 %v985
      %v987 = vlaneseq
      %v988 = vshrl.u32 %v987, 7
      %v989 = vsub.s32 %v986, %v988
      %v990 = vrot.slane %v968, %v989
      %v992 = vunpack.c.l.s4 1966171168
      %v993 = vunpack.c.0.s8 %v992
      %v994 = vlaneseq
      %v995 = vshrl.u32 %v994, 7
      %v996 = vsub.s32 %v993, %v995
      %v997 = vrot.slane %v969, %v996
      %v998 = vcombine.low %v976, %v990
      %v999 = vcombine.high %v976, %v990
      %v1000 = vcombine.low %v983, %v997
      %v1001 = vcombine.high %v983, %v997
      %v1003 = vunpack.c.l.s4 1966171168
      %v1004 = vunpack.c.0.s8 %v1003
      %v1005 = vlaneseq
      %v1006 = vshrl.u32 %v1005, 7
      %v1007 = vsub.s32 %v1004, %v1006
      %v1008 = vrot.slane %v998, %v1007
      %v1010 = vunpack.c.l.s4 1966171168
      %v1011 = vunpack.c.0.s8 %v1010
      %v1012 = vlaneseq
      %v1013 = vshrl.u32 %v1012, 7
      %v1014 = vsub.s32 %v1011, %v1013
      %v1015 = vrot.slane %v1000, %v1014
      %v1017 = vunpack.c.l.s4 1966171168
      %v1018 = vunpack.c.0.s8 %v1017
      %v1019 = vlaneseq
      %v1020 = vshrl.u32 %v1019, 7
      %v1021 = vsub.s32 %v1018, %v1020
      %v1022 = vrot.slane %v999, %v1021
      %v1024 = vunpack.c.l.s4 1966171168
      %v1025 = vunpack.c.0.s8 %v1024
      %v1026 = vlaneseq
      %v1027 = vshrl.u32 %v1026, 7
      %v1028 = vsub.s32 %v1025, %v1027
      %v1029 = vrot.slane %v1001, %v1028
      %v1030 = vcombine.high %v1008, %v1008
      %v1031 = vcombine.high %v1015, %v1015
      %v1032 = vcombine.high %v1022, %v1022
      %v1033 = vlaneseq
      %v1034 = vshrl.u32 %v1033, 7
      %v1035 = vsub.s32 0, %v1034
      %v1036 = vrot.slane %v1008, %v1035
      %v1037 = vlaneseq
      %v1038 = vshrl.u32 %v1037, 7
      %v1039 = vsub.s32 1, %v1038
      %v1040 = vrot.slane %v1008, %v1039
      %v1041 = vlaneseq
      %v1042 = vshrl.u32 %v1041, 7
      %v1043 = vsub.s32 2, %v1042
      %v1044 = vrot.slane %v1008, %v1043
      %v1045 = vlaneseq
      %v1046 = vshrl.u32 %v1045, 7
      %v1047 = vsub.s32 3, %v1046
      %v1048 = vrot.slane %v1008, %v1047
      %v1049 = vlaneseq
      %v1050 = vshrl.u32 %v1049, 7
      %v1051 = vsub.s32 0, %v1050
      %v1052 = vrot.slane %v1022, %v1051
      %v1053 = vlaneseq
      %v1054 = vshrl.u32 %v1053, 7
      %v1055 = vsub.s32 1, %v1054
      %v1056 = vrot.slane %v1022, %v1055
      %v1057 = vlaneseq
      %v1058 = vshrl.u32 %v1057, 7
      %v1059 = vsub.s32 2, %v1058
      %v1060 = vrot.slane %v1022, %v1059
      %v1061 = vlaneseq
      %v1062 = vshrl.u32 %v1061, 7
      %v1063 = vsub.s32 3, %v1062
      %v1064 = vrot.slane %v1022, %v1063
      %v1065 = vlaneseq
      %v1066 = vshrl.u32 %v1065, 7
      %v1067 = vsub.s32 0, %v1066
      %v1068 = vrot.slane %v1030, %v1067
      %v1069 = vlaneseq
      %v1070 = vshrl.u32 %v1069, 7
      %v1071 = vsub.s32 1, %v1070
      %v1072 = vrot.slane %v1030, %v1071
      %v1073 = vlaneseq
      %v1074 = vshrl.u32 %v1073, 7
      %v1075 = vsub.s32 2, %v1074
      %v1076 = vrot.slane %v1030, %v1075
      %v1077 = vlaneseq
      %v1078 = vshrl.u32 %v1077, 7
      %v1079 = vsub.s32 3, %v1078
      %v1080 = vrot.slane %v1030, %v1079
      %v1081 = vlaneseq
      %v1082 = vshrl.u32 %v1081, 7
      %v1083 = vsub.s32 0, %v1082
      %v1084 = vrot.slane %v1032, %v1083
      %v1085 = vlaneseq
      %v1086 = vshrl.u32 %v1085, 7
      %v1087 = vsub.s32 1, %v1086
      %v1088 = vrot.slane %v1032, %v1087
      %v1089 = vlaneseq
      %v1090 = vshrl.u32 %v1089, 7
      %v1091 = vsub.s32 2, %v1090
      %v1092 = vrot.slane %v1032, %v1091
      %v1093 = vlaneseq
      %v1094 = vshrl.u32 %v1093, 7
      %v1095 = vsub.s32 3, %v1094
      %v1096 = vrot.slane %v1032, %v1095
      %v1097 = vlaneseq
      %v1098 = vshrl.u32 %v1097, 7
      %v1099 = vsub.s32 0, %v1098
      %v1100 = vrot.slane %v1015, %v1099
      %v1101 = vlaneseq
      %v1102 = vshrl.u32 %v1101, 7
      %v1103 = vsub.s32 1, %v1102
      %v1104 = vrot.slane %v1015, %v1103
      %v1105 = vlaneseq
      %v1106 = vshrl.u32 %v1105, 7
      %v1107 = vsub.s32 2, %v1106
      %v1108 = vrot.slane %v1015, %v1107
      %v1109 = vlaneseq
      %v1110 = vshrl.u32 %v1109, 7
      %v1111 = vsub.s32 3, %v1110
      %v1112 = vrot.slane %v1015, %v1111
      %v1113 = vlaneseq
      %v1114 = vshrl.u32 %v1113, 7
      %v1115 = vsub.s32 0, %v1114
      %v1116 = vrot.slane %v1029, %v1115
      %v1117 = vlaneseq
      %v1118 = vshrl.u32 %v1117, 7
      %v1119 = vsub.s32 1, %v1118
      %v1120 = vrot.slane %v1029, %v1119
      %v1121 = vlaneseq
      %v1122 = vshrl.u32 %v1121, 7
      %v1123 = vsub.s32 2, %v1122
      %v1124 = vrot.slane %v1029, %v1123
      %v1125 = vlaneseq
      %v1126 = vshrl.u32 %v1125, 7
      %v1127 = vsub.s32 3, %v1126
      %v1128 = vrot.slane %v1029, %v1127
      %v1129 = vlaneseq
      %v1130 = vshrl.u32 %v1129, 7
      %v1131 = vsub.s32 0, %v1130
      %v1132 = vrot.slane %v1031, %v1131
      %v1133 = vlaneseq
      %v1134 = vshrl.u32 %v1133, 7
      %v1135 = vsub.s32 1, %v1134
      %v1136 = vrot.slane %v1031, %v1135
      %v1137 = vlaneseq
      %v1138 = vshrl.u32 %v1137, 7
      %v1139 = vsub.s32 2, %v1138
      %v1140 = vrot.slane %v1031, %v1139
      %v1141 = vlaneseq
      %v1142 = vshrl.u32 %v1141, 7
      %v1143 = vsub.s32 3, %v1142
      %v1144 = vrot.slane %v1031, %v1143
      %v1173 = vmul.f32 %v600, %v1036
      %v1174 = vmul.f32 %v601, %v1040
      %v1175 = vmul.f32 %v602, %v1044
      %v1176 = vmul.f32 %v603, %v1048
      %v1177 = vmul.f32 %v604, %v1052
      %v1178 = vmul.f32 %v605, %v1056
      %v1179 = vmul.f32 %v606, %v1060
      %v1180 = vmul.f32 %v607, %v1064
      %v1181 = vmul.f32 %v608, %v1068
      %v1182 = vmul.f32 %v609, %v1072
      %v1183 = vmul.f32 %v610, %v1076
      %v1184 = vmul.f32 %v611, %v1080
      %v1185 = vmul.f32 %v612, %v1084
      %v1186 = vmul.f32 %v613, %v1088
      %v1187 = vmul.f32 %v614, %v1092
      %v1188 = vmul.f32 %v615, %v1096
      %v1189 = vmul.f32 %v616, %v1100
      %v1190 = vmul.f32 %v617, %v1104
      %v1191 = vmul.f32 %v618, %v1108
      %v1192 = vmul.f32 %v619, %v1112
      %v1193 = vmul.f32 %v620, %v1116
      %v1194 = vmul.f32 %v621, %v1120
      %v1195 = vmul.f32 %v622, %v1124
      %v1196 = vmul.f32 %v623, %v1128
      %v1197 = vmul.f32 %v624, %v1132
      %v1198 = vmul.f32 %v625, %v1136
      %v1199 = vmul.f32 %v626, %v1140
      %v1200 = vmul.f32 %v627, %v1144
      %v1201 = vsel %vm664, %v1173, 0.0
      %v1202 = vsel %vm664, %v1177, 0.0
      %v1203 = vadd.f32 %v1201, %v1202
      %v1204 = vsel %vm664, %v1181, 0.0
      %v1205 = vadd.f32 %v1203, %v1204
      %v1206 = vsel %vm664, %v1185, 0.0
      %v1207 = vadd.f32 %v1205, %v1206
      %v1208 = vsel %vm664, %v1189, 0.0
      %v1209 = vadd.f32 %v1207, %v1208
      %v1210 = vsel %vm664, %v1193, 0.0
      %v1211 = vadd.f32 %v1209, %v1210
      %v1212 = vsel %vm664, %v1197, 0.0
      %v1213 = vadd.f32 %v1211, %v1212
      %v1214 = vsel %vm664, %v1174, 0.0
      %v1215 = vsel %vm664, %v1178, 0.0
      %v1216 = vadd.f32 %v1214, %v1215
      %v1217 = vsel %vm664, %v1182, 0.0
      %v1218 = vadd.f32 %v1216, %v1217
      %v1219 = vsel %vm664, %v1186, 0.0
      %v1220 = vadd.f32 %v1218, %v1219
      %v1221 = vsel %vm664, %v1190, 0.0
      %v1222 = vadd.f32 %v1220, %v1221
      %v1223 = vsel %vm664, %v1194, 0.0
      %v1224 = vadd.f32 %v1222, %v1223
      %v1225 = vsel %vm664, %v1198, 0.0
      %v1226 = vadd.f32 %v1224, %v1225
      %v1227 = vsel %vm664, %v1175, 0.0
      %v1228 = vsel %vm664, %v1179, 0.0
      %v1229 = vadd.f32 %v1227, %v1228
      %v1230 = vsel %vm664, %v1183, 0.0
      %v1231 = vadd.f32 %v1229, %v1230
      %v1232 = vsel %vm664, %v1187, 0.0
      %v1233 = vadd.f32 %v1231, %v1232
      %v1234 = vsel %vm664, %v1191, 0.0
      %v1235 = vadd.f32 %v1233, %v1234
      %v1236 = vsel %vm664, %v1195, 0.0
      %v1237 = vadd.f32 %v1235, %v1236
      %v1238 = vsel %vm664, %v1199, 0.0
      %v1239 = vadd.f32 %v1237, %v1238
      %v1240 = vsel %vm664, %v1176, 0.0
      %v1241 = vsel %vm664, %v1180, 0.0
      %v1242 = vadd.f32 %v1240, %v1241
      %v1243 = vsel %vm664, %v1184, 0.0
      %v1244 = vadd.f32 %v1242, %v1243
      %v1245 = vsel %vm664, %v1188, 0.0
      %v1246 = vadd.f32 %v1244, %v1245
      %v1247 = vsel %vm664, %v1192, 0.0
      %v1248 = vadd.f32 %v1246, %v1247
      %v1249 = vsel %vm664, %v1196, 0.0
      %v1250 = vadd.f32 %v1248, %v1249
      %v1251 = vsel %vm664, %v1200, 0.0
      %v1252 = vadd.f32 %v1250, %v1251
      %v1253 = vld [vmem:[%s563] ss:$2 sm:$0xf]
      %v1255 = vlaneseq
      %v1256 = vshrl.u32 %v1255, 7
      %v1257 = vsub.s32 0, %v1256
      %v1258 = vrot.slane %v1253, %v1257
      %v1259 = vlaneseq
      %v1260 = vshrl.u32 %v1259, 7
      %v1261 = vsub.s32 1, %v1260
      %v1262 = vrot.slane %v1253, %v1261
      %v1263 = vlaneseq
      %v1264 = vshrl.u32 %v1263, 7
      %v1265 = vsub.s32 2, %v1264
      %v1266 = vrot.slane %v1253, %v1265
      %v1267 = vlaneseq
      %v1268 = vshrl.u32 %v1267, 7
      %v1269 = vsub.s32 3, %v1268
      %v1270 = vrot.slane %v1253, %v1269
      %v1275 = vmul.f32 %v1213, %v1258
      %v1276 = vmul.f32 %v1226, %v1262
      %v1277 = vmul.f32 %v1239, %v1266
      %v1278 = vmul.f32 %v1252, %v1270
      %s1279 = scalar_lea.vmem %s563, 1
      %v1280 = vld [vmem:[%s1279] ss:$2 sm:$0xf]
      %v1282 = vlaneseq
      %v1283 = vshrl.u32 %v1282, 7
      %v1284 = vsub.s32 0, %v1283
      %v1285 = vrot.slane %v1280, %v1284
      %v1286 = vlaneseq
      %v1287 = vshrl.u32 %v1286, 7
      %v1288 = vsub.s32 1, %v1287
      %v1289 = vrot.slane %v1280, %v1288
      %v1290 = vlaneseq
      %v1291 = vshrl.u32 %v1290, 7
      %v1292 = vsub.s32 2, %v1291
      %v1293 = vrot.slane %v1280, %v1292
      %v1294 = vlaneseq
      %v1295 = vshrl.u32 %v1294, 7
      %v1296 = vsub.s32 3, %v1295
      %v1297 = vrot.slane %v1280, %v1296
      %v1302 = vadd.f32 %v1275, %v1285
      %v1303 = vadd.f32 %v1276, %v1289
      %v1304 = vadd.f32 %v1277, %v1293
      %v1305 = vadd.f32 %v1278, %v1297
      %v1306 = vld [vmem:[%s568] sm:$0xff]
      %v1307 = vld [vmem:[%s568 + $0x8] sm:$0xff]
      %v1308 = vld [vmem:[%s568 + $0x10] sm:$0xff]
      %v1309 = vld [vmem:[%s568 + $0x18] sm:$0xff]
      %v1310 = vld [vmem:[%s568 + $0x20] sm:$0xff]
      %v1311 = vld [vmem:[%s568 + $0x28] sm:$0xff]
      %v1312 = vld [vmem:[%s568 + $0x30] sm:$0xff]
      %v1313 = vld [vmem:[%s568 + $0x38] sm:$0xff]
      %v1314 = vld [vmem:[%s568 + $0x40] sm:$0xff]
      %v1315 = vld [vmem:[%s568 + $0x48] sm:$0xff]
      %v1316 = vld [vmem:[%s568 + $0x50] sm:$0xff]
      %v1317 = vld [vmem:[%s568 + $0x58] sm:$0xff]
      %v1318 = vld [vmem:[%s568 + $0x60] sm:$0xff]
      %v1319 = vld [vmem:[%s568 + $0x68] sm:$0xff]
      %v1320 = vld [vmem:[%s568 + $0x70] sm:$0xff]
      %v1321 = vld [vmem:[%s568 + $0x78] sm:$0xff]
      %v1322 = vld [vmem:[%s568 + $0x80] sm:$0xff]
      %v1323 = vld [vmem:[%s568 + $0x88] sm:$0xff]
      %v1324 = vld [vmem:[%s568 + $0x90] sm:$0xff]
      %v1325 = vld [vmem:[%s568 + $0x98] sm:$0xff]
      %v1326 = vld [vmem:[%s568 + $0xa0] sm:$0xff]
      %v1327 = vld [vmem:[%s568 + $0xa8] sm:$0xff]
      %v1328 = vld [vmem:[%s568 + $0xb0] sm:$0xff]
      %v1329 = vld [vmem:[%s568 + $0xb8] sm:$0xff]
      %v1330 = vld [vmem:[%s568 + $0xc0] sm:$0xff]
      %v1331 = vld [vmem:[%s568 + $0xc8] sm:$0xff]
      %v1332 = vld [vmem:[%s568 + $0xd0] sm:$0xff]
      %v1333 = vld [vmem:[%s568 + $0xd8] sm:$0xff]
      %v1334 = vld [vmem:[%s568 + $0xe0] sm:$0xff]
      %v1335 = vld [vmem:[%s568 + $0xe8] sm:$0xff]
      %v1336 = vld [vmem:[%s568 + $0xf0] sm:$0xff]
      %v1337 = vld [vmem:[%s568 + $0xf8] sm:$0xff]
      %v1338 = vld [vmem:[%s568 + $0x100] sm:$0xff]
      %v1339 = vld [vmem:[%s568 + $0x108] sm:$0xff]
      %v1340 = vld [vmem:[%s568 + $0x110] sm:$0xff]
      %v1341 = vld [vmem:[%s568 + $0x118] sm:$0xff]
      %v1342 = vld [vmem:[%s568 + $0x120] sm:$0xff]
      %v1343 = vld [vmem:[%s568 + $0x128] sm:$0xff]
      %v1344 = vld [vmem:[%s568 + $0x130] sm:$0xff]
      %v1345 = vld [vmem:[%s568 + $0x138] sm:$0xff]
      %v1346 = vld [vmem:[%s568 + $0x140] sm:$0xff]
      %v1347 = vld [vmem:[%s568 + $0x148] sm:$0xff]
      %v1348 = vld [vmem:[%s568 + $0x150] sm:$0xff]
      %v1349 = vld [vmem:[%s568 + $0x158] sm:$0xff]
      %v1350 = vld [vmem:[%s568 + $0x160] sm:$0xff]
      %v1351 = vld [vmem:[%s568 + $0x168] sm:$0xff]
      %v1352 = vld [vmem:[%s568 + $0x170] sm:$0xff]
      %v1353 = vld [vmem:[%s568 + $0x178] sm:$0xff]
      %v1354 = vld [vmem:[%s568 + $0x180] sm:$0xff]
      %v1355 = vld [vmem:[%s568 + $0x188] sm:$0xff]
      %v1356 = vld [vmem:[%s568 + $0x190] sm:$0xff]
      %v1357 = vld [vmem:[%s568 + $0x198] sm:$0xff]
      %v1358 = vld [vmem:[%s568 + $0x1a0] sm:$0xff]
      %v1359 = vld [vmem:[%s568 + $0x1a8] sm:$0xff]
      %v1360 = vld [vmem:[%s568 + $0x1b0] sm:$0xff]
      %v1361 = vld [vmem:[%s568 + $0x1b8] sm:$0xff]
      %v1362 = vld [vmem:[%s568 + $0x1c0] sm:$0xff]
      %v1363 = vld [vmem:[%s568 + $0x1c8] sm:$0xff]
      %v1364 = vld [vmem:[%s568 + $0x1d0] sm:$0xff]
      %v1365 = vld [vmem:[%s568 + $0x1d8] sm:$0xff]
      %v1366 = vld [vmem:[%s568 + $0x1e0] sm:$0xff]
      %v1367 = vld [vmem:[%s568 + $0x1e8] sm:$0xff]
      %v1368 = vld [vmem:[%s568 + $0x1f0] sm:$0xff]
      %v1369 = vld [vmem:[%s568 + $0x1f8] sm:$0xff]
      %v1370 = vld [vmem:[%s572] sm:$0x1]
      %v1371 = vlaneseq
      %v1372 = vshrl.u32 %v1371, 7
      %v1373 = vsub.s32 0, %v1372
      %v1374 = vrot.slane %v1370, %v1373
      %v1403 = vrot.slane %v938, 7
      %vm1404 = vcmask 1041409
      %v1405 = vsel %vm1404, %v1403, %v934
      %v1406 = vrot.slane %v942, 6
      %vm1407 = vcmask 1042434
      %v1408 = vsel %vm1407, %v1406, %v1405
      %v1409 = vrot.slane %v946, 5
      %vm1410 = vcmask 1043459
      %v1411 = vsel %vm1410, %v1409, %v1408
      %v1412 = vrot.slane %v950, 4
      %vm1413 = vcmask 1044484
      %v1414 = vsel %vm1413, %v1412, %v1411
      %v1415 = vrot.slane %v954, 3
      %vm1416 = vcmask 1045509
      %v1417 = vsel %vm1416, %v1415, %v1414
      %v1418 = vrot.slane %v958, 2
      %vm1419 = vcmask 1046534
      %v1420 = vsel %vm1419, %v1418, %v1417
      %v1421 = vrot.slane %v939, 7
      %v1422 = vsel %vm1404, %v1421, %v935
      %v1423 = vrot.slane %v943, 6
      %v1424 = vsel %vm1407, %v1423, %v1422
      %v1425 = vrot.slane %v947, 5
      %v1426 = vsel %vm1410, %v1425, %v1424
      %v1427 = vrot.slane %v951, 4
      %v1428 = vsel %vm1413, %v1427, %v1426
      %v1429 = vrot.slane %v955, 3
      %v1430 = vsel %vm1416, %v1429, %v1428
      %v1431 = vrot.slane %v959, 2
      %v1432 = vsel %vm1419, %v1431, %v1430
      %v1433 = vrot.slane %v940, 7
      %v1434 = vsel %vm1404, %v1433, %v936
      %v1435 = vrot.slane %v944, 6
      %v1436 = vsel %vm1407, %v1435, %v1434
      %v1437 = vrot.slane %v948, 5
      %v1438 = vsel %vm1410, %v1437, %v1436
      %v1439 = vrot.slane %v952, 4
      %v1440 = vsel %vm1413, %v1439, %v1438
      %v1441 = vrot.slane %v956, 3
      %v1442 = vsel %vm1416, %v1441, %v1440
      %v1443 = vrot.slane %v960, 2
      %v1444 = vsel %vm1419, %v1443, %v1442
      %v1445 = vrot.slane %v941, 7
      %v1446 = vsel %vm1404, %v1445, %v937
      %v1447 = vrot.slane %v945, 6
      %v1448 = vsel %vm1407, %v1447, %v1446
      %v1449 = vrot.slane %v949, 5
      %v1450 = vsel %vm1410, %v1449, %v1448
      %v1451 = vrot.slane %v953, 4
      %v1452 = vsel %vm1413, %v1451, %v1450
      %v1453 = vrot.slane %v957, 3
      %v1454 = vsel %vm1416, %v1453, %v1452
      %v1455 = vrot.slane %v961, 2
      %v1456 = vsel %vm1419, %v1455, %v1454
      %1461 = vmatprep.subr.mxu0 0.0
      %1462 = vmatpush1.msra.mxu0 %v1306
      %1463 = vmatprep.subr.mxu0 0.0
      %1464 = vmatpush1.msra.mxu0 %v1307
      %1465 = vmatprep.subr.mxu0 0.0
      %1466 = vmatpush1.msra.mxu0 %v1308
      %1467 = vmatprep.subr.mxu0 0.0
      %1468 = vmatpush1.msra.mxu0 %v1309
      %1469 = vmatprep.subr.mxu0 0.0
      %1470 = vmatpush1.msra.mxu0 %v1310
      %1471 = vmatprep.subr.mxu0 0.0
      %1472 = vmatpush1.msra.mxu0 %v1311
      %1473 = vmatprep.subr.mxu0 0.0
      %1474 = vmatpush1.msra.mxu0 %v1312
      %1475 = vmatprep.subr.mxu0 0.0
      %1476 = vmatpush1.msra.mxu0 %v1313
      %1477 = vmatprep.subr.mxu0 0.0
      %1478 = vmatpush1.msra.mxu0 %v1314
      %1479 = vmatprep.subr.mxu0 0.0
      %1480 = vmatpush1.msra.mxu0 %v1315
      %1481 = vmatprep.subr.mxu0 0.0
      %1482 = vmatpush1.msra.mxu0 %v1316
      %1483 = vmatprep.subr.mxu0 0.0
      %1484 = vmatpush1.msra.mxu0 %v1317
      %1485 = vmatprep.subr.mxu0 0.0
      %1486 = vmatpush1.msra.mxu0 %v1318
      %1487 = vmatprep.subr.mxu0 0.0
      %1488 = vmatpush1.msra.mxu0 %v1319
      %1489 = vmatprep.subr.mxu0 0.0
      %1490 = vmatpush1.msra.mxu0 %v1320
      %1491 = vmatprep.subr.mxu0 0.0
      %1492 = vmatpush1.msra.mxu0 %v1321
      %1493 = vmatprep.subr.mxu0 0.0
      %1494 = vmatpush1.msra.mxu0 %v1322
      %1495 = vmatprep.subr.mxu0 0.0
      %1496 = vmatpush1.msra.mxu0 %v1323
      %1497 = vmatprep.subr.mxu0 0.0
      %1498 = vmatpush1.msra.mxu0 %v1324
      %1499 = vmatprep.subr.mxu0 0.0
      %1500 = vmatpush1.msra.mxu0 %v1325
      %1501 = vmatprep.subr.mxu0 0.0
      %1502 = vmatpush1.msra.mxu0 %v1326
      %1503 = vmatprep.subr.mxu0 0.0
      %1504 = vmatpush1.msra.mxu0 %v1327
      %1505 = vmatprep.subr.mxu0 0.0
      %1506 = vmatpush1.msra.mxu0 %v1328
      %1507 = vmatprep.subr.mxu0 0.0
      %1508 = vmatpush1.msra.mxu0 %v1329
      %1509 = vmatprep.subr.mxu0 0.0
      %1510 = vmatpush1.msra.mxu0 %v1330
      %1511 = vmatprep.subr.mxu0 0.0
      %1512 = vmatpush1.msra.mxu0 %v1331
      %1513 = vmatprep.subr.mxu0 0.0
      %1514 = vmatpush1.msra.mxu0 %v1332
      %1515 = vmatprep.subr.mxu0 0.0
      %1516 = vmatpush1.msra.mxu0 %v1333
      %1517 = vmatprep.subr.mxu0 0.0
      %1518 = vmatpush1.msra.mxu0 %v1334
      %1519 = vmatprep.subr.mxu0 0.0
      %1520 = vmatpush1.msra.mxu0 %v1335
      %1521 = vmatprep.subr.mxu0 0.0
      %1522 = vmatpush1.msra.mxu0 %v1336
      %1523 = vmatprep.subr.mxu0 0.0
      %1524 = vmatpush1.msra.mxu0 %v1337
      %1525 = vmatprep.mubr.f32.mxu0 %v1432
      %1526 = vmatmul.mubr.f32.gmra.mrb[0].mxu0 %v1420
      %v1527 = vpop.f32.mrb[0].mxu0
      %v1528 = vadd.f32 %v1374, %v1527
      %v1529 = vpop.f32.mrb[0].mxu0
      %1530 = vdwg.mxu0
      %1531 = vmatprep.subr.mxu0 0.0
      %1532 = vmatpush1.msra.mxu0 %v1338
      %1533 = vmatprep.subr.mxu0 0.0
      %1534 = vmatpush1.msra.mxu0 %v1339
      %1535 = vmatprep.subr.mxu0 0.0
      %1536 = vmatpush1.msra.mxu0 %v1340
      %1537 = vmatprep.subr.mxu0 0.0
      %1538 = vmatpush1.msra.mxu0 %v1341
      %1539 = vmatprep.subr.mxu0 0.0
      %1540 = vmatpush1.msra.mxu0 %v1342
      %1541 = vmatprep.subr.mxu0 0.0
      %1542 = vmatpush1.msra.mxu0 %v1343
      %1543 = vmatprep.subr.mxu0 0.0
      %1544 = vmatpush1.msra.mxu0 %v1344
      %1545 = vmatprep.subr.mxu0 0.0
      %1546 = vmatpush1.msra.mxu0 %v1345
      %1547 = vmatprep.subr.mxu0 0.0
      %1548 = vmatpush1.msra.mxu0 %v1346
      %1549 = vmatprep.subr.mxu0 0.0
      %1550 = vmatpush1.msra.mxu0 %v1347
      %1551 = vmatprep.subr.mxu0 0.0
      %1552 = vmatpush1.msra.mxu0 %v1348
      %1553 = vmatprep.subr.mxu0 0.0
      %1554 = vmatpush1.msra.mxu0 %v1349
      %1555 = vmatprep.subr.mxu0 0.0
      %1556 = vmatpush1.msra.mxu0 %v1350
      %1557 = vmatprep.subr.mxu0 0.0
      %1558 = vmatpush1.msra.mxu0 %v1351
      %1559 = vmatprep.subr.mxu0 0.0
      %1560 = vmatpush1.msra.mxu0 %v1352
      %1561 = vmatprep.subr.mxu0 0.0
      %1562 = vmatpush1.msra.mxu0 %v1353
      %1563 = vmatprep.subr.mxu0 0.0
      %1564 = vmatpush1.msra.mxu0 %v1354
      %1565 = vmatprep.subr.mxu0 0.0
      %1566 = vmatpush1.msra.mxu0 %v1355
      %1567 = vmatprep.subr.mxu0 0.0
      %1568 = vmatpush1.msra.mxu0 %v1356
      %1569 = vmatprep.subr.mxu0 0.0
      %1570 = vmatpush1.msra.mxu0 %v1357
      %1571 = vmatprep.subr.mxu0 0.0
      %1572 = vmatpush1.msra.mxu0 %v1358
      %1573 = vmatprep.subr.mxu0 0.0
      %1574 = vmatpush1.msra.mxu0 %v1359
      %1575 = vmatprep.subr.mxu0 0.0
      %1576 = vmatpush1.msra.mxu0 %v1360
      %1577 = vmatprep.subr.mxu0 0.0
      %1578 = vmatpush1.msra.mxu0 %v1361
      %1579 = vmatprep.subr.mxu0 0.0
      %1580 = vmatpush1.msra.mxu0 %v1362
      %1581 = vmatprep.subr.mxu0 0.0
      %1582 = vmatpush1.msra.mxu0 %v1363
      %1583 = vmatprep.subr.mxu0 0.0
      %1584 = vmatpush1.msra.mxu0 %v1364
      %1585 = vmatprep.subr.mxu0 0.0
      %1586 = vmatpush1.msra.mxu0 %v1365
      %1587 = vmatprep.subr.mxu0 0.0
      %1588 = vmatpush1.msra.mxu0 %v1366
      %1589 = vmatprep.subr.mxu0 0.0
      %1590 = vmatpush1.msra.mxu0 %v1367
      %1591 = vmatprep.subr.mxu0 0.0
      %1592 = vmatpush1.msra.mxu0 %v1368
      %1593 = vmatprep.subr.mxu0 0.0
      %1594 = vmatpush1.msra.mxu0 %v1369
      %1595 = vmatprep.mubr.f32.mxu0 %v1456
      %1596 = vmatmul.mubr.f32.gmra.mrb[0].mxu0 %v1444
      %v1597 = vpop.f32.mrb[0].mxu0
      %v1598 = vadd.f32 %v1528, %v1597
      %v1599 = vpop.f32.mrb[0].mxu0
      %1600 = vdwg.mxu0
      %v1601 = vld [vmem:[%s572 + $0x1] sm:$0x1]
      %v1602 = vlaneseq
      %v1603 = vshrl.u32 %v1602, 7
      %v1604 = vsub.s32 0, %v1603
      %v1605 = vrot.slane %v1601, %v1604
      %v1606 = vmul.f32 %v1598, %v1605
      %v1607 = vld [vmem:[%s572 + $0x2] sm:$0x1]
      %v1608 = vlaneseq
      %v1609 = vshrl.u32 %v1608, 7
      %v1610 = vsub.s32 0, %v1609
      %v1611 = vrot.slane %v1607, %v1610
      %v1612 = vadd.f32 %v1606, %v1611
      %v1613 = vadd.f32 %v1612, 3.0
      %v1614 = vmax.f32 %v1613, 0.0
      %v1615 = vmin.f32 %v1614, 6.0
      %v1616 = vrcp.pop 6.0
      %v1617 = vmul.f32 %v1615, %v1616
      %v1618 = vmul.f32 %v1612, %v1617
      %1619 = vmatprep.subr.mxu0 0.0
      %1620 = vmatpush1.msra.mxu0 %v1306
      %1621 = vmatprep.subr.mxu0 0.0
      %1622 = vmatpush1.msra.mxu0 %v1307
      %1623 = vmatprep.subr.mxu0 0.0
      %1624 = vmatpush1.msra.mxu0 %v1308
      %1625 = vmatprep.subr.mxu0 0.0
      %1626 = vmatpush1.msra.mxu0 %v1309
      %1627 = vmatprep.subr.mxu0 0.0
      %1628 = vmatpush1.msra.mxu0 %v1310
      %1629 = vmatprep.subr.mxu0 0.0
      %1630 = vmatpush1.msra.mxu0 %v1311
      %1631 = vmatprep.subr.mxu0 0.0
      %1632 = vmatpush1.msra.mxu0 %v1312
      %1633 = vmatprep.subr.mxu0 0.0
      %1634 = vmatpush1.msra.mxu0 %v1313
      %1635 = vmatprep.subr.mxu0 0.0
      %1636 = vmatpush1.msra.mxu0 %v1314
      %1637 = vmatprep.subr.mxu0 0.0
      %1638 = vmatpush1.msra.mxu0 %v1315
      %1639 = vmatprep.subr.mxu0 0.0
      %1640 = vmatpush1.msra.mxu0 %v1316
      %1641 = vmatprep.subr.mxu0 0.0
      %1642 = vmatpush1.msra.mxu0 %v1317
      %1643 = vmatprep.subr.mxu0 0.0
      %1644 = vmatpush1.msra.mxu0 %v1318
      %1645 = vmatprep.subr.mxu0 0.0
      %1646 = vmatpush1.msra.mxu0 %v1319
      %1647 = vmatprep.subr.mxu0 0.0
      %1648 = vmatpush1.msra.mxu0 %v1320
      %1649 = vmatprep.subr.mxu0 0.0
      %1650 = vmatpush1.msra.mxu0 %v1321
      %1651 = vmatprep.subr.mxu0 0.0
      %1652 = vmatpush1.msra.mxu0 %v1322
      %1653 = vmatprep.subr.mxu0 0.0
      %1654 = vmatpush1.msra.mxu0 %v1323
      %1655 = vmatprep.subr.mxu0 0.0
      %1656 = vmatpush1.msra.mxu0 %v1324
      %1657 = vmatprep.subr.mxu0 0.0
      %1658 = vmatpush1.msra.mxu0 %v1325
      %1659 = vmatprep.subr.mxu0 0.0
      %1660 = vmatpush1.msra.mxu0 %v1326
      %1661 = vmatprep.subr.mxu0 0.0
      %1662 = vmatpush1.msra.mxu0 %v1327
      %1663 = vmatprep.subr.mxu0 0.0
      %1664 = vmatpush1.msra.mxu0 %v1328
      %1665 = vmatprep.subr.mxu0 0.0
      %1666 = vmatpush1.msra.mxu0 %v1329
      %1667 = vmatprep.subr.mxu0 0.0
      %1668 = vmatpush1.msra.mxu0 %v1330
      %1669 = vmatprep.subr.mxu0 0.0
      %1670 = vmatpush1.msra.mxu0 %v1331
      %1671 = vmatprep.subr.mxu0 0.0
      %1672 = vmatpush1.msra.mxu0 %v1332
      %1673 = vmatprep.subr.mxu0 0.0
      %1674 = vmatpush1.msra.mxu0 %v1333
      %1675 = vmatprep.subr.mxu0 0.0
      %1676 = vmatpush1.msra.mxu0 %v1334
      %1677 = vmatprep.subr.mxu0 0.0
      %1678 = vmatpush1.msra.mxu0 %v1335
      %1679 = vmatprep.subr.mxu0 0.0
      %1680 = vmatpush1.msra.mxu0 %v1336
      %1681 = vmatprep.subr.mxu0 0.0
      %1682 = vmatpush1.msra.mxu0 %v1337
      %1683 = vmatprep.mubr.f32.mxu0 %v1303
      %1684 = vmatmul.mubr.f32.gmra.mrb[0].mxu0 %v1302
      %v1685 = vpop.f32.mrb[0].mxu0
      %v1686 = vadd.f32 %v1374, %v1685
      %v1687 = vpop.f32.mrb[0].mxu0
      %1688 = vdwg.mxu0
      %1689 = vmatprep.subr.mxu0 0.0
      %1690 = vmatpush1.msra.mxu0 %v1338
      %1691 = vmatprep.subr.mxu0 0.0
      %1692 = vmatpush1.msra.mxu0 %v1339
      %1693 = vmatprep.subr.mxu0 0.0
      %1694 = vmatpush1.msra.mxu0 %v1340
      %1695 = vmatprep.subr.mxu0 0.0
      %1696 = vmatpush1.msra.mxu0 %v1341
      %1697 = vmatprep.subr.mxu0 0.0
      %1698 = vmatpush1.msra.mxu0 %v1342
      %1699 = vmatprep.subr.mxu0 0.0
      %1700 = vmatpush1.msra.mxu0 %v1343
      %1701 = vmatprep.subr.mxu0 0.0
      %1702 = vmatpush1.msra.mxu0 %v1344
      %1703 = vmatprep.subr.mxu0 0.0
      %1704 = vmatpush1.msra.mxu0 %v1345
      %1705 = vmatprep.subr.mxu0 0.0
      %1706 = vmatpush1.msra.mxu0 %v1346
      %1707 = vmatprep.subr.mxu0 0.0
      %1708 = vmatpush1.msra.mxu0 %v1347
      %1709 = vmatprep.subr.mxu0 0.0
      %1710 = vmatpush1.msra.mxu0 %v1348
      %1711 = vmatprep.subr.mxu0 0.0
      %1712 = vmatpush1.msra.mxu0 %v1349
      %1713 = vmatprep.subr.mxu0 0.0
      %1714 = vmatpush1.msra.mxu0 %v1350
      %1715 = vmatprep.subr.mxu0 0.0
      %1716 = vmatpush1.msra.mxu0 %v1351
      %1717 = vmatprep.subr.mxu0 0.0
      %1718 = vmatpush1.msra.mxu0 %v1352
      %1719 = vmatprep.subr.mxu0 0.0
      %1720 = vmatpush1.msra.mxu0 %v1353
      %1721 = vmatprep.subr.mxu0 0.0
      %1722 = vmatpush1.msra.mxu0 %v1354
      %1723 = vmatprep.subr.mxu0 0.0
      %1724 = vmatpush1.msra.mxu0 %v1355
      %1725 = vmatprep.subr.mxu0 0.0
      %1726 = vmatpush1.msra.mxu0 %v1356
      %1727 = vmatprep.subr.mxu0 0.0
      %1728 = vmatpush1.msra.mxu0 %v1357
      %1729 = vmatprep.subr.mxu0 0.0
      %1730 = vmatpush1.msra.mxu0 %v1358
      %1731 = vmatprep.subr.mxu0 0.0
      %1732 = vmatpush1.msra.mxu0 %v1359
      %1733 = vmatprep.subr.mxu0 0.0
      %1734 = vmatpush1.msra.mxu0 %v1360
      %1735 = vmatprep.subr.mxu0 0.0
      %1736 = vmatpush1.msra.mxu0 %v1361
      %1737 = vmatprep.subr.mxu0 0.0
      %1738 = vmatpush1.msra.mxu0 %v1362
      %1739 = vmatprep.subr.mxu0 0.0
      %1740 = vmatpush1.msra.mxu0 %v1363
      %1741 = vmatprep.subr.mxu0 0.0
      %1742 = vmatpush1.msra.mxu0 %v1364
      %1743 = vmatprep.subr.mxu0 0.0
      %1744 = vmatpush1.msra.mxu0 %v1365
      %1745 = vmatprep.subr.mxu0 0.0
      %1746 = vmatpush1.msra.mxu0 %v1366
      %1747 = vmatprep.subr.mxu0 0.0
      %1748 = vmatpush1.msra.mxu0 %v1367
      %1749 = vmatprep.subr.mxu0 0.0
      %1750 = vmatpush1.msra.mxu0 %v1368
      %1751 = vmatprep.subr.mxu0 0.0
      %1752 = vmatpush1.msra.mxu0 %v1369
      %1753 = vmatprep.mubr.f32.mxu0 %v1305
      %1754 = vmatmul.mubr.f32.gmra.mrb[0].mxu0 %v1304
      %v1755 = vpop.f32.mrb[0].mxu0
      %v1756 = vadd.f32 %v1686, %v1755
      %v1757 = vpop.f32.mrb[0].mxu0
      %1758 = vdwg.mxu0
      %v1759 = vmul.f32 %v1756, %v1605
      %v1760 = vadd.f32 %v1759, %v1611
      %v1761 = vadd.f32 %v1760, 3.0
      %v1762 = vmax.f32 %v1761, 0.0
      %v1763 = vmin.f32 %v1762, 6.0
      %v1764 = vmul.f32 %v1763, %v1616
      %v1765 = vmul.f32 %v1760, %v1764
      %v1766 = vld [vmem:[%s577] sm:$0xff]
      %v1767 = vld [vmem:[%s577 + $0x8] sm:$0xff]
      %v1768 = vld [vmem:[%s577 + $0x10] sm:$0xff]
      %v1769 = vld [vmem:[%s577 + $0x18] sm:$0xff]
      %v1770 = vld [vmem:[%s577 + $0x20] sm:$0xff]
      %v1771 = vld [vmem:[%s577 + $0x28] sm:$0xff]
      %v1772 = vld [vmem:[%s577 + $0x30] sm:$0xff]
      %v1773 = vld [vmem:[%s577 + $0x38] sm:$0xff]
      %v1774 = vld [vmem:[%s581] sm:$0xf]
      %v1776 = vlaneseq
      %v1777 = vshrl.u32 %v1776, 7
      %v1778 = vsub.s32 0, %v1777
      %v1779 = vrot.slane %v1774, %v1778
      %v1780 = vlaneseq
      %v1781 = vshrl.u32 %v1780, 7
      %v1782 = vsub.s32 1, %v1781
      %v1783 = vrot.slane %v1774, %v1782
      %v1784 = vlaneseq
      %v1785 = vshrl.u32 %v1784, 7
      %v1786 = vsub.s32 2, %v1785
      %v1787 = vrot.slane %v1774, %v1786
      %v1788 = vlaneseq
      %v1789 = vshrl.u32 %v1788, 7
      %v1790 = vsub.s32 3, %v1789
      %v1791 = vrot.slane %v1774, %v1790
      %vm1796 = vcmask 130048
      %v1798 = vsel %vm1796, %v1618, 0
      %1800 = vmatprep.subr.mxu0 %v1767
      %1801 = vmatpush1.msra.mxu0 %v1766
      %1802 = vmatprep.subr.mxu0 %v1771
      %1803 = vmatpush1.msra.mxu0 %v1770
      %1804 = vmatprep.subr.mxu0 0.0
      %1805 = vmatpush1.msra.mxu0 0.0
      %1806 = vmatprep.subr.mxu0 0.0
      %1807 = vmatpush1.msra.mxu0 0.0
      %1808 = vmatprep.subr.mxu0 0.0
      %1809 = vmatpush1.msra.mxu0 0.0
      %1810 = vmatprep.subr.mxu0 0.0
      %1811 = vmatpush1.msra.mxu0 0.0
      %1812 = vmatprep.subr.mxu0 0.0
      %1813 = vmatpush1.msra.mxu0 0.0
      %1814 = vmatprep.subr.mxu0 0.0
      %1815 = vmatpush1.msra.mxu0 0.0
      %1816 = vmatprep.subr.mxu0 0.0
      %1817 = vmatpush1.msra.mxu0 0.0
      %1818 = vmatprep.subr.mxu0 0.0
      %1819 = vmatpush1.msra.mxu0 0.0
      %1820 = vmatprep.subr.mxu0 0.0
      %1821 = vmatpush1.msra.mxu0 0.0
      %1822 = vmatprep.subr.mxu0 0.0
      %1823 = vmatpush1.msra.mxu0 0.0
      %1824 = vmatprep.subr.mxu0 0.0
      %1825 = vmatpush1.msra.mxu0 0.0
      %1826 = vmatprep.subr.mxu0 0.0
      %1827 = vmatpush1.msra.mxu0 0.0
      %1828 = vmatprep.subr.mxu0 0.0
      %1829 = vmatpush1.msra.mxu0 0.0
      %1830 = vmatprep.subr.mxu0 0.0
      %1831 = vmatpush1.msra.mxu0 0.0
      %1832 = vmatprep.subr.mxu0 0.0
      %1833 = vmatpush1.msra.mxu0 0.0
      %1834 = vmatprep.subr.mxu0 0.0
      %1835 = vmatpush1.msra.mxu0 0.0
      %1836 = vmatprep.subr.mxu0 0.0
      %1837 = vmatpush1.msra.mxu0 0.0
      %1838 = vmatprep.subr.mxu0 0.0
      %1839 = vmatpush1.msra.mxu0 0.0
      %1840 = vmatprep.subr.mxu0 0.0
      %1841 = vmatpush1.msra.mxu0 0.0
      %1842 = vmatprep.subr.mxu0 0.0
      %1843 = vmatpush1.msra.mxu0 0.0
      %1844 = vmatprep.subr.mxu0 0.0
      %1845 = vmatpush1.msra.mxu0 0.0
      %1846 = vmatprep.subr.mxu0 0.0
      %1847 = vmatpush1.msra.mxu0 0.0
      %1848 = vmatprep.subr.mxu0 0.0
      %1849 = vmatpush1.msra.mxu0 0.0
      %1850 = vmatprep.subr.mxu0 0.0
      %1851 = vmatpush1.msra.mxu0 0.0
      %1852 = vmatprep.subr.mxu0 0.0
      %1853 = vmatpush1.msra.mxu0 0.0
      %1854 = vmatprep.subr.mxu0 0.0
      %1855 = vmatpush1.msra.mxu0 0.0
      %1856 = vmatprep.subr.mxu0 0.0
      %1857 = vmatpush1.msra.mxu0 0.0
      %1858 = vmatprep.subr.mxu0 0.0
      %1859 = vmatpush1.msra.mxu0 0.0
      %1860 = vmatprep.subr.mxu0 0.0
      %1861 = vmatpush1.msra.mxu0 0.0
      %1862 = vmatprep.subr.mxu0 0.0
      %1863 = vmatpush1.msra.mxu0 0.0
      %1864 = vmatprep.mubr.f32.mxu0 0.0
      %1865 = vmatmul.mubr.f32.gmra.mrb[0].mxu0 %v1798
      %v1866 = vpop.f32.mrb[0].mxu0
      %v1867 = vadd.f32 %v1779, %v1866
      %v1868 = vpop.f32.mrb[0].mxu0
      %v1869 = vadd.f32 %v1783, %v1868
      %1870 = vdwg.mxu0
      %1871 = vmatprep.subr.mxu0 %v1769
      %1872 = vmatpush1.msra.mxu0 %v1768
      %1873 = vmatprep.subr.mxu0 %v1773
      %1874 = vmatpush1.msra.mxu0 %v1772
      %1875 = vmatprep.subr.mxu0 0.0
      %1876 = vmatpush1.msra.mxu0 0.0
      %1877 = vmatprep.subr.mxu0 0.0
      %1878 = vmatpush1.msra.mxu0 0.0
      %1879 = vmatprep.subr.mxu0 0.0
      %1880 = vmatpush1.msra.mxu0 0.0
      %1881 = vmatprep.subr.mxu0 0.0
      %1882 = vmatpush1.msra.mxu0 0.0
      %1883 = vmatprep.subr.mxu0 0.0
      %1884 = vmatpush1.msra.mxu0 0.0
      %1885 = vmatprep.subr.mxu0 0.0
      %1886 = vmatpush1.msra.mxu0 0.0
      %1887 = vmatprep.subr.mxu0 0.0
      %1888 = vmatpush1.msra.mxu0 0.0
      %1889 = vmatprep.subr.mxu0 0.0
      %1890 = vmatpush1.msra.mxu0 0.0
      %1891 = vmatprep.subr.mxu0 0.0
      %1892 = vmatpush1.msra.mxu0 0.0
      %1893 = vmatprep.subr.mxu0 0.0
      %1894 = vmatpush1.msra.mxu0 0.0
      %1895 = vmatprep.subr.mxu0 0.0
      %1896 = vmatpush1.msra.mxu0 0.0
      %1897 = vmatprep.subr.mxu0 0.0
      %1898 = vmatpush1.msra.mxu0 0.0
      %1899 = vmatprep.subr.mxu0 0.0
      %1900 = vmatpush1.msra.mxu0 0.0
      %1901 = vmatprep.subr.mxu0 0.0
      %1902 = vmatpush1.msra.mxu0 0.0
      %1903 = vmatprep.subr.mxu0 0.0
      %1904 = vmatpush1.msra.mxu0 0.0
      %1905 = vmatprep.subr.mxu0 0.0
      %1906 = vmatpush1.msra.mxu0 0.0
      %1907 = vmatprep.subr.mxu0 0.0
      %1908 = vmatpush1.msra.mxu0 0.0
      %1909 = vmatprep.subr.mxu0 0.0
      %1910 = vmatpush1.msra.mxu0 0.0
      %1911 = vmatprep.subr.mxu0 0.0
      %1912 = vmatpush1.msra.mxu0 0.0
      %1913 = vmatprep.subr.mxu0 0.0
      %1914 = vmatpush1.msra.mxu0 0.0
      %1915 = vmatprep.subr.mxu0 0.0
      %1916 = vmatpush1.msra.mxu0 0.0
      %1917 = vmatprep.subr.mxu0 0.0
      %1918 = vmatpush1.msra.mxu0 0.0
      %1919 = vmatprep.subr.mxu0 0.0
      %1920 = vmatpush1.msra.mxu0 0.0
      %1921 = vmatprep.subr.mxu0 0.0
      %1922 = vmatpush1.msra.mxu0 0.0
      %1923 = vmatprep.subr.mxu0 0.0
      %1924 = vmatpush1.msra.mxu0 0.0
      %1925 = vmatprep.subr.mxu0 0.0
      %1926 = vmatpush1.msra.mxu0 0.0
      %1927 = vmatprep.subr.mxu0 0.0
      %1928 = vmatpush1.msra.mxu0 0.0
      %1929 = vmatprep.subr.mxu0 0.0
      %1930 = vmatpush1.msra.mxu0 0.0
      %1931 = vmatprep.subr.mxu0 0.0
      %1932 = vmatpush1.msra.mxu0 0.0
      %1933 = vmatprep.subr.mxu0 0.0
      %1934 = vmatpush1.msra.mxu0 0.0
      %1935 = vmatprep.mubr.f32.mxu0 0.0
      %1936 = vmatmul.mubr.f32.gmra.mrb[0].mxu0 %v1798
      %v1937 = vpop.f32.mrb[0].mxu0
      %v1938 = vadd.f32 %v1787, %v1937
      %v1939 = vpop.f32.mrb[0].mxu0
      %v1940 = vadd.f32 %v1791, %v1939
      %1941 = vdwg.mxu0
      %v1942 = vsub.f32 0.0, %v1867
      %v1943 = vsub.f32 0.0, %v1869
      %v1944 = vsub.f32 0.0, %v1938
      %v1945 = vsub.f32 0.0, %v1940
      %v1946 = vmul.f32 %v1942, 1.442695
      %v1947 = vpow.pop %v1946
      %v1948 = vmul.f32 %v1943, 1.442695
      %v1949 = vpow.pop %v1948
      %v1950 = vmul.f32 %v1944, 1.442695
      %v1951 = vpow.pop %v1950
      %v1952 = vmul.f32 %v1945, 1.442695
      %v1953 = vpow.pop %v1952
      %v1954 = vadd.f32 %v1947, 1.0
      %v1955 = vadd.f32 %v1949, 1.0
      %v1956 = vadd.f32 %v1951, 1.0
      %v1957 = vadd.f32 %v1953, 1.0
      %v1958 = vrcp.pop %v1954
      %v1959 = vmul.f32 1.0, %v1958
      %v1960 = vrcp.pop %v1955
      %v1961 = vmul.f32 1.0, %v1960
      %v1962 = vrcp.pop %v1956
      %v1963 = vmul.f32 1.0, %v1962
      %v1964 = vrcp.pop %v1957
      %v1965 = vmul.f32 1.0, %v1964
      %v1966 = vld [vmem:[%s586] sm:$0xff]
      %v1967 = vld [vmem:[%s586 + $0x8] sm:$0xff]
      %v1968 = vld [vmem:[%s586 + $0x10] sm:$0xff]
      %v1969 = vld [vmem:[%s586 + $0x18] sm:$0xff]
      %v1970 = vld [vmem:[%s586 + $0x20] sm:$0xff]
      %v1971 = vld [vmem:[%s586 + $0x28] sm:$0xff]
      %v1972 = vld [vmem:[%s586 + $0x30] sm:$0xff]
      %v1973 = vld [vmem:[%s586 + $0x38] sm:$0xff]
      %v1974 = vld [vmem:[%s590] sm:$0xf]
      %v1976 = vlaneseq
      %v1977 = vshrl.u32 %v1976, 7
      %v1978 = vsub.s32 0, %v1977
      %v1979 = vrot.slane %v1974, %v1978
      %v1980 = vlaneseq
      %v1981 = vshrl.u32 %v1980, 7
      %v1982 = vsub.s32 1, %v1981
      %v1983 = vrot.slane %v1974, %v1982
      %v1984 = vlaneseq
      %v1985 = vshrl.u32 %v1984, 7
      %v1986 = vsub.s32 2, %v1985
      %v1987 = vrot.slane %v1974, %v1986
      %v1988 = vlaneseq
      %v1989 = vshrl.u32 %v1988, 7
      %v1990 = vsub.s32 3, %v1989
      %v1991 = vrot.slane %v1974, %v1990
      %v1997 = vsel %vm1796, %v1765, 0
      %1999 = vmatprep.subr.mxu0 %v1967
      %2000 = vmatpush1.msra.mxu0 %v1966
      %2001 = vmatprep.subr.mxu0 %v1971
      %2002 = vmatpush1.msra.mxu0 %v1970
      %2003 = vmatprep.subr.mxu0 0.0
      %2004 = vmatpush1.msra.mxu0 0.0
      %2005 = vmatprep.subr.mxu0 0.0
      %2006 = vmatpush1.msra.mxu0 0.0
      %2007 = vmatprep.subr.mxu0 0.0
      %2008 = vmatpush1.msra.mxu0 0.0
      %2009 = vmatprep.subr.mxu0 0.0
      %2010 = vmatpush1.msra.mxu0 0.0
      %2011 = vmatprep.subr.mxu0 0.0
      %2012 = vmatpush1.msra.mxu0 0.0
      %2013 = vmatprep.subr.mxu0 0.0
      %2014 = vmatpush1.msra.mxu0 0.0
      %2015 = vmatprep.subr.mxu0 0.0
      %2016 = vmatpush1.msra.mxu0 0.0
      %2017 = vmatprep.subr.mxu0 0.0
      %2018 = vmatpush1.msra.mxu0 0.0
      %2019 = vmatprep.subr.mxu0 0.0
      %2020 = vmatpush1.msra.mxu0 0.0
      %2021 = vmatprep.subr.mxu0 0.0
      %2022 = vmatpush1.msra.mxu0 0.0
      %2023 = vmatprep.subr.mxu0 0.0
      %2024 = vmatpush1.msra.mxu0 0.0
      %2025 = vmatprep.subr.mxu0 0.0
      %2026 = vmatpush1.msra.mxu0 0.0
      %2027 = vmatprep.subr.mxu0 0.0
      %2028 = vmatpush1.msra.mxu0 0.0
      %2029 = vmatprep.subr.mxu0 0.0
      %2030 = vmatpush1.msra.mxu0 0.0
      %2031 = vmatprep.subr.mxu0 0.0
      %2032 = vmatpush1.msra.mxu0 0.0
      %2033 = vmatprep.subr.mxu0 0.0
      %2034 = vmatpush1.msra.mxu0 0.0
      %2035 = vmatprep.subr.mxu0 0.0
      %2036 = vmatpush1.msra.mxu0 0.0
      %2037 = vmatprep.subr.mxu0 0.0
      %2038 = vmatpush1.msra.mxu0 0.0
      %2039 = vmatprep.subr.mxu0 0.0
      %2040 = vmatpush1.msra.mxu0 0.0
      %2041 = vmatprep.subr.mxu0 0.0
      %2042 = vmatpush1.msra.mxu0 0.0
      %2043 = vmatprep.subr.mxu0 0.0
      %2044 = vmatpush1.msra.mxu0 0.0
      %2045 = vmatprep.subr.mxu0 0.0
      %2046 = vmatpush1.msra.mxu0 0.0
      %2047 = vmatprep.subr.mxu0 0.0
      %2048 = vmatpush1.msra.mxu0 0.0
      %2049 = vmatprep.subr.mxu0 0.0
      %2050 = vmatpush1.msra.mxu0 0.0
      %2051 = vmatprep.subr.mxu0 0.0
      %2052 = vmatpush1.msra.mxu0 0.0
      %2053 = vmatprep.subr.mxu0 0.0
      %2054 = vmatpush1.msra.mxu0 0.0
      %2055 = vmatprep.subr.mxu0 0.0
      %2056 = vmatpush1.msra.mxu0 0.0
      %2057 = vmatprep.subr.mxu0 0.0
      %2058 = vmatpush1.msra.mxu0 0.0
      %2059 = vmatprep.subr.mxu0 0.0
      %2060 = vmatpush1.msra.mxu0 0.0
      %2061 = vmatprep.subr.mxu0 0.0
      %2062 = vmatpush1.msra.mxu0 0.0
      %2063 = vmatprep.mubr.f32.mxu0 0.0
      %2064 = vmatmul.mubr.f32.gmra.mrb[0].mxu0 %v1997
      %v2065 = vpop.f32.mrb[0].mxu0
      %v2066 = vadd.f32 %v1979, %v2065
      %v2067 = vpop.f32.mrb[0].mxu0
      %v2068 = vadd.f32 %v1983, %v2067
      %2069 = vdwg.mxu0
      %2070 = vmatprep.subr.mxu0 %v1969
      %2071 = vmatpush1.msra.mxu0 %v1968
      %2072 = vmatprep.subr.mxu0 %v1973
      %2073 = vmatpush1.msra.mxu0 %v1972
      %2074 = vmatprep.subr.mxu0 0.0
      %2075 = vmatpush1.msra.mxu0 0.0
      %2076 = vmatprep.subr.mxu0 0.0
      %2077 = vmatpush1.msra.mxu0 0.0
      %2078 = vmatprep.subr.mxu0 0.0
      %2079 = vmatpush1.msra.mxu0 0.0
      %2080 = vmatprep.subr.mxu0 0.0
      %2081 = vmatpush1.msra.mxu0 0.0
      %2082 = vmatprep.subr.mxu0 0.0
      %2083 = vmatpush1.msra.mxu0 0.0
      %2084 = vmatprep.subr.mxu0 0.0
      %2085 = vmatpush1.msra.mxu0 0.0
      %2086 = vmatprep.subr.mxu0 0.0
      %2087 = vmatpush1.msra.mxu0 0.0
      %2088 = vmatprep.subr.mxu0 0.0
      %2089 = vmatpush1.msra.mxu0 0.0
      %2090 = vmatprep.subr.mxu0 0.0
      %2091 = vmatpush1.msra.mxu0 0.0
      %2092 = vmatprep.subr.mxu0 0.0
      %2093 = vmatpush1.msra.mxu0 0.0
      %2094 = vmatprep.subr.mxu0 0.0
      %2095 = vmatpush1.msra.mxu0 0.0
      %2096 = vmatprep.subr.mxu0 0.0
      %2097 = vmatpush1.msra.mxu0 0.0
      %2098 = vmatprep.subr.mxu0 0.0
      %2099 = vmatpush1.msra.mxu0 0.0
      %2100 = vmatprep.subr.mxu0 0.0
      %2101 = vmatpush1.msra.mxu0 0.0
      %2102 = vmatprep.subr.mxu0 0.0
      %2103 = vmatpush1.msra.mxu0 0.0
      %2104 = vmatprep.subr.mxu0 0.0
      %2105 = vmatpush1.msra.mxu0 0.0
      %2106 = vmatprep.subr.mxu0 0.0
      %2107 = vmatpush1.msra.mxu0 0.0
      %2108 = vmatprep.subr.mxu0 0.0
      %2109 = vmatpush1.msra.mxu0 0.0
      %2110 = vmatprep.subr.mxu0 0.0
      %2111 = vmatpush1.msra.mxu0 0.0
      %2112 = vmatprep.subr.mxu0 0.0
      %2113 = vmatpush1.msra.mxu0 0.0
      %2114 = vmatprep.subr.mxu0 0.0
      %2115 = vmatpush1.msra.mxu0 0.0
      %2116 = vmatprep.subr.mxu0 0.0
      %2117 = vmatpush1.msra.mxu0 0.0
      %2118 = vmatprep.subr.mxu0 0.0
      %2119 = vmatpush1.msra.mxu0 0.0
      %2120 = vmatprep.subr.mxu0 0.0
      %2121 = vmatpush1.msra.mxu0 0.0
      %2122 = vmatprep.subr.mxu0 0.0
      %2123 = vmatpush1.msra.mxu0 0.0
      %2124 = vmatprep.subr.mxu0 0.0
      %2125 = vmatpush1.msra.mxu0 0.0
      %2126 = vmatprep.subr.mxu0 0.0
      %2127 = vmatpush1.msra.mxu0 0.0
      %2128 = vmatprep.subr.mxu0 0.0
      %2129 = vmatpush1.msra.mxu0 0.0
      %2130 = vmatprep.subr.mxu0 0.0
      %2131 = vmatpush1.msra.mxu0 0.0
      %2132 = vmatprep.subr.mxu0 0.0
      %2133 = vmatpush1.msra.mxu0 0.0
      %2134 = vmatprep.mubr.f32.mxu0 0.0
      %2135 = vmatmul.mubr.f32.gmra.mrb[0].mxu0 %v1997
      %v2136 = vpop.f32.mrb[0].mxu0
      %v2137 = vadd.f32 %v1987, %v2136
      %v2138 = vpop.f32.mrb[0].mxu0
      %v2139 = vadd.f32 %v1991, %v2138
      %2140 = vdwg.mxu0
      %v2141 = vsub.f32 0.0, %v2066
      %v2142 = vsub.f32 0.0, %v2068
      %v2143 = vsub.f32 0.0, %v2137
      %v2144 = vsub.f32 0.0, %v2139
      %v2145 = vmul.f32 %v2141, 1.442695
      %v2146 = vpow.pop %v2145
      %v2147 = vmul.f32 %v2142, 1.442695
      %v2148 = vpow.pop %v2147
      %v2149 = vmul.f32 %v2143, 1.442695
      %v2150 = vpow.pop %v2149
      %v2151 = vmul.f32 %v2144, 1.442695
      %v2152 = vpow.pop %v2151
      %v2153 = vadd.f32 %v2146, 1.0
      %v2154 = vadd.f32 %v2148, 1.0
      %v2155 = vadd.f32 %v2150, 1.0
      %v2156 = vadd.f32 %v2152, 1.0
      %v2157 = vrcp.pop %v2153
      %v2158 = vmul.f32 1.0, %v2157
      %v2159 = vrcp.pop %v2154
      %v2160 = vmul.f32 1.0, %v2159
      %v2161 = vrcp.pop %v2155
      %v2162 = vmul.f32 1.0, %v2161
      %v2163 = vrcp.pop %v2156
      %v2164 = vmul.f32 1.0, %v2163
      %v2169 = vcombine.low %v1959, %v1961
      %v2170 = vcombine.high %v1959, %v1961
      %v2171 = vcombine.low %v1963, %v1965
      %v2172 = vcombine.high %v1963, %v1965
      %v2174 = vunpack.c.l.s4 1966171168
      %v2175 = vunpack.c.0.s8 %v2174
      %v2176 = vlaneseq
      %v2177 = vshrl.u32 %v2176, 7
      %v2178 = vsub.s32 %v2175, %v2177
      %v2179 = vrot.slane %v2169, %v2178
      %v2181 = vunpack.c.l.s4 1966171168
      %v2182 = vunpack.c.0.s8 %v2181
      %v2183 = vlaneseq
      %v2184 = vshrl.u32 %v2183, 7
      %v2185 = vsub.s32 %v2182, %v2184
      %v2186 = vrot.slane %v2170, %v2185
      %v2188 = vunpack.c.l.s4 1966171168
      %v2189 = vunpack.c.0.s8 %v2188
      %v2190 = vlaneseq
      %v2191 = vshrl.u32 %v2190, 7
      %v2192 = vsub.s32 %v2189, %v2191
      %v2193 = vrot.slane %v2171, %v2192
      %v2195 = vunpack.c.l.s4 1966171168
      %v2196 = vunpack.c.0.s8 %v2195
      %v2197 = vlaneseq
      %v2198 = vshrl.u32 %v2197, 7
      %v2199 = vsub.s32 %v2196, %v2198
      %v2200 = vrot.slane %v2172, %v2199
      %v2201 = vcombine.low %v2179, %v2193
      %v2202 = vcombine.high %v2179, %v2193
      %v2203 = vcombine.low %v2186, %v2200
      %v2204 = vcombine.high %v2186, %v2200
      %v2206 = vunpack.c.l.s4 1966171168
      %v2207 = vunpack.c.0.s8 %v2206
      %v2208 = vlaneseq
      %v2209 = vshrl.u32 %v2208, 7
      %v2210 = vsub.s32 %v2207, %v2209
      %v2211 = vrot.slane %v2201, %v2210
      %v2213 = vunpack.c.l.s4 1966171168
      %v2214 = vunpack.c.0.s8 %v2213
      %v2215 = vlaneseq
      %v2216 = vshrl.u32 %v2215, 7
      %v2217 = vsub.s32 %v2214, %v2216
      %v2218 = vrot.slane %v2203, %v2217
      %v2220 = vunpack.c.l.s4 1966171168
      %v2221 = vunpack.c.0.s8 %v2220
      %v2222 = vlaneseq
      %v2223 = vshrl.u32 %v2222, 7
      %v2224 = vsub.s32 %v2221, %v2223
      %v2225 = vrot.slane %v2202, %v2224
      %v2227 = vunpack.c.l.s4 1966171168
      %v2228 = vunpack.c.0.s8 %v2227
      %v2229 = vlaneseq
      %v2230 = vshrl.u32 %v2229, 7
      %v2231 = vsub.s32 %v2228, %v2230
      %v2232 = vrot.slane %v2204, %v2231
      %v2233 = vcombine.high %v2211, %v2211
      %v2234 = vcombine.high %v2218, %v2218
      %v2235 = vcombine.high %v2225, %v2225
      %v2236 = vlaneseq
      %v2237 = vshrl.u32 %v2236, 7
      %v2238 = vsub.s32 0, %v2237
      %v2239 = vrot.slane %v2211, %v2238
      %v2240 = vlaneseq
      %v2241 = vshrl.u32 %v2240, 7
      %v2242 = vsub.s32 1, %v2241
      %v2243 = vrot.slane %v2211, %v2242
      %v2244 = vlaneseq
      %v2245 = vshrl.u32 %v2244, 7
      %v2246 = vsub.s32 2, %v2245
      %v2247 = vrot.slane %v2211, %v2246
      %v2248 = vlaneseq
      %v2249 = vshrl.u32 %v2248, 7
      %v2250 = vsub.s32 3, %v2249
      %v2251 = vrot.slane %v2211, %v2250
      %v2252 = vlaneseq
      %v2253 = vshrl.u32 %v2252, 7
      %v2254 = vsub.s32 0, %v2253
      %v2255 = vrot.slane %v2225, %v2254
      %v2256 = vlaneseq
      %v2257 = vshrl.u32 %v2256, 7
      %v2258 = vsub.s32 1, %v2257
      %v2259 = vrot.slane %v2225, %v2258
      %v2260 = vlaneseq
      %v2261 = vshrl.u32 %v2260, 7
      %v2262 = vsub.s32 2, %v2261
      %v2263 = vrot.slane %v2225, %v2262
      %v2264 = vlaneseq
      %v2265 = vshrl.u32 %v2264, 7
      %v2266 = vsub.s32 3, %v2265
      %v2267 = vrot.slane %v2225, %v2266
      %v2268 = vlaneseq
      %v2269 = vshrl.u32 %v2268, 7
      %v2270 = vsub.s32 0, %v2269
      %v2271 = vrot.slane %v2233, %v2270
      %v2272 = vlaneseq
      %v2273 = vshrl.u32 %v2272, 7
      %v2274 = vsub.s32 1, %v2273
      %v2275 = vrot.slane %v2233, %v2274
      %v2276 = vlaneseq
      %v2277 = vshrl.u32 %v2276, 7
      %v2278 = vsub.s32 2, %v2277
      %v2279 = vrot.slane %v2233, %v2278
      %v2280 = vlaneseq
      %v2281 = vshrl.u32 %v2280, 7
      %v2282 = vsub.s32 3, %v2281
      %v2283 = vrot.slane %v2233, %v2282
      %v2284 = vlaneseq
      %v2285 = vshrl.u32 %v2284, 7
      %v2286 = vsub.s32 0, %v2285
      %v2287 = vrot.slane %v2235, %v2286
      %v2288 = vlaneseq
      %v2289 = vshrl.u32 %v2288, 7
      %v2290 = vsub.s32 1, %v2289
      %v2291 = vrot.slane %v2235, %v2290
      %v2292 = vlaneseq
      %v2293 = vshrl.u32 %v2292, 7
      %v2294 = vsub.s32 2, %v2293
      %v2295 = vrot.slane %v2235, %v2294
      %v2296 = vlaneseq
      %v2297 = vshrl.u32 %v2296, 7
      %v2298 = vsub.s32 3, %v2297
      %v2299 = vrot.slane %v2235, %v2298
      %v2300 = vlaneseq
      %v2301 = vshrl.u32 %v2300, 7
      %v2302 = vsub.s32 0, %v2301
      %v2303 = vrot.slane %v2218, %v2302
      %v2304 = vlaneseq
      %v2305 = vshrl.u32 %v2304, 7
      %v2306 = vsub.s32 1, %v2305
      %v2307 = vrot.slane %v2218, %v2306
      %v2308 = vlaneseq
      %v2309 = vshrl.u32 %v2308, 7
      %v2310 = vsub.s32 2, %v2309
      %v2311 = vrot.slane %v2218, %v2310
      %v2312 = vlaneseq
      %v2313 = vshrl.u32 %v2312, 7
      %v2314 = vsub.s32 3, %v2313
      %v2315 = vrot.slane %v2218, %v2314
      %v2316 = vlaneseq
      %v2317 = vshrl.u32 %v2316, 7
      %v2318 = vsub.s32 0, %v2317
      %v2319 = vrot.slane %v2232, %v2318
      %v2320 = vlaneseq
      %v2321 = vshrl.u32 %v2320, 7
      %v2322 = vsub.s32 1, %v2321
      %v2323 = vrot.slane %v2232, %v2322
      %v2324 = vlaneseq
      %v2325 = vshrl.u32 %v2324, 7
      %v2326 = vsub.s32 2, %v2325
      %v2327 = vrot.slane %v2232, %v2326
      %v2328 = vlaneseq
      %v2329 = vshrl.u32 %v2328, 7
      %v2330 = vsub.s32 3, %v2329
      %v2331 = vrot.slane %v2232, %v2330
      %v2332 = vlaneseq
      %v2333 = vshrl.u32 %v2332, 7
      %v2334 = vsub.s32 0, %v2333
      %v2335 = vrot.slane %v2234, %v2334
      %v2336 = vlaneseq
      %v2337 = vshrl.u32 %v2336, 7
      %v2338 = vsub.s32 1, %v2337
      %v2339 = vrot.slane %v2234, %v2338
      %v2340 = vlaneseq
      %v2341 = vshrl.u32 %v2340, 7
      %v2342 = vsub.s32 2, %v2341
      %v2343 = vrot.slane %v2234, %v2342
      %v2344 = vlaneseq
      %v2345 = vshrl.u32 %v2344, 7
      %v2346 = vsub.s32 3, %v2345
      %v2347 = vrot.slane %v2234, %v2346
      %v2376 = vmul.f32 %v2239, %v2158
      %v2377 = vmul.f32 %v2243, %v2160
      %v2378 = vmul.f32 %v2247, %v2162
      %v2379 = vmul.f32 %v2251, %v2164
      %v2380 = vmul.f32 %v2255, %v2158
      %v2381 = vmul.f32 %v2259, %v2160
      %v2382 = vmul.f32 %v2263, %v2162
      %v2383 = vmul.f32 %v2267, %v2164
      %v2384 = vmul.f32 %v2271, %v2158
      %v2385 = vmul.f32 %v2275, %v2160
      %v2386 = vmul.f32 %v2279, %v2162
      %v2387 = vmul.f32 %v2283, %v2164
      %v2388 = vmul.f32 %v2287, %v2158
      %v2389 = vmul.f32 %v2291, %v2160
      %v2390 = vmul.f32 %v2295, %v2162
      %v2391 = vmul.f32 %v2299, %v2164
      %v2392 = vmul.f32 %v2303, %v2158
      %v2393 = vmul.f32 %v2307, %v2160
      %v2394 = vmul.f32 %v2311, %v2162
      %v2395 = vmul.f32 %v2315, %v2164
      %v2396 = vmul.f32 %v2319, %v2158
      %v2397 = vmul.f32 %v2323, %v2160
      %v2398 = vmul.f32 %v2327, %v2162
      %v2399 = vmul.f32 %v2331, %v2164
      %v2400 = vmul.f32 %v2335, %v2158
      %v2401 = vmul.f32 %v2339, %v2160
      %v2402 = vmul.f32 %v2343, %v2162
      %v2403 = vmul.f32 %v2347, %v2164
      %2404 = vst [vmem:[%s599] sm:$0x7f] %v2376
      %2405 = vst [vmem:[%s599 + $0x8] sm:$0x7f] %v2377
      %2406 = vst [vmem:[%s599 + $0x10] sm:$0x7f] %v2378
      %2407 = vst [vmem:[%s599 + $0x18] sm:$0x7f] %v2379
      %2408 = vst [vmem:[%s599 + $0x20] sm:$0x7f] %v2380
      %2409 = vst [vmem:[%s599 + $0x28] sm:$0x7f] %v2381
      %2410 = vst [vmem:[%s599 + $0x30] sm:$0x7f] %v2382
      %2411 = vst [vmem:[%s599 + $0x38] sm:$0x7f] %v2383
      %2412 = vst [vmem:[%s599 + $0x40] sm:$0x7f] %v2384
      %2413 = vst [vmem:[%s599 + $0x48] sm:$0x7f] %v2385
      %2414 = vst [vmem:[%s599 + $0x50] sm:$0x7f] %v2386
      %2415 = vst [vmem:[%s599 + $0x58] sm:$0x7f] %v2387
      %2416 = vst [vmem:[%s599 + $0x60] sm:$0x7f] %v2388
      %2417 = vst [vmem:[%s599 + $0x68] sm:$0x7f] %v2389
      %2418 = vst [vmem:[%s599 + $0x70] sm:$0x7f] %v2390
      %2419 = vst [vmem:[%s599 + $0x78] sm:$0x7f] %v2391
      %2420 = vst [vmem:[%s599 + $0x80] sm:$0x7f] %v2392
      %2421 = vst [vmem:[%s599 + $0x88] sm:$0x7f] %v2393
      %2422 = vst [vmem:[%s599 + $0x90] sm:$0x7f] %v2394
      %2423 = vst [vmem:[%s599 + $0x98] sm:$0x7f] %v2395
      %2424 = vst [vmem:[%s599 + $0xa0] sm:$0x7f] %v2396
      %2425 = vst [vmem:[%s599 + $0xa8] sm:$0x7f] %v2397
      %2426 = vst [vmem:[%s599 + $0xb0] sm:$0x7f] %v2398
      %2427 = vst [vmem:[%s599 + $0xb8] sm:$0x7f] %v2399
      %2428 = vst [vmem:[%s599 + $0xc0] sm:$0x7f] %v2400
      %2429 = vst [vmem:[%s599 + $0xc8] sm:$0x7f] %v2401
      %2430 = vst [vmem:[%s599 + $0xd0] sm:$0x7f] %v2402
      %2431 = vst [vmem:[%s599 + $0xd8] sm:$0x7f] %v2403
      %p2432 = scmp.lt.s32.totalorder %s26, 1
      %s2433 = scalar_select %p2432, %s26, 1
      %p2434 = scmp.lt.s32.totalorder %s27, 1
      %s2435 = scalar_select %p2434, %s27, 1
      %s2436 = smul.addr %s2435, 28
      %s2437 = smul.addr %s2433, 56
      %s2438 = sadd.s32 %s2436, %s2437
      %s2439 = smul.addr %s2438, 8
      %s2440 = scalar_lea.vmem %s11, %s2439
      // Predicated region
      $region65: #{classifier_head_forward.2} parent=63 // pred_check
        %p2441 = pneg %p340
      $region66: #{classifier_head_forward.2} parent=63 // pred_check_branch
        %2443 = sbr.rel (%p2441) target = $region68
      $region67: #{classifier_head_forward.2} parent=63 // pred_region
        _
      $region68: #{classifier_head_forward.2} parent=63 // pred_fallthru
        _
    $region64: #{classifier_head_forward.2} parent=5 // pred_fallthru
      _
    %p2444 = scmp.le.s32.totalorder 2, %s17
    // Predicated region
    $region69: #{classifier_head_forward.2} parent=5 // pred_check
      %p2445 = pneg %p2444
    $region70: #{classifier_head_forward.2} parent=5 // pred_check_branch
      %2447 = sbr.rel (%p2445) target = $region72
    $region71: #{classifier_head_forward.2} parent=5 // pred_region
      %s2448 = ssub.s32 %s17, 2
      // Predicated region
      $region73: #{classifier_head_forward.2} parent=71 // pred_check
        %p2449 = pneg %p346
      $region74: #{classifier_head_forward.2} parent=71 // pred_check_branch
        %2451 = sbr.rel (%p2449) target = $region76
      $region75: #{classifier_head_forward.2} parent=71 // pred_region
        %p2452 = scmp.lt.s32.totalorder %s28, 1
        %s2453 = scalar_select %p2452, %s28, 1
        %p2454 = scmp.lt.s32.totalorder %s29, 1
        %s2455 = scalar_select %p2454, %s29, 1
        %s2456 = smul.addr %s2455, 28
        %s2457 = smul.addr %s2453, 56
        %s2458 = sadd.s32 %s2456, %s2457
        %s2459 = smul.addr %s2458, 8
        %s2460 = scalar_lea.vmem %s11, %s2459
      $region76: #{classifier_head_forward.2} parent=71 // pred_fallthru
        _
    $region72: #{classifier_head_forward.2} parent=5 // pred_fallthru
      _
  $region6: #{classifier_head_forward.2} parent=0 // loop_footer
    %s21 = sadd.s32 1, %s17
  $region7: #{classifier_head_forward.2} parent=0 // loop_footer_branch
    %16 = sbr.rel target = $region3
  $region8: #{classifier_head_forward.2} parent=0 // loop_exit
    _

</llo_original>
